<compile_context>
chip_gen: v6e
topology: v6e:2x2x1
jax: 0.10.0
libtpu: 0.0.40
codegen_flags: <defaults>
</compile_context>

<pallas_src>
import functools

import jax
import jax.numpy as jnp
from jax import lax
from jax.experimental import pallas as pl
from jax.experimental.pallas import tpu as pltpu

_LANE = 128


def _pick_row_tile(ho, wo, target_rows=1024):
    """Largest TH dividing Ho with TH*Wo <= target_rows, preferring (TH*Wo) % 8 == 0."""
    best = 1
    for cand in range(1, ho + 1):
        if ho % cand != 0 or cand * wo > target_rows:
            continue
        if (cand * wo) % 8 == 0 or (best * wo) % 8 != 0:
            best = cand
    return best


def _conv_tile(x_ref, w_ref, ih, *, th, wo, k, stride, cin, cpad):
    """Fused im2col + matmul for one (batch, Ho-tile) grid point.

    x_ref: (1, Hp, Wp, Cin)   bf16  -- whole padded image of this batch element (resident)
    w_ref: (K*K, Cin, Cpad)   bf16  -- conv weight per kernel tap, Cout zero-padded to Cpad
    returns y: (TH*Wo, Cpad)  f32   -- un-normalized conv rows for this tile
    """
    row0 = pl.multiple_of(ih * (th * stride), th * stride)
    nrows = (th - 1) * stride + k
    xt = x_ref[0, pl.ds(row0, nrows), :, :]                     # (nrows, Wp, Cin) bf16
    acc = jnp.zeros((th * wo, cpad), jnp.float32)
    for ki in range(k):
        for kj in range(k):
            # shifted (and, for stride>1, strided) view for kernel tap (ki, kj)
            sub = lax.slice(
                xt,
                (ki, kj, 0),
                (ki + (th - 1) * stride + 1, kj + (wo - 1) * stride + 1, cin),
                (stride, stride, 1))                            # (TH, Wo, Cin)
            acc = acc + jnp.dot(sub.reshape(th * wo, cin),
                                w_ref[ki * k + kj],
                                preferred_element_type=jnp.float32)
    return acc


def _stats_kernel(x_ref, w_ref, stats_ref, *, th, wo, k, stride, cin, cpad):
    y = _conv_tile(x_ref, w_ref, pl.program_id(1),
                   th=th, wo=wo, k=k, stride=stride, cin=cin, cpad=cpad)
    s1 = jnp.sum(y, axis=0, keepdims=True)          # (1, Cpad) per-channel sum
    s2 = jnp.sum(y * y, axis=0, keepdims=True)      # (1, Cpad) per-channel sum of squares
    stats_ref[...] = jnp.concatenate([s1, s2], axis=0)[None]    # (1, 2, Cpad)


def _apply_kernel(x_ref, w_ref, scale_ref, bias_ref, o_ref, *, th, wo, k, stride, cin, cpad):
    y = _conv_tile(x_ref, w_ref, pl.program_id(1),
                   th=th, wo=wo, k=k, stride=stride, cin=cin, cpad=cpad)
    z = y * scale_ref[...] + bias_ref[...]                      # fused BatchNorm (f32)
    o_ref[...] = jnp.where(z > 0, z, jnp.float32(0.2) * z).astype(o_ref.dtype)


def conv2d_block_forward(x_nchw, weight_oihw, gamma, beta, *, stride=1, padding=0):
    """x: [N,Cin,H,W], weight: [Cout,Cin,K,K], gamma/beta: [Cout] -> [N,Cout,Ho,Wo]."""
    n, c_in, h, w = x_nchw.shape
    c_out, c_in_w, k, k2 = weight_oihw.shape
    assert c_in == c_in_w and k == k2

    hp, wp = h + 2 * padding, w + 2 * padding
    ho = (hp - k) // stride + 1
    wo = (wp - k) // stride + 1
    c_pad = ((c_out + _LANE - 1) // _LANE) * _LANE     # lane-dense output channels
    th = _pick_row_tile(ho, wo)                        # output image rows per tile
    ht = ho // th                                      # Ho-tiles per image
    m_tile = th * wo                                   # output rows per grid step
    m_rows = n * ho * wo                               # BN reduction length (N*Ho*Wo)

    # ---- plain-JAX glue: layout, spatial pad, dtype ----
    x_nhwc = jnp.transpose(x_nchw, (0, 2, 3, 1))
    x_pad = jnp.pad(x_nhwc, ((0, 0), (padding, padding), (padding, padding), (0, 0)))
    x_pad = x_pad.astype(jnp.bfloat16)
    # [Cout,Cin,K,K] -> [K*K, Cin, Cpad]; zero-padded channels contribute exactly 0.
    w_taps = jnp.transpose(weight_oihw, (2, 3, 1, 0)).reshape(k * k, c_in, c_out)
    w_taps = jnp.pad(w_taps, ((0, 0), (0, 0), (0, c_pad - c_out))).astype(jnp.bfloat16)

    x_spec = pl.BlockSpec((1, hp, wp, c_in), lambda b, i: (b, 0, 0, 0))
    w_spec = pl.BlockSpec((k * k, c_in, c_pad), lambda b, i: (0, 0, 0))

    x_bytes = hp * wp * c_in * 2
    w_bytes = k * k * c_in * c_pad * 2
    out_bytes = m_tile * c_pad * 4
    vmem_limit = int(min(2 * (x_bytes + w_bytes + out_bytes) + (8 << 20), 32 << 20))
    cparams = pltpu.CompilerParams(
        dimension_semantics=("parallel", "parallel"),  # lets v7x shard across its 2 TCs
        vmem_limit_bytes=vmem_limit)

    static = dict(th=th, wo=wo, k=k, stride=stride, cin=c_in, cpad=c_pad)

    # ---- pass 1: per-tile partial BN statistics ----
    stats = pl.pallas_call(
        functools.partial(_stats_kernel, **static),
        out_shape=jax.ShapeDtypeStruct((n * ht, 2, c_pad), jnp.float32),
        grid=(n, ht),
        in_specs=[x_spec, w_spec],
        out_specs=pl.BlockSpec((1, 2, c_pad), lambda b, i: (b * ht + i, 0, 0)),
        compiler_params=cparams,
    )(x_pad, w_taps)

    # ---- tiny wrapper-side finalize: global mean/var -> fused scale/bias ----
    tot = jnp.sum(stats, axis=0)                                # (2, Cpad)
    mean = tot[0] / jnp.float32(m_rows)
    # one-pass E[y^2]-E[y]^2 (f32); clamp tiny negatives from cancellation
    var = jnp.maximum(tot[1] / jnp.float32(m_rows) - mean * mean, 0.0)
    inv = lax.rsqrt(var + jnp.float32(1e-3))
    gamma_p = jnp.pad(gamma.astype(jnp.float32), (0, c_pad - c_out))
    beta_p = jnp.pad(beta.astype(jnp.float32), (0, c_pad - c_out))
    scale = (gamma_p * inv).reshape(1, c_pad)
    bias = (beta_p - mean * gamma_p * inv).reshape(1, c_pad)

    # ---- pass 2: recompute conv tile, apply BN + LeakyReLU, lane-dense store ----
    par_spec = pl.BlockSpec((1, c_pad), lambda b, i: (0, 0))
    out_flat = pl.pallas_call(
        functools.partial(_apply_kernel, **static),
        out_shape=jax.ShapeDtypeStruct((m_rows, c_pad), jnp.float32),
        grid=(n, ht),
        in_specs=[x_spec, w_spec, par_spec, par_spec],
        out_specs=pl.BlockSpec((m_tile, c_pad), lambda b, i: (b * ht + i, 0)),
        compiler_params=cparams,
    )(x_pad, w_taps, scale, bias)

    out_nhwc = out_flat.reshape(n, ho, wo, c_pad)[..., :c_out]
    return jnp.transpose(out_nhwc, (0, 3, 1, 2))


def _reference_forward(x_nchw, weight_oihw, gamma, beta, *, stride, padding):
    """Plain-JAX f32 reference with the module's semantics."""
    y = lax.conv_general_dilated(
        x_nchw, weight_oihw, (stride, stride),
        [(padding, padding), (padding, padding)],
        dimension_numbers=("NCHW", "OIHW", "NCHW"))
    mean = jnp.mean(y, axis=(0, 2, 3), keepdims=True)
    var = jnp.mean((y - mean) ** 2, axis=(0, 2, 3), keepdims=True)   # biased, train-mode BN
    z = (y - mean) * lax.rsqrt(var + jnp.float32(1e-3))
    z = z * gamma.reshape(1, -1, 1, 1) + beta.reshape(1, -1, 1, 1)
    return jnp.where(z > 0, z, 0.2 * z)


if __name__ == "__main__":
    key = jax.random.PRNGKey(0)
    k_x, k_w, k_g, k_b = jax.random.split(key, 4)

    # Conv2dBlock(n_in=4, n_out=8, kernel_size=3, stride=1, padding=1), x: [2, 4, 16, 16]
    n_in, n_out, ksize, stride, padding = 4, 8, 3, 1, 1
    x = jax.random.normal(k_x, (2, n_in, 16, 16), dtype=jnp.float32)
    conv_w = 0.1 * jax.random.normal(k_w, (n_out, n_in, ksize, ksize), dtype=jnp.float32)
    bn_gamma = 1.0 + 0.05 * jax.random.normal(k_g, (n_out,), dtype=jnp.float32)
    bn_beta = 0.05 * jax.random.normal(k_b, (n_out,), dtype=jnp.float32)

    fwd = jax.jit(functools.partial(conv2d_block_forward, stride=stride, padding=padding))
    out = jax.block_until_ready(fwd(x, conv_w, bn_gamma, bn_beta))
    assert out.shape == (2, n_out, 16, 16)

    # Loose tolerance: kernel matmul runs bf16 operands / f32 accumulate.
    ref = _reference_forward(x, conv_w, bn_gamma, bn_beta, stride=stride, padding=padding)
    assert jnp.allclose(out, ref, rtol=5e-2, atol=5e-2), float(jnp.max(jnp.abs(out - ref)))
    print("KERNEL_OK")
</pallas_src>

<mosaic_0001>
module attributes {stable_mosaic.version = 11 : i64} {
  func.func @_stats_kernel(%arg0: i32, %arg1: i32, %arg2: memref<1x18x18x4xbf16, #tpu.memory_space<vmem>>, %arg3: memref<9x4x128xbf16, #tpu.memory_space<vmem>>, %arg4: memref<1x2x128xf32, #tpu.memory_space<vmem>>) attributes {dimension_semantics = [#tpu.dimension_semantics<parallel>, #tpu.dimension_semantics<parallel>], iteration_bounds = array<i64: 2, 1>, scalar_prefetch = 0 : i64, scratch_operands = 0 : i64, tpu.core_type = #tpu.core_type<tc>, window_params = [{transform_indices = @transform_0, window_bounds = array<i64: 1, 18, 18, 4>}, {pipeline_mode = #tpu.pipeline_mode<synchronous>, transform_indices = @transform_1, window_bounds = array<i64: 9, 4, 128>}, {transform_indices = @transform_2, window_bounds = array<i64: 1, 2, 128>}]} {
    %c16_i32 = arith.constant 16 : i32
    %0 = arith.muli %arg1, %c16_i32 : i32
    %1 = tpu.assume_multiple %0, 16 : i32
    %c0 = arith.constant 0 : index
    %2 = arith.index_cast %1 : i32 to index
    %c0_0 = arith.constant 0 : index
    %c0_1 = arith.constant 0 : index
    %3 = vector.load %arg2[%c0, %2, %c0_0, %c0_1] : memref<1x18x18x4xbf16, #tpu.memory_space<vmem>>, vector<1x18x18x4xbf16>
    %4 = vector.shape_cast %3 : vector<1x18x18x4xbf16> to vector<18x18x4xbf16>
    %cst = arith.constant 0.000000e+00 : f32
    %5 = vector.broadcast %cst : f32 to vector<256x128xf32>
    %6 = vector.extract_strided_slice %4 {offsets = [0, 0, 0], sizes = [16, 16, 4], strides = [1, 1, 1]} : vector<18x18x4xbf16> to vector<16x16x4xbf16>
    %7 = vector.shape_cast %6 : vector<16x16x4xbf16> to vector<256x4xbf16>
    %c0_2 = arith.constant 0 : index
    %c0_3 = arith.constant 0 : index
    %c0_4 = arith.constant 0 : index
    %8 = vector.load %arg3[%c0_2, %c0_3, %c0_4] : memref<9x4x128xbf16, #tpu.memory_space<vmem>>, vector<1x4x128xbf16>
    %9 = vector.shape_cast %8 : vector<1x4x128xbf16> to vector<4x128xbf16>
    %cst_5 = arith.constant dense<0.000000e+00> : vector<256x128xf32>
    %10 = tpu.matmul %7, %9, %cst_5 {dimension_numbers = #tpu.dot_dimension_numbers<[1], [0], [0], [1], [0, 0, 1, 1], [], []>} : vector<256x4xbf16>, vector<4x128xbf16>, vector<256x128xf32> -> vector<256x128xf32>
    %11 = arith.addf %5, %10 : vector<256x128xf32>
    %12 = vector.extract_strided_slice %4 {offsets = [0, 1, 0], sizes = [16, 16, 4], strides = [1, 1, 1]} : vector<18x18x4xbf16> to vector<16x16x4xbf16>
    %13 = vector.shape_cast %12 : vector<16x16x4xbf16> to vector<256x4xbf16>
    %c1 = arith.constant 1 : index
    %c0_6 = arith.constant 0 : index
    %c0_7 = arith.constant 0 : index
    %14 = vector.load %arg3[%c1, %c0_6, %c0_7] : memref<9x4x128xbf16, #tpu.memory_space<vmem>>, vector<1x4x128xbf16>
    %15 = vector.shape_cast %14 : vector<1x4x128xbf16> to vector<4x128xbf16>
    %cst_8 = arith.constant dense<0.000000e+00> : vector<256x128xf32>
    %16 = tpu.matmul %13, %15, %cst_8 {dimension_numbers = #tpu.dot_dimension_numbers<[1], [0], [0], [1], [0, 0, 1, 1], [], []>} : vector<256x4xbf16>, vector<4x128xbf16>, vector<256x128xf32> -> vector<256x128xf32>
    %17 = arith.addf %11, %16 : vector<256x128xf32>
    %18 = vector.extract_strided_slice %4 {offsets = [0, 2, 0], sizes = [16, 16, 4], strides = [1, 1, 1]} : vector<18x18x4xbf16> to vector<16x16x4xbf16>
    %19 = vector.shape_cast %18 : vector<16x16x4xbf16> to vector<256x4xbf16>
    %c2 = arith.constant 2 : index
    %c0_9 = arith.constant 0 : index
    %c0_10 = arith.constant 0 : index
    %20 = vector.load %arg3[%c2, %c0_9, %c0_10] : memref<9x4x128xbf16, #tpu.memory_space<vmem>>, vector<1x4x128xbf16>
    %21 = vector.shape_cast %20 : vector<1x4x128xbf16> to vector<4x128xbf16>
    %cst_11 = arith.constant dense<0.000000e+00> : vector<256x128xf32>
    %22 = tpu.matmul %19, %21, %cst_11 {dimension_numbers = #tpu.dot_dimension_numbers<[1], [0], [0], [1], [0, 0, 1, 1], [], []>} : vector<256x4xbf16>, vector<4x128xbf16>, vector<256x128xf32> -> vector<256x128xf32>
    %23 = arith.addf %17, %22 : vector<256x128xf32>
    %24 = vector.extract_strided_slice %4 {offsets = [1, 0, 0], sizes = [16, 16, 4], strides = [1, 1, 1]} : vector<18x18x4xbf16> to vector<16x16x4xbf16>
    %25 = vector.shape_cast %24 : vector<16x16x4xbf16> to vector<256x4xbf16>
    %c3 = arith.constant 3 : index
    %c0_12 = arith.constant 0 : index
    %c0_13 = arith.constant 0 : index
    %26 = vector.load %arg3[%c3, %c0_12, %c0_13] : memref<9x4x128xbf16, #tpu.memory_space<vmem>>, vector<1x4x128xbf16>
    %27 = vector.shape_cast %26 : vector<1x4x128xbf16> to vector<4x128xbf16>
    %cst_14 = arith.constant dense<0.000000e+00> : vector<256x128xf32>
    %28 = tpu.matmul %25, %27, %cst_14 {dimension_numbers = #tpu.dot_dimension_numbers<[1], [0], [0], [1], [0, 0, 1, 1], [], []>} : vector<256x4xbf16>, vector<4x128xbf16>, vector<256x128xf32> -> vector<256x128xf32>
    %29 = arith.addf %23, %28 : vector<256x128xf32>
    %30 = vector.extract_strided_slice %4 {offsets = [1, 1, 0], sizes = [16, 16, 4], strides = [1, 1, 1]} : vector<18x18x4xbf16> to vector<16x16x4xbf16>
    %31 = vector.shape_cast %30 : vector<16x16x4xbf16> to vector<256x4xbf16>
    %c4 = arith.constant 4 : index
    %c0_15 = arith.constant 0 : index
    %c0_16 = arith.constant 0 : index
    %32 = vector.load %arg3[%c4, %c0_15, %c0_16] : memref<9x4x128xbf16, #tpu.memory_space<vmem>>, vector<1x4x128xbf16>
    %33 = vector.shape_cast %32 : vector<1x4x128xbf16> to vector<4x128xbf16>
    %cst_17 = arith.constant dense<0.000000e+00> : vector<256x128xf32>
    %34 = tpu.matmul %31, %33, %cst_17 {dimension_numbers = #tpu.dot_dimension_numbers<[1], [0], [0], [1], [0, 0, 1, 1], [], []>} : vector<256x4xbf16>, vector<4x128xbf16>, vector<256x128xf32> -> vector<256x128xf32>
    %35 = arith.addf %29, %34 : vector<256x128xf32>
    %36 = vector.extract_strided_slice %4 {offsets = [1, 2, 0], sizes = [16, 16, 4], strides = [1, 1, 1]} : vector<18x18x4xbf16> to vector<16x16x4xbf16>
    %37 = vector.shape_cast %36 : vector<16x16x4xbf16> to vector<256x4xbf16>
    %c5 = arith.constant 5 : index
    %c0_18 = arith.constant 0 : index
    %c0_19 = arith.constant 0 : index
    %38 = vector.load %arg3[%c5, %c0_18, %c0_19] : memref<9x4x128xbf16, #tpu.memory_space<vmem>>, vector<1x4x128xbf16>
    %39 = vector.shape_cast %38 : vector<1x4x128xbf16> to vector<4x128xbf16>
    %cst_20 = arith.constant dense<0.000000e+00> : vector<256x128xf32>
    %40 = tpu.matmul %37, %39, %cst_20 {dimension_numbers = #tpu.dot_dimension_numbers<[1], [0], [0], [1], [0, 0, 1, 1], [], []>} : vector<256x4xbf16>, vector<4x128xbf16>, vector<256x128xf32> -> vector<256x128xf32>
    %41 = arith.addf %35, %40 : vector<256x128xf32>
    %42 = vector.extract_strided_slice %4 {offsets = [2, 0, 0], sizes = [16, 16, 4], strides = [1, 1, 1]} : vector<18x18x4xbf16> to vector<16x16x4xbf16>
    %43 = vector.shape_cast %42 : vector<16x16x4xbf16> to vector<256x4xbf16>
    %c6 = arith.constant 6 : index
    %c0_21 = arith.constant 0 : index
    %c0_22 = arith.constant 0 : index
    %44 = vector.load %arg3[%c6, %c0_21, %c0_22] : memref<9x4x128xbf16, #tpu.memory_space<vmem>>, vector<1x4x128xbf16>
    %45 = vector.shape_cast %44 : vector<1x4x128xbf16> to vector<4x128xbf16>
    %cst_23 = arith.constant dense<0.000000e+00> : vector<256x128xf32>
    %46 = tpu.matmul %43, %45, %cst_23 {dimension_numbers = #tpu.dot_dimension_numbers<[1], [0], [0], [1], [0, 0, 1, 1], [], []>} : vector<256x4xbf16>, vector<4x128xbf16>, vector<256x128xf32> -> vector<256x128xf32>
    %47 = arith.addf %41, %46 : vector<256x128xf32>
    %48 = vector.extract_strided_slice %4 {offsets = [2, 1, 0], sizes = [16, 16, 4], strides = [1, 1, 1]} : vector<18x18x4xbf16> to vector<16x16x4xbf16>
    %49 = vector.shape_cast %48 : vector<16x16x4xbf16> to vector<256x4xbf16>
    %c7 = arith.constant 7 : index
    %c0_24 = arith.constant 0 : index
    %c0_25 = arith.constant 0 : index
    %50 = vector.load %arg3[%c7, %c0_24, %c0_25] : memref<9x4x128xbf16, #tpu.memory_space<vmem>>, vector<1x4x128xbf16>
    %51 = vector.shape_cast %50 : vector<1x4x128xbf16> to vector<4x128xbf16>
    %cst_26 = arith.constant dense<0.000000e+00> : vector<256x128xf32>
    %52 = tpu.matmul %49, %51, %cst_26 {dimension_numbers = #tpu.dot_dimension_numbers<[1], [0], [0], [1], [0, 0, 1, 1], [], []>} : vector<256x4xbf16>, vector<4x128xbf16>, vector<256x128xf32> -> vector<256x128xf32>
    %53 = arith.addf %47, %52 : vector<256x128xf32>
    %54 = vector.extract_strided_slice %4 {offsets = [2, 2, 0], sizes = [16, 16, 4], strides = [1, 1, 1]} : vector<18x18x4xbf16> to vector<16x16x4xbf16>
    %55 = vector.shape_cast %54 : vector<16x16x4xbf16> to vector<256x4xbf16>
    %c8 = arith.constant 8 : index
    %c0_27 = arith.constant 0 : index
    %c0_28 = arith.constant 0 : index
    %56 = vector.load %arg3[%c8, %c0_27, %c0_28] : memref<9x4x128xbf16, #tpu.memory_space<vmem>>, vector<1x4x128xbf16>
    %57 = vector.shape_cast %56 : vector<1x4x128xbf16> to vector<4x128xbf16>
    %cst_29 = arith.constant dense<0.000000e+00> : vector<256x128xf32>
    %58 = tpu.matmul %55, %57, %cst_29 {dimension_numbers = #tpu.dot_dimension_numbers<[1], [0], [0], [1], [0, 0, 1, 1], [], []>} : vector<256x4xbf16>, vector<4x128xbf16>, vector<256x128xf32> -> vector<256x128xf32>
    %59 = arith.addf %53, %58 : vector<256x128xf32>
    %cst_30 = arith.constant dense<0.000000e+00> : vector<128xf32>
    %60 = vector.multi_reduction <add>, %59, %cst_30 [0] : vector<256x128xf32> to vector<128xf32>
    %61 = vector.shape_cast %60 : vector<128xf32> to vector<1x128xf32>
    %62 = arith.mulf %59, %59 : vector<256x128xf32>
    %cst_31 = arith.constant dense<0.000000e+00> : vector<128xf32>
    %63 = vector.multi_reduction <add>, %62, %cst_31 [0] : vector<256x128xf32> to vector<128xf32>
    %64 = vector.shape_cast %63 : vector<128xf32> to vector<1x128xf32>
    %65 = tpu.concatenate %61, %64 in 0 : vector<1x128xf32>, vector<1x128xf32> -> vector<2x128xf32>
    %66 = vector.shape_cast %65 : vector<2x128xf32> to vector<1x2x128xf32>
    %c0_32 = arith.constant 0 : index
    %c0_33 = arith.constant 0 : index
    %c0_34 = arith.constant 0 : index
    %67 = vector.load %arg4[%c0_32, %c0_33, %c0_34] : memref<1x2x128xf32, #tpu.memory_space<vmem>>, vector<1x2x128xf32>
    tpu.vector_store %arg4[%c0_32, %c0_33, %c0_34], %66 {strides = array<i32>} : memref<1x2x128xf32, #tpu.memory_space<vmem>>, vector<1x2x128xf32>,
    return
  }
  func.func @transform_0(%arg0: i32, %arg1: i32) -> (i32, i32, i32, i32) {
    %c0_i32 = arith.constant 0 : i32
    %c0_i32_0 = arith.constant 0 : i32
    %c0_i32_1 = arith.constant 0 : i32
    %c0_i32_2 = arith.constant 0 : i32
    return %arg0, %c0_i32, %c0_i32_0, %c0_i32_1 : i32, i32, i32, i32
  }
  func.func @transform_1(%arg0: i32, %arg1: i32) -> (i32, i32, i32) {
    %c0_i32 = arith.constant 0 : i32
    %c0_i32_0 = arith.constant 0 : i32
    %c0_i32_1 = arith.constant 0 : i32
    %c0_i32_2 = arith.constant 0 : i32
    return %c0_i32, %c0_i32_0, %c0_i32_1 : i32, i32, i32
  }
  func.func @transform_2(%arg0: i32, %arg1: i32) -> (i32, i32, i32) {
    %c1_i32 = arith.constant 1 : i32
    %0 = arith.muli %arg0, %c1_i32 : i32
    %1 = arith.addi %0, %arg1 : i32
    %c0_i32 = arith.constant 0 : i32
    %c0_i32_0 = arith.constant 0 : i32
    %c0_i32_1 = arith.constant 0 : i32
    return %1, %c0_i32, %c0_i32_0 : i32, i32, i32
  }
}

module attributes {stable_mosaic.version = 11 : i64} {
  func.func @_apply_kernel(%arg0: i32, %arg1: i32, %arg2: memref<1x18x18x4xbf16, #tpu.memory_space<vmem>>, %arg3: memref<9x4x128xbf16, #tpu.memory_space<vmem>>, %arg4: memref<1x128xf32, #tpu.memory_space<vmem>>, %arg5: memref<1x128xf32, #tpu.memory_space<vmem>>, %arg6: memref<256x128xf32, #tpu.memory_space<vmem>>) attributes {dimension_semantics = [#tpu.dimension_semantics<parallel>, #tpu.dimension_semantics<parallel>], iteration_bounds = array<i64: 2, 1>, scalar_prefetch = 0 : i64, scratch_operands = 0 : i64, tpu.core_type = #tpu.core_type<tc>, window_params = [{transform_indices = @transform_0, window_bounds = array<i64: 1, 18, 18, 4>}, {pipeline_mode = #tpu.pipeline_mode<synchronous>, transform_indices = @transform_1, window_bounds = array<i64: 9, 4, 128>}, {pipeline_mode = #tpu.pipeline_mode<synchronous>, transform_indices = @transform_2, window_bounds = array<i64: 1, 128>}, {pipeline_mode = #tpu.pipeline_mode<synchronous>, transform_indices = @transform_3, window_bounds = array<i64: 1, 128>}, {transform_indices = @transform_4, window_bounds = array<i64: 256, 128>}]} {
    %c16_i32 = arith.constant 16 : i32
    %0 = arith.muli %arg1, %c16_i32 : i32
    %1 = tpu.assume_multiple %0, 16 : i32
    %c0 = arith.constant 0 : index
    %2 = arith.index_cast %1 : i32 to index
    %c0_0 = arith.constant 0 : index
    %c0_1 = arith.constant 0 : index
    %3 = vector.load %arg2[%c0, %2, %c0_0, %c0_1] : memref<1x18x18x4xbf16, #tpu.memory_space<vmem>>, vector<1x18x18x4xbf16>
    %4 = vector.shape_cast %3 : vector<1x18x18x4xbf16> to vector<18x18x4xbf16>
    %cst = arith.constant 0.000000e+00 : f32
    %5 = vector.broadcast %cst : f32 to vector<256x128xf32>
    %6 = vector.extract_strided_slice %4 {offsets = [0, 0, 0], sizes = [16, 16, 4], strides = [1, 1, 1]} : vector<18x18x4xbf16> to vector<16x16x4xbf16>
    %7 = vector.shape_cast %6 : vector<16x16x4xbf16> to vector<256x4xbf16>
    %c0_2 = arith.constant 0 : index
    %c0_3 = arith.constant 0 : index
    %c0_4 = arith.constant 0 : index
    %8 = vector.load %arg3[%c0_2, %c0_3, %c0_4] : memref<9x4x128xbf16, #tpu.memory_space<vmem>>, vector<1x4x128xbf16>
    %9 = vector.shape_cast %8 : vector<1x4x128xbf16> to vector<4x128xbf16>
    %cst_5 = arith.constant dense<0.000000e+00> : vector<256x128xf32>
    %10 = tpu.matmul %7, %9, %cst_5 {dimension_numbers = #tpu.dot_dimension_numbers<[1], [0], [0], [1], [0, 0, 1, 1], [], []>} : vector<256x4xbf16>, vector<4x128xbf16>, vector<256x128xf32> -> vector<256x128xf32>
    %11 = arith.addf %5, %10 : vector<256x128xf32>
    %12 = vector.extract_strided_slice %4 {offsets = [0, 1, 0], sizes = [16, 16, 4], strides = [1, 1, 1]} : vector<18x18x4xbf16> to vector<16x16x4xbf16>
    %13 = vector.shape_cast %12 : vector<16x16x4xbf16> to vector<256x4xbf16>
    %c1 = arith.constant 1 : index
    %c0_6 = arith.constant 0 : index
    %c0_7 = arith.constant 0 : index
    %14 = vector.load %arg3[%c1, %c0_6, %c0_7] : memref<9x4x128xbf16, #tpu.memory_space<vmem>>, vector<1x4x128xbf16>
    %15 = vector.shape_cast %14 : vector<1x4x128xbf16> to vector<4x128xbf16>
    %cst_8 = arith.constant dense<0.000000e+00> : vector<256x128xf32>
    %16 = tpu.matmul %13, %15, %cst_8 {dimension_numbers = #tpu.dot_dimension_numbers<[1], [0], [0], [1], [0, 0, 1, 1], [], []>} : vector<256x4xbf16>, vector<4x128xbf16>, vector<256x128xf32> -> vector<256x128xf32>
    %17 = arith.addf %11, %16 : vector<256x128xf32>
    %18 = vector.extract_strided_slice %4 {offsets = [0, 2, 0], sizes = [16, 16, 4], strides = [1, 1, 1]} : vector<18x18x4xbf16> to vector<16x16x4xbf16>
    %19 = vector.shape_cast %18 : vector<16x16x4xbf16> to vector<256x4xbf16>
    %c2 = arith.constant 2 : index
    %c0_9 = arith.constant 0 : index
    %c0_10 = arith.constant 0 : index
    %20 = vector.load %arg3[%c2, %c0_9, %c0_10] : memref<9x4x128xbf16, #tpu.memory_space<vmem>>, vector<1x4x128xbf16>
    %21 = vector.shape_cast %20 : vector<1x4x128xbf16> to vector<4x128xbf16>
    %cst_11 = arith.constant dense<0.000000e+00> : vector<256x128xf32>
    %22 = tpu.matmul %19, %21, %cst_11 {dimension_numbers = #tpu.dot_dimension_numbers<[1], [0], [0], [1], [0, 0, 1, 1], [], []>} : vector<256x4xbf16>, vector<4x128xbf16>, vector<256x128xf32> -> vector<256x128xf32>
    %23 = arith.addf %17, %22 : vector<256x128xf32>
    %24 = vector.extract_strided_slice %4 {offsets = [1, 0, 0], sizes = [16, 16, 4], strides = [1, 1, 1]} : vector<18x18x4xbf16> to vector<16x16x4xbf16>
    %25 = vector.shape_cast %24 : vector<16x16x4xbf16> to vector<256x4xbf16>
    %c3 = arith.constant 3 : index
    %c0_12 = arith.constant 0 : index
    %c0_13 = arith.constant 0 : index
    %26 = vector.load %arg3[%c3, %c0_12, %c0_13] : memref<9x4x128xbf16, #tpu.memory_space<vmem>>, vector<1x4x128xbf16>
    %27 = vector.shape_cast %26 : vector<1x4x128xbf16> to vector<4x128xbf16>
    %cst_14 = arith.constant dense<0.000000e+00> : vector<256x128xf32>
    %28 = tpu.matmul %25, %27, %cst_14 {dimension_numbers = #tpu.dot_dimension_numbers<[1], [0], [0], [1], [0, 0, 1, 1], [], []>} : vector<256x4xbf16>, vector<4x128xbf16>, vector<256x128xf32> -> vector<256x128xf32>
    %29 = arith.addf %23, %28 : vector<256x128xf32>
    %30 = vector.extract_strided_slice %4 {offsets = [1, 1, 0], sizes = [16, 16, 4], strides = [1, 1, 1]} : vector<18x18x4xbf16> to vector<16x16x4xbf16>
    %31 = vector.shape_cast %30 : vector<16x16x4xbf16> to vector<256x4xbf16>
    %c4 = arith.constant 4 : index
    %c0_15 = arith.constant 0 : index
    %c0_16 = arith.constant 0 : index
    %32 = vector.load %arg3[%c4, %c0_15, %c0_16] : memref<9x4x128xbf16, #tpu.memory_space<vmem>>, vector<1x4x128xbf16>
    %33 = vector.shape_cast %32 : vector<1x4x128xbf16> to vector<4x128xbf16>
    %cst_17 = arith.constant dense<0.000000e+00> : vector<256x128xf32>
    %34 = tpu.matmul %31, %33, %cst_17 {dimension_numbers = #tpu.dot_dimension_numbers<[1], [0], [0], [1], [0, 0, 1, 1], [], []>} : vector<256x4xbf16>, vector<4x128xbf16>, vector<256x128xf32> -> vector<256x128xf32>
    %35 = arith.addf %29, %34 : vector<256x128xf32>
    %36 = vector.extract_strided_slice %4 {offsets = [1, 2, 0], sizes = [16, 16, 4], strides = [1, 1, 1]} : vector<18x18x4xbf16> to vector<16x16x4xbf16>
    %37 = vector.shape_cast %36 : vector<16x16x4xbf16> to vector<256x4xbf16>
    %c5 = arith.constant 5 : index
    %c0_18 = arith.constant 0 : index
    %c0_19 = arith.constant 0 : index
    %38 = vector.load %arg3[%c5, %c0_18, %c0_19] : memref<9x4x128xbf16, #tpu.memory_space<vmem>>, vector<1x4x128xbf16>
    %39 = vector.shape_cast %38 : vector<1x4x128xbf16> to vector<4x128xbf16>
    %cst_20 = arith.constant dense<0.000000e+00> : vector<256x128xf32>
    %40 = tpu.matmul %37, %39, %cst_20 {dimension_numbers = #tpu.dot_dimension_numbers<[1], [0], [0], [1], [0, 0, 1, 1], [], []>} : vector<256x4xbf16>, vector<4x128xbf16>, vector<256x128xf32> -> vector<256x128xf32>
    %41 = arith.addf %35, %40 : vector<256x128xf32>
    %42 = vector.extract_strided_slice %4 {offsets = [2, 0, 0], sizes = [16, 16, 4], strides = [1, 1, 1]} : vector<18x18x4xbf16> to vector<16x16x4xbf16>
    %43 = vector.shape_cast %42 : vector<16x16x4xbf16> to vector<256x4xbf16>
    %c6 = arith.constant 6 : index
    %c0_21 = arith.constant 0 : index
    %c0_22 = arith.constant 0 : index
    %44 = vector.load %arg3[%c6, %c0_21, %c0_22] : memref<9x4x128xbf16, #tpu.memory_space<vmem>>, vector<1x4x128xbf16>
    %45 = vector.shape_cast %44 : vector<1x4x128xbf16> to vector<4x128xbf16>
    %cst_23 = arith.constant dense<0.000000e+00> : vector<256x128xf32>
    %46 = tpu.matmul %43, %45, %cst_23 {dimension_numbers = #tpu.dot_dimension_numbers<[1], [0], [0], [1], [0, 0, 1, 1], [], []>} : vector<256x4xbf16>, vector<4x128xbf16>, vector<256x128xf32> -> vector<256x128xf32>
    %47 = arith.addf %41, %46 : vector<256x128xf32>
    %48 = vector.extract_strided_slice %4 {offsets = [2, 1, 0], sizes = [16, 16, 4], strides = [1, 1, 1]} : vector<18x18x4xbf16> to vector<16x16x4xbf16>
    %49 = vector.shape_cast %48 : vector<16x16x4xbf16> to vector<256x4xbf16>
    %c7 = arith.constant 7 : index
    %c0_24 = arith.constant 0 : index
    %c0_25 = arith.constant 0 : index
    %50 = vector.load %arg3[%c7, %c0_24, %c0_25] : memref<9x4x128xbf16, #tpu.memory_space<vmem>>, vector<1x4x128xbf16>
    %51 = vector.shape_cast %50 : vector<1x4x128xbf16> to vector<4x128xbf16>
    %cst_26 = arith.constant dense<0.000000e+00> : vector<256x128xf32>
    %52 = tpu.matmul %49, %51, %cst_26 {dimension_numbers = #tpu.dot_dimension_numbers<[1], [0], [0], [1], [0, 0, 1, 1], [], []>} : vector<256x4xbf16>, vector<4x128xbf16>, vector<256x128xf32> -> vector<256x128xf32>
    %53 = arith.addf %47, %52 : vector<256x128xf32>
    %54 = vector.extract_strided_slice %4 {offsets = [2, 2, 0], sizes = [16, 16, 4], strides = [1, 1, 1]} : vector<18x18x4xbf16> to vector<16x16x4xbf16>
    %55 = vector.shape_cast %54 : vector<16x16x4xbf16> to vector<256x4xbf16>
    %c8 = arith.constant 8 : index
    %c0_27 = arith.constant 0 : index
    %c0_28 = arith.constant 0 : index
    %56 = vector.load %arg3[%c8, %c0_27, %c0_28] : memref<9x4x128xbf16, #tpu.memory_space<vmem>>, vector<1x4x128xbf16>
    %57 = vector.shape_cast %56 : vector<1x4x128xbf16> to vector<4x128xbf16>
    %cst_29 = arith.constant dense<0.000000e+00> : vector<256x128xf32>
    %58 = tpu.matmul %55, %57, %cst_29 {dimension_numbers = #tpu.dot_dimension_numbers<[1], [0], [0], [1], [0, 0, 1, 1], [], []>} : vector<256x4xbf16>, vector<4x128xbf16>, vector<256x128xf32> -> vector<256x128xf32>
    %59 = arith.addf %53, %58 : vector<256x128xf32>
    %c0_30 = arith.constant 0 : index
    %c0_31 = arith.constant 0 : index
    %60 = vector.load %arg4[%c0_30, %c0_31] : memref<1x128xf32, #tpu.memory_space<vmem>>, vector<1x128xf32>
    %61 = vector.broadcast %60 : vector<1x128xf32> to vector<256x128xf32>
    %62 = arith.mulf %59, %61 : vector<256x128xf32>
    %c0_32 = arith.constant 0 : index
    %c0_33 = arith.constant 0 : index
    %63 = vector.load %arg5[%c0_32, %c0_33] : memref<1x128xf32, #tpu.memory_space<vmem>>, vector<1x128xf32>
    %64 = vector.broadcast %63 : vector<1x128xf32> to vector<256x128xf32>
    %65 = arith.addf %62, %64 : vector<256x128xf32>
    %cst_34 = arith.constant 0.000000e+00 : f32
    %66 = vector.broadcast %cst_34 : f32 to vector<256x128xf32>
    %67 = arith.cmpf ogt, %65, %66 : vector<256x128xf32>
    %cst_35 = arith.constant 2.000000e-01 : f32
    %68 = vector.broadcast %cst_35 : f32 to vector<256x128xf32>
    %69 = arith.mulf %68, %65 : vector<256x128xf32>
    %70 = arith.select %67, %65, %69 : vector<256x128xi1>, vector<256x128xf32>
    %c0_36 = arith.constant 0 : index
    %c0_37 = arith.constant 0 : index
    %71 = vector.load %arg6[%c0_36, %c0_37] : memref<256x128xf32, #tpu.memory_space<vmem>>, vector<256x128xf32>
    tpu.vector_store %arg6[%c0_36, %c0_37], %70 {strides = array<i32>} : memref<256x128xf32, #tpu.memory_space<vmem>>, vector<256x128xf32>,
    return
  }
  func.func @transform_0(%arg0: i32, %arg1: i32) -> (i32, i32, i32, i32) {
    %c0_i32 = arith.constant 0 : i32
    %c0_i32_0 = arith.constant 0 : i32
    %c0_i32_1 = arith.constant 0 : i32
    %c0_i32_2 = arith.constant 0 : i32
    return %arg0, %c0_i32, %c0_i32_0, %c0_i32_1 : i32, i32, i32, i32
  }
  func.func @transform_1(%arg0: i32, %arg1: i32) -> (i32, i32, i32) {
    %c0_i32 = arith.constant 0 : i32
    %c0_i32_0 = arith.constant 0 : i32
    %c0_i32_1 = arith.constant 0 : i32
    %c0_i32_2 = arith.constant 0 : i32
    return %c0_i32, %c0_i32_0, %c0_i32_1 : i32, i32, i32
  }
  func.func @transform_2(%arg0: i32, %arg1: i32) -> (i32, i32) {
    %c0_i32 = arith.constant 0 : i32
    %c0_i32_0 = arith.constant 0 : i32
    %c0_i32_1 = arith.constant 0 : i32
    return %c0_i32, %c0_i32_0 : i32, i32
  }
  func.func @transform_3(%arg0: i32, %arg1: i32) -> (i32, i32) {
    %c0_i32 = arith.constant 0 : i32
    %c0_i32_0 = arith.constant 0 : i32
    %c0_i32_1 = arith.constant 0 : i32
    return %c0_i32, %c0_i32_0 : i32, i32
  }
  func.func @transform_4(%arg0: i32, %arg1: i32) -> (i32, i32) {
    %c1_i32 = arith.constant 1 : i32
    %0 = arith.muli %arg0, %c1_i32 : i32
    %1 = arith.addi %0, %arg1 : i32
    %c0_i32 = arith.constant 0 : i32
    %c0_i32_0 = arith.constant 0 : i32
    return %1, %c0_i32 : i32, i32
  }
}

</mosaic_0001>

<llo_original>
// kernel: conv2d_block_forward.3
$region0: #{conv2d_block_forward.3}
  #allocation0 [shape = 'u32[]', space=smem, size = 0x4, offset = 0x4, fixed_abs, tag = 'smem constant byte address 0x4 - core index']
  #allocation1 [shape = 'u32[144,128]{1,0:T(1,128)}', space=vmem, size = 0x12000, scoped, tag = 'internal scratch']
  %s0 = inlined_call_operand.vmem [shape: bf16[2,18,18,4], index: 0, kind: input, shape index: {}]
  %s1 = inlined_call_operand.vmem [shape: bf16[9,4,128], index: 1, kind: input, shape index: {}]
  %s2 = inlined_call_operand.vmem [shape: f32[1,128], index: 2, kind: input, shape index: {}]
  %s3 = inlined_call_operand.vmem [shape: f32[1,128], index: 3, kind: input, shape index: {}]
  %s4 = inlined_call_operand.vmem [shape: f32[512,128], index: 4, kind: output, shape index: {}]
  %s5 = sld [smem:[#allocation0]]
  $region49: #{conv2d_block_forward.3} parent=0
    _
  %s7 = ssub.s32 1, %s5
  %s8 = scalar_select 0, %s7, %s5
  loop: start=0, step=1, limit=4
  $region2: #{conv2d_block_forward.3} parent=0 // loop_pre_header
    _
  $region3: #{conv2d_block_forward.3} parent=0 // loop_header
    %s10 = sphi 0, %s14
    %p11 = scmp.ge.s32.totalorder %s10, 4
    %s17 = sphi 0, %s29
    %s18 = sphi 0, %s25
    %s19 = sphi 0, %s17
    %s20 = sphi 0, %s18
    %s21 = sphi 0, %s19
    %s22 = sphi 0, %s20
    %s32 = sphi 0, %s34
    %s35 = sphi 0, %s32
    %s36 = sphi 0, %s35
    %s52 = sphi 0, %s36
    %s56 = sphi 0, %s56
    %s58 = sphi 0, %s56
    %s59 = sphi 0, %s58
    %s73 = sphi 0, %s59
    %s77 = sphi 0, %s77
    %s79 = sphi 0, %s77
    %s80 = sphi 0, %s79
    %s94 = sphi 0, %s80
    %s98 = sphi 0, %s98
    %s100 = sphi 0, %s98
    %s101 = sphi 0, %s100
    %s115 = sphi 0, %s101
    %s123 = sphi 0, %s125
    %s126 = sphi 0, %s123
    %s127 = sphi 0, %s126
    %s143 = sphi 0, %s127
  $region4: #{conv2d_block_forward.3} parent=0 // loop_header_branch
    %13 = sbr.rel (%p11) target = $region8
  $region5: #{conv2d_block_forward.3} parent=0 // loop_body
    %s15 = ssub.s32 %s10, 1
    %s16 = ssub.s32 %s10, 2
    %s23 = sadd.s32 1, %s18
    %p24 = scmp.ge.s32.totalorder %s23, 1
    %s25 = scalar_select %p24, 0, %s23
    %s26 = sadd.s32 1, %s17
    %s27 = scalar_select %p24, %s26, %s17
    %p28 = scmp.ge.s32.totalorder %s27, 2
    %s29 = scalar_select %p28, 0, %s27
    %s30 = ssub.s32 %s17, %s29
    %p31 = scmp.eq.s32.totalorder %s30, 0
    %s33 = sadd.s32 %s32, 1
    %s34 = scalar_select %p31, %s32, %s33
    %p37 = pneg %p31
    %p38 = scmp.eq.s32.totalorder %s10, 1
    %p39 = por %p37, %p38
    %p40 = scmp.ne.s32.totalorder %s32, %s35
    %p41 = scmp.eq.s32.totalorder %s10, 0
    %p42 = por %p40, %p41
    %p43 = scmp.ne.s32.totalorder %s32, %s35
    %p44 = scmp.eq.s32.totalorder %s15, 1
    %p45 = por %p43, %p44
    %p46 = scmp.ne.s32.totalorder %s35, %s36
    %p47 = scmp.eq.s32.totalorder %s15, 0
    %p48 = por %p46, %p47
    %p49 = scmp.ne.s32.totalorder %s35, %s36
    %p50 = scmp.eq.s32.totalorder %s16, 1
    %p51 = por %p49, %p50
    %p53 = scmp.ne.s32.totalorder %s36, %s52
    %p54 = scmp.eq.s32.totalorder %s16, 0
    %p55 = por %p53, %p54
    %s57 = sadd.s32 %s56, 1
    %p60 = scmp.eq.s32.totalorder %s10, 1
    %p61 = scmp.ne.s32.totalorder %s56, %s58
    %p62 = scmp.eq.s32.totalorder %s10, 0
    %p63 = por %p61, %p62
    %p64 = scmp.ne.s32.totalorder %s56, %s58
    %p65 = scmp.eq.s32.totalorder %s15, 1
    %p66 = por %p64, %p65
    %p67 = scmp.ne.s32.totalorder %s58, %s59
    %p68 = scmp.eq.s32.totalorder %s15, 0
    %p69 = por %p67, %p68
    %p70 = scmp.ne.s32.totalorder %s58, %s59
    %p71 = scmp.eq.s32.totalorder %s16, 1
    %p72 = por %p70, %p71
    %p74 = scmp.ne.s32.totalorder %s59, %s73
    %p75 = scmp.eq.s32.totalorder %s16, 0
    %p76 = por %p74, %p75
    %s78 = sadd.s32 %s77, 1
    %p81 = scmp.eq.s32.totalorder %s10, 1
    %p82 = scmp.ne.s32.totalorder %s77, %s79
    %p83 = scmp.eq.s32.totalorder %s10, 0
    %p84 = por %p82, %p83
    %p85 = scmp.ne.s32.totalorder %s77, %s79
    %p86 = scmp.eq.s32.totalorder %s15, 1
    %p87 = por %p85, %p86
    %p88 = scmp.ne.s32.totalorder %s79, %s80
    %p89 = scmp.eq.s32.totalorder %s15, 0
    %p90 = por %p88, %p89
    %p91 = scmp.ne.s32.totalorder %s79, %s80
    %p92 = scmp.eq.s32.totalorder %s16, 1
    %p93 = por %p91, %p92
    %p95 = scmp.ne.s32.totalorder %s80, %s94
    %p96 = scmp.eq.s32.totalorder %s16, 0
    %p97 = por %p95, %p96
    %s99 = sadd.s32 %s98, 1
    %p102 = scmp.eq.s32.totalorder %s10, 1
    %p103 = scmp.ne.s32.totalorder %s98, %s100
    %p104 = scmp.eq.s32.totalorder %s10, 0
    %p105 = por %p103, %p104
    %p106 = scmp.ne.s32.totalorder %s98, %s100
    %p107 = scmp.eq.s32.totalorder %s15, 1
    %p108 = por %p106, %p107
    %p109 = scmp.ne.s32.totalorder %s100, %s101
    %p110 = scmp.eq.s32.totalorder %s15, 0
    %p111 = por %p109, %p110
    %p112 = scmp.ne.s32.totalorder %s100, %s101
    %p113 = scmp.eq.s32.totalorder %s16, 1
    %p114 = por %p112, %p113
    %p116 = scmp.ne.s32.totalorder %s101, %s115
    %p117 = scmp.eq.s32.totalorder %s16, 0
    %p118 = por %p116, %p117
    %s119 = sadd.s32 %s17, %s18
    %s120 = sadd.s32 %s29, %s25
    %s121 = ssub.s32 %s119, %s120
    %p122 = scmp.eq.s32.totalorder %s121, 0
    %s124 = sadd.s32 %s123, 1
    %s125 = scalar_select %p122, %s123, %s124
    %p128 = pneg %p122
    %p129 = scmp.eq.s32.totalorder %s10, 1
    %p130 = por %p128, %p129
    %p131 = scmp.ne.s32.totalorder %s123, %s126
    %p132 = scmp.eq.s32.totalorder %s10, 0
    %p133 = por %p131, %p132
    %p134 = scmp.ne.s32.totalorder %s123, %s126
    %p135 = scmp.eq.s32.totalorder %s15, 1
    %p136 = por %p134, %p135
    %p137 = scmp.ne.s32.totalorder %s126, %s127
    %p138 = scmp.eq.s32.totalorder %s15, 0
    %p139 = por %p137, %p138
    %p140 = scmp.ne.s32.totalorder %s126, %s127
    %p141 = scmp.eq.s32.totalorder %s16, 1
    %p142 = por %p140, %p141
    %p144 = scmp.ne.s32.totalorder %s127, %s143
    %p145 = scmp.eq.s32.totalorder %s16, 0
    %p146 = por %p144, %p145
    %p147 = scmp.le.s32.totalorder 1, %s10
    %p148 = scmp.lt.s32.totalorder %s10, 3
    %p149 = pnand %p147, %p148
    %p150 = pneg %p149
    // Predicated region
    $region9: #{conv2d_block_forward.3} parent=5 // pred_check
      _
    $region10: #{conv2d_block_forward.3} parent=5 // pred_check_branch
      %152 = sbr.rel (%p149) target = $region12
    $region11: #{conv2d_block_forward.3} parent=5 // pred_region
      %s153 = ssub.s32 %s10, 1
      // Predicated region
      $region13: #{conv2d_block_forward.3} parent=11 // pred_check
        %p154 = pneg %p69
      $region14: #{conv2d_block_forward.3} parent=11 // pred_check_branch
        %156 = sbr.rel (%p154) target = $region16
      $region15: #{conv2d_block_forward.3} parent=11 // pred_region
        _
      $region16: #{conv2d_block_forward.3} parent=11 // pred_fallthru
        _
      // Predicated region
      $region17: #{conv2d_block_forward.3} parent=11 // pred_check
        %p157 = pneg %p90
      $region18: #{conv2d_block_forward.3} parent=11 // pred_check_branch
        %159 = sbr.rel (%p157) target = $region20
      $region19: #{conv2d_block_forward.3} parent=11 // pred_region
        _
      $region20: #{conv2d_block_forward.3} parent=11 // pred_fallthru
        _
      // Predicated region
      $region21: #{conv2d_block_forward.3} parent=11 // pred_check
        %p160 = pneg %p111
      $region22: #{conv2d_block_forward.3} parent=11 // pred_check_branch
        %162 = sbr.rel (%p160) target = $region24
      $region23: #{conv2d_block_forward.3} parent=11 // pred_region
        _
      $region24: #{conv2d_block_forward.3} parent=11 // pred_fallthru
        _
    $region12: #{conv2d_block_forward.3} parent=5 // pred_fallthru
      _
    %p163 = scmp.lt.s32.totalorder %s10, 2
    // Predicated region
    $region25: #{conv2d_block_forward.3} parent=5 // pred_check
      %p164 = pneg %p163
    $region26: #{conv2d_block_forward.3} parent=5 // pred_check_branch
      %166 = sbr.rel (%p164) target = $region28
    $region27: #{conv2d_block_forward.3} parent=5 // pred_region
      // Predicated region
      $region29: #{conv2d_block_forward.3} parent=27 // pred_check
        %p167 = pneg %p42
      $region30: #{conv2d_block_forward.3} parent=27 // pred_check_branch
        %169 = sbr.rel (%p167) target = $region32
      $region31: #{conv2d_block_forward.3} parent=27 // pred_region
        %p170 = scmp.lt.s32.totalorder %s17, 1
        %s171 = scalar_select %p170, %s17, 1
        %s172 = smul.addr %s171, 54
        %s173 = smul.addr %s172, 4
        %s174 = scalar_lea.vmem %s0, %s173
      $region32: #{conv2d_block_forward.3} parent=27 // pred_fallthru
        _
    $region28: #{conv2d_block_forward.3} parent=5 // pred_fallthru
      _
    %p175 = scmp.le.s32.totalorder 1, %s10
    %p176 = scmp.lt.s32.totalorder %s10, 3
    %p177 = pnand %p175, %p176
    %p178 = pneg %p177
    // Predicated region
    $region33: #{conv2d_block_forward.3} parent=5 // pred_check
      _
    $region34: #{conv2d_block_forward.3} parent=5 // pred_check_branch
      %180 = sbr.rel (%p177) target = $region36
    $region35: #{conv2d_block_forward.3} parent=5 // pred_region
      %s181 = ssub.s32 %s10, 1
      %p182 = scmp.lt.s32.totalorder %s19, 1
      %s183 = scalar_select %p182, %s19, 1
      %s184 = smul.addr %s183, 54
      %s185 = smul.addr %s184, 4
      %s186 = scalar_lea.vmem %s0, %s185
      %p187 = pneg %p48
      %p188 = pneg %p45
      %p189 = pneg %p69
      %p190 = pneg %p66
      %p191 = pneg %p90
      %p192 = pneg %p87
      %p193 = pneg %p111
      %p194 = pneg %p108
      %p195 = pneg %p139
      %p196 = pneg %p136
      %s197 = sadd.s32 %s19, %s20
      %s198 = smul.u32 32, %s197
      %p199 = scmp.lt.s32.totalorder %s198, 63
      %s200 = scalar_select %p199, %s198, 63
      %s201 = smul.addr %s200, 8
      %s202 = scalar_lea.vmem %s4, %s201
      %p203 = scmp.lt.s32.totalorder %s19, 1
      %s204 = scalar_select %p203, %s19, 1
      %s205 = smul.addr %s204, 54
      %s206 = smul.addr %s205, 4
      %s207 = scalar_lea.vmem %s0, %s206
      %s208 = sadd.s32 %s19, %s20
      %s209 = smul.u32 32, %s208
      %p210 = scmp.lt.s32.totalorder %s209, 63
      %s211 = scalar_select %p210, %s209, 63
      %s212 = smul.addr %s211, 8
      %s213 = scalar_lea.vmem %s4, %s212
      %s214 = sadd.s32 %s19, %s20
      %s215 = smul.u32 32, %s214
      %s217 = smul.u32 %s20, 16
      %s218 = smul.u32 %s217, 3
      %s219 = smul.addr %s218, 4
      %s220 = scalar_lea.vmem %s207, %s219
      %v221 = vld [vmem:[%s220] sm:$0xf]
      %v222 = vld [vmem:[%s220 + $0x4] sm:$0xf]
      %v223 = vld [vmem:[%s220 + $0x8] sm:$0x1]
      %v224 = vld [vmem:[%s220 + $0xc] sm:$0xf]
      %v225 = vld [vmem:[%s220 + $0x10] sm:$0xf]
      %v226 = vld [vmem:[%s220 + $0x14] sm:$0x1]
      %v227 = vld [vmem:[%s220 + $0x18] sm:$0xf]
      %v228 = vld [vmem:[%s220 + $0x1c] sm:$0xf]
      %v229 = vld [vmem:[%s220 + $0x20] sm:$0x1]
      %v230 = vld [vmem:[%s220 + $0x24] sm:$0xf]
      %v231 = vld [vmem:[%s220 + $0x28] sm:$0xf]
      %v232 = vld [vmem:[%s220 + $0x2c] sm:$0x1]
      %v233 = vld [vmem:[%s220 + $0x30] sm:$0xf]
      %v234 = vld [vmem:[%s220 + $0x34] sm:$0xf]
      %v235 = vld [vmem:[%s220 + $0x38] sm:$0x1]
      %v236 = vld [vmem:[%s220 + $0x3c] sm:$0xf]
      %v237 = vld [vmem:[%s220 + $0x40] sm:$0xf]
      %v238 = vld [vmem:[%s220 + $0x44] sm:$0x1]
      %v239 = vld [vmem:[%s220 + $0x48] sm:$0xf]
      %v240 = vld [vmem:[%s220 + $0x4c] sm:$0xf]
      %v241 = vld [vmem:[%s220 + $0x50] sm:$0x1]
      %v242 = vld [vmem:[%s220 + $0x54] sm:$0xf]
      %v243 = vld [vmem:[%s220 + $0x58] sm:$0xf]
      %v244 = vld [vmem:[%s220 + $0x5c] sm:$0x1]
      %v245 = vld [vmem:[%s220 + $0x60] sm:$0xf]
      %v246 = vld [vmem:[%s220 + $0x64] sm:$0xf]
      %v247 = vld [vmem:[%s220 + $0x68] sm:$0x1]
      %v248 = vld [vmem:[%s220 + $0x6c] sm:$0xf]
      %v249 = vld [vmem:[%s220 + $0x70] sm:$0xf]
      %v250 = vld [vmem:[%s220 + $0x74] sm:$0x1]
      %v251 = vld [vmem:[%s220 + $0x78] sm:$0xf]
      %v252 = vld [vmem:[%s220 + $0x7c] sm:$0xf]
      %v253 = vld [vmem:[%s220 + $0x80] sm:$0x1]
      %v254 = vld [vmem:[%s220 + $0x84] sm:$0xf]
      %v255 = vld [vmem:[%s220 + $0x88] sm:$0xf]
      %v256 = vld [vmem:[%s220 + $0x8c] sm:$0x1]
      %v257 = vld [vmem:[%s220 + $0x90] sm:$0xf]
      %v258 = vld [vmem:[%s220 + $0x94] sm:$0xf]
      %v259 = vld [vmem:[%s220 + $0x98] sm:$0x1]
      %v260 = vld [vmem:[%s220 + $0x9c] sm:$0xf]
      %v261 = vld [vmem:[%s220 + $0xa0] sm:$0xf]
      %v262 = vld [vmem:[%s220 + $0xa4] sm:$0x1]
      %v263 = vld [vmem:[%s220 + $0xa8] sm:$0xf]
      %v264 = vld [vmem:[%s220 + $0xac] sm:$0xf]
      %v265 = vld [vmem:[%s220 + $0xb0] sm:$0x1]
      %v266 = vld [vmem:[%s220 + $0xb4] sm:$0xf]
      %v267 = vld [vmem:[%s220 + $0xb8] sm:$0xf]
      %v268 = vld [vmem:[%s220 + $0xbc] sm:$0x1]
      %v269 = vld [vmem:[%s220 + $0xc0] sm:$0xf]
      %v270 = vld [vmem:[%s220 + $0xc4] sm:$0xf]
      %v271 = vld [vmem:[%s220 + $0xc8] sm:$0x1]
      %v272 = vld [vmem:[%s220 + $0xcc] sm:$0xf]
      %v273 = vld [vmem:[%s220 + $0xd0] sm:$0xf]
      %v274 = vld [vmem:[%s220 + $0xd4] sm:$0x1]
      %v275 = vld [vmem:[%s1] sm:$0x3]
      %vm276 = vsmask.f32 3328
      %vm277 = vsmask.f32 7440
      %vm278 = vmor %vm276, %vm277
      %v280 = vshrl.u32 %v221, 16
      %v282 = vrot.slane %v280, 4
      %v283 = vshll.u32 %v221, 16
      %v285 = vrot.slane %v283, 5
      %v286 = vor.u32 %v282, %v285
      %v287 = vrot.slane %v286, 4
      %v289 = vshll.u32 %v222, 16
      %v291 = vrot.slane %v289, 5
      %v292 = vsel %vm278, %v287, %v291
      %v293 = vshrl.u32 %v222, 16
      %v295 = vrot.slane %v293, 4
      %v296 = vor.u32 %v295, %v291
      %v297 = vrot.slane %v296, 4
      %v299 = vshll.u32 %v223, 16
      %v301 = vrot.slane %v299, 5
      %v302 = vsel %vm278, %v297, %v301
      %v304 = vshrl.u32 %v224, 16
      %v306 = vrot.slane %v304, 4
      %v307 = vshll.u32 %v224, 16
      %v309 = vrot.slane %v307, 5
      %v310 = vor.u32 %v306, %v309
      %v311 = vrot.slane %v310, 4
      %v313 = vshll.u32 %v225, 16
      %v315 = vrot.slane %v313, 5
      %v316 = vsel %vm278, %v311, %v315
      %v317 = vshrl.u32 %v225, 16
      %v319 = vrot.slane %v317, 4
      %v320 = vor.u32 %v319, %v315
      %v321 = vrot.slane %v320, 4
      %v323 = vshll.u32 %v226, 16
      %v325 = vrot.slane %v323, 5
      %v326 = vsel %vm278, %v321, %v325
      %v328 = vshrl.u32 %v227, 16
      %v330 = vrot.slane %v328, 4
      %v331 = vshll.u32 %v227, 16
      %v333 = vrot.slane %v331, 5
      %v334 = vor.u32 %v330, %v333
      %v335 = vrot.slane %v334, 4
      %v337 = vshll.u32 %v228, 16
      %v339 = vrot.slane %v337, 5
      %v340 = vsel %vm278, %v335, %v339
      %v341 = vshrl.u32 %v228, 16
      %v343 = vrot.slane %v341, 4
      %v344 = vor.u32 %v343, %v339
      %v345 = vrot.slane %v344, 4
      %v347 = vshll.u32 %v229, 16
      %v349 = vrot.slane %v347, 5
      %v350 = vsel %vm278, %v345, %v349
      %v352 = vshrl.u32 %v230, 16
      %v354 = vrot.slane %v352, 4
      %v355 = vshll.u32 %v230, 16
      %v357 = vrot.slane %v355, 5
      %v358 = vor.u32 %v354, %v357
      %v359 = vrot.slane %v358, 4
      %v361 = vshll.u32 %v231, 16
      %v363 = vrot.slane %v361, 5
      %v364 = vsel %vm278, %v359, %v363
      %v365 = vshrl.u32 %v231, 16
      %v367 = vrot.slane %v365, 4
      %v368 = vor.u32 %v367, %v363
      %v369 = vrot.slane %v368, 4
      %v371 = vshll.u32 %v232, 16
      %v373 = vrot.slane %v371, 5
      %v374 = vsel %vm278, %v369, %v373
      %v376 = vshrl.u32 %v233, 16
      %v378 = vrot.slane %v376, 4
      %v379 = vshll.u32 %v233, 16
      %v381 = vrot.slane %v379, 5
      %v382 = vor.u32 %v378, %v381
      %v383 = vrot.slane %v382, 4
      %v385 = vshll.u32 %v234, 16
      %v387 = vrot.slane %v385, 5
      %v388 = vsel %vm278, %v383, %v387
      %v389 = vshrl.u32 %v234, 16
      %v391 = vrot.slane %v389, 4
      %v392 = vor.u32 %v391, %v387
      %v393 = vrot.slane %v392, 4
      %v395 = vshll.u32 %v235, 16
      %v397 = vrot.slane %v395, 5
      %v398 = vsel %vm278, %v393, %v397
      %v400 = vshrl.u32 %v236, 16
      %v402 = vrot.slane %v400, 4
      %v403 = vshll.u32 %v236, 16
      %v405 = vrot.slane %v403, 5
      %v406 = vor.u32 %v402, %v405
      %v407 = vrot.slane %v406, 4
      %v409 = vshll.u32 %v237, 16
      %v411 = vrot.slane %v409, 5
      %v412 = vsel %vm278, %v407, %v411
      %v413 = vshrl.u32 %v237, 16
      %v415 = vrot.slane %v413, 4
      %v416 = vor.u32 %v415, %v411
      %v417 = vrot.slane %v416, 4
      %v419 = vshll.u32 %v238, 16
      %v421 = vrot.slane %v419, 5
      %v422 = vsel %vm278, %v417, %v421
      %v424 = vshrl.u32 %v239, 16
      %v426 = vrot.slane %v424, 4
      %v427 = vshll.u32 %v239, 16
      %v429 = vrot.slane %v427, 5
      %v430 = vor.u32 %v426, %v429
      %v431 = vrot.slane %v430, 4
      %v433 = vshll.u32 %v240, 16
      %v435 = vrot.slane %v433, 5
      %v436 = vsel %vm278, %v431, %v435
      %v437 = vshrl.u32 %v240, 16
      %v439 = vrot.slane %v437, 4
      %v440 = vor.u32 %v439, %v435
      %v441 = vrot.slane %v440, 4
      %v443 = vshll.u32 %v241, 16
      %v445 = vrot.slane %v443, 5
      %v446 = vsel %vm278, %v441, %v445
      %v448 = vshrl.u32 %v242, 16
      %v450 = vrot.slane %v448, 4
      %v451 = vshll.u32 %v242, 16
      %v453 = vrot.slane %v451, 5
      %v454 = vor.u32 %v450, %v453
      %v455 = vrot.slane %v454, 4
      %v457 = vshll.u32 %v243, 16
      %v459 = vrot.slane %v457, 5
      %v460 = vsel %vm278, %v455, %v459
      %v461 = vshrl.u32 %v243, 16
      %v463 = vrot.slane %v461, 4
      %v464 = vor.u32 %v463, %v459
      %v465 = vrot.slane %v464, 4
      %v467 = vshll.u32 %v244, 16
      %v469 = vrot.slane %v467, 5
      %v470 = vsel %vm278, %v465, %v469
      %v472 = vshrl.u32 %v245, 16
      %v474 = vrot.slane %v472, 4
      %v475 = vshll.u32 %v245, 16
      %v477 = vrot.slane %v475, 5
      %v478 = vor.u32 %v474, %v477
      %v479 = vrot.slane %v478, 4
      %v481 = vshll.u32 %v246, 16
      %v483 = vrot.slane %v481, 5
      %v484 = vsel %vm278, %v479, %v483
      %v485 = vshrl.u32 %v246, 16
      %v487 = vrot.slane %v485, 4
      %v488 = vor.u32 %v487, %v483
      %v489 = vrot.slane %v488, 4
      %v491 = vshll.u32 %v247, 16
      %v493 = vrot.slane %v491, 5
      %v494 = vsel %vm278, %v489, %v493
      %v496 = vshrl.u32 %v248, 16
      %v498 = vrot.slane %v496, 4
      %v499 = vshll.u32 %v248, 16
      %v501 = vrot.slane %v499, 5
      %v502 = vor.u32 %v498, %v501
      %v503 = vrot.slane %v502, 4
      %v505 = vshll.u32 %v249, 16
      %v507 = vrot.slane %v505, 5
      %v508 = vsel %vm278, %v503, %v507
      %v509 = vshrl.u32 %v249, 16
      %v511 = vrot.slane %v509, 4
      %v512 = vor.u32 %v511, %v507
      %v513 = vrot.slane %v512, 4
      %v515 = vshll.u32 %v250, 16
      %v517 = vrot.slane %v515, 5
      %v518 = vsel %vm278, %v513, %v517
      %v520 = vshrl.u32 %v251, 16
      %v522 = vrot.slane %v520, 4
      %v523 = vshll.u32 %v251, 16
      %v525 = vrot.slane %v523, 5
      %v526 = vor.u32 %v522, %v525
      %v527 = vrot.slane %v526, 4
      %v529 = vshll.u32 %v252, 16
      %v531 = vrot.slane %v529, 5
      %v532 = vsel %vm278, %v527, %v531
      %v533 = vshrl.u32 %v252, 16
      %v535 = vrot.slane %v533, 4
      %v536 = vor.u32 %v535, %v531
      %v537 = vrot.slane %v536, 4
      %v539 = vshll.u32 %v253, 16
      %v541 = vrot.slane %v539, 5
      %v542 = vsel %vm278, %v537, %v541
      %v544 = vshrl.u32 %v254, 16
      %v546 = vrot.slane %v544, 4
      %v547 = vshll.u32 %v254, 16
      %v549 = vrot.slane %v547, 5
      %v550 = vor.u32 %v546, %v549
      %v551 = vrot.slane %v550, 4
      %v553 = vshll.u32 %v255, 16
      %v555 = vrot.slane %v553, 5
      %v556 = vsel %vm278, %v551, %v555
      %v557 = vshrl.u32 %v255, 16
      %v559 = vrot.slane %v557, 4
      %v560 = vor.u32 %v559, %v555
      %v561 = vrot.slane %v560, 4
      %v563 = vshll.u32 %v256, 16
      %v565 = vrot.slane %v563, 5
      %v566 = vsel %vm278, %v561, %v565
      %v568 = vshrl.u32 %v257, 16
      %v570 = vrot.slane %v568, 4
      %v571 = vshll.u32 %v257, 16
      %v573 = vrot.slane %v571, 5
      %v574 = vor.u32 %v570, %v573
      %v575 = vrot.slane %v574, 4
      %v577 = vshll.u32 %v258, 16
      %v579 = vrot.slane %v577, 5
      %v580 = vsel %vm278, %v575, %v579
      %v581 = vshrl.u32 %v258, 16
      %v583 = vrot.slane %v581, 4
      %v584 = vor.u32 %v583, %v579
      %v585 = vrot.slane %v584, 4
      %v587 = vshll.u32 %v259, 16
      %v589 = vrot.slane %v587, 5
      %v590 = vsel %vm278, %v585, %v589
      %v592 = vshrl.u32 %v260, 16
      %v594 = vrot.slane %v592, 4
      %v595 = vshll.u32 %v260, 16
      %v597 = vrot.slane %v595, 5
      %v598 = vor.u32 %v594, %v597
      %v599 = vrot.slane %v598, 4
      %v601 = vshll.u32 %v261, 16
      %v603 = vrot.slane %v601, 5
      %v604 = vsel %vm278, %v599, %v603
      %v605 = vshrl.u32 %v261, 16
      %v607 = vrot.slane %v605, 4
      %v608 = vor.u32 %v607, %v603
      %v609 = vrot.slane %v608, 4
      %v611 = vshll.u32 %v262, 16
      %v613 = vrot.slane %v611, 5
      %v614 = vsel %vm278, %v609, %v613
      %v616 = vshrl.u32 %v263, 16
      %v618 = vrot.slane %v616, 4
      %v619 = vshll.u32 %v263, 16
      %v621 = vrot.slane %v619, 5
      %v622 = vor.u32 %v618, %v621
      %v623 = vrot.slane %v622, 4
      %v625 = vshll.u32 %v264, 16
      %v627 = vrot.slane %v625, 5
      %v628 = vsel %vm278, %v623, %v627
      %v629 = vshrl.u32 %v264, 16
      %v631 = vrot.slane %v629, 4
      %v632 = vor.u32 %v631, %v627
      %v633 = vrot.slane %v632, 4
      %v635 = vshll.u32 %v265, 16
      %v637 = vrot.slane %v635, 5
      %v638 = vsel %vm278, %v633, %v637
      %v640 = vshrl.u32 %v266, 16
      %v642 = vrot.slane %v640, 4
      %v643 = vshll.u32 %v266, 16
      %v645 = vrot.slane %v643, 5
      %v646 = vor.u32 %v642, %v645
      %v647 = vrot.slane %v646, 4
      %v649 = vshll.u32 %v267, 16
      %v651 = vrot.slane %v649, 5
      %v652 = vsel %vm278, %v647, %v651
      %v653 = vshrl.u32 %v267, 16
      %v655 = vrot.slane %v653, 4
      %v656 = vor.u32 %v655, %v651
      %v657 = vrot.slane %v656, 4
      %v659 = vshll.u32 %v268, 16
      %v661 = vrot.slane %v659, 5
      %v662 = vsel %vm278, %v657, %v661
      %s663 = scalar_lea.vmem %s1, 2
      %v664 = vld [vmem:[%s663] sm:$0x3]
      %v665 = vunpack.c.l.b16 %v292
      %v666 = vunpack.c.l.b16 %v302
      %v667 = vunpack.c.l.b16 %v316
      %v668 = vunpack.c.l.b16 %v326
      %v669 = vunpack.c.l.b16 %v340
      %v670 = vunpack.c.l.b16 %v350
      %v671 = vunpack.c.l.b16 %v364
      %v672 = vunpack.c.l.b16 %v374
      %v673 = vunpack.c.l.b16 %v388
      %v674 = vunpack.c.l.b16 %v398
      %v675 = vunpack.c.l.b16 %v412
      %v676 = vunpack.c.l.b16 %v422
      %v677 = vunpack.c.l.b16 %v436
      %v678 = vunpack.c.l.b16 %v446
      %v679 = vunpack.c.l.b16 %v460
      %v680 = vunpack.c.l.b16 %v470
      %v681 = vunpack.c.l.b16 %v484
      %v682 = vunpack.c.l.b16 %v494
      %v683 = vunpack.c.l.b16 %v508
      %v684 = vunpack.c.l.b16 %v518
      %v685 = vunpack.c.l.b16 %v532
      %v686 = vunpack.c.l.b16 %v542
      %v687 = vunpack.c.l.b16 %v556
      %v688 = vunpack.c.l.b16 %v566
      %v689 = vunpack.c.l.b16 %v580
      %v690 = vunpack.c.l.b16 %v590
      %v691 = vunpack.c.l.b16 %v604
      %v692 = vunpack.c.l.b16 %v614
      %v693 = vunpack.c.l.b16 %v628
      %v694 = vunpack.c.l.b16 %v638
      %v695 = vunpack.c.l.b16 %v652
      %v696 = vunpack.c.l.b16 %v662
      %v697 = vpack.c.b16 %v666, %v665
      %v698 = vpack.c.b16 %v668, %v667
      %v699 = vpack.c.b16 %v670, %v669
      %v700 = vpack.c.b16 %v672, %v671
      %v701 = vpack.c.b16 %v674, %v673
      %v702 = vpack.c.b16 %v676, %v675
      %v703 = vpack.c.b16 %v678, %v677
      %v704 = vpack.c.b16 %v680, %v679
      %v705 = vpack.c.b16 %v682, %v681
      %v706 = vpack.c.b16 %v684, %v683
      %v707 = vpack.c.b16 %v686, %v685
      %v708 = vpack.c.b16 %v688, %v687
      %v709 = vpack.c.b16 %v690, %v689
      %v710 = vpack.c.b16 %v692, %v691
      %v711 = vpack.c.b16 %v694, %v693
      %v712 = vpack.c.b16 %v696, %v695
      %vm713 = vcmask 31744
      %v715 = vsel %vm713, %v697, 0
      %v718 = vsel %vm713, %v698, 0
      %v721 = vsel %vm713, %v699, 0
      %v724 = vsel %vm713, %v700, 0
      %v727 = vsel %vm713, %v701, 0
      %v730 = vsel %vm713, %v702, 0
      %v733 = vsel %vm713, %v703, 0
      %v736 = vsel %vm713, %v704, 0
      %v739 = vsel %vm713, %v705, 0
      %v742 = vsel %vm713, %v706, 0
      %v745 = vsel %vm713, %v707, 0
      %v748 = vsel %vm713, %v708, 0
      %v751 = vsel %vm713, %v709, 0
      %v754 = vsel %vm713, %v710, 0
      %v757 = vsel %vm713, %v711, 0
      %v760 = vsel %vm713, %v712, 0
      %vm762 = vcmask 1041408
      %v764 = vsel %vm762, %v664, 0
      %766 = vmatprep.subr.bf16.mxu0 0
      %767 = vmatpush1.bf16.msra.mxu0 0
      %768 = vmatprep.subr.bf16.mxu0 0
      %769 = vmatpush1.bf16.msra.mxu0 0
      %770 = vmatprep.subr.bf16.mxu0 0
      %771 = vmatpush1.bf16.msra.mxu0 0
      %772 = vmatprep.subr.bf16.mxu0 0
      %773 = vmatpush1.bf16.msra.mxu0 0
      %774 = vmatprep.subr.bf16.mxu0 0
      %775 = vmatpush1.bf16.msra.mxu0 0
      %776 = vmatprep.subr.bf16.mxu0 0
      %777 = vmatpush1.bf16.msra.mxu0 0
      %778 = vmatprep.subr.bf16.mxu0 0
      %779 = vmatpush1.bf16.msra.mxu0 0
      %780 = vmatprep.subr.bf16.mxu0 0
      %781 = vmatpush1.bf16.msra.mxu0 %v764
      %782 = vmatprep.subr.bf16.mxu0 0
      %783 = vmatpush2.bf16.msra.mxu0 0
      %784 = vmatprep.subr.bf16.mxu0 0
      %785 = vmatpush2.bf16.msra.mxu0 0
      %786 = vmatprep.subr.bf16.mxu0 0
      %787 = vmatpush2.bf16.msra.mxu0 0
      %788 = vmatprep.subr.bf16.mxu0 0
      %789 = vmatpush2.bf16.msra.mxu0 0
      %790 = vmatprep.subr.bf16.mxu0 0
      %791 = vmatpush2.bf16.msra.mxu0 0
      %792 = vmatprep.subr.bf16.mxu0 0
      %793 = vmatpush2.bf16.msra.mxu0 0
      %794 = vmatprep.subr.bf16.mxu0 0
      %795 = vmatpush2.bf16.msra.mxu0 0
      %796 = vmatprep.subr.bf16.mxu0 0
      %797 = vmatpush2.bf16.msra.mxu0 0
      %798 = vmatprep.mubr.bf16.mxu0 0
      %799 = vmatmul.mubr.bf16.gmra.mxu0 %v715
      %v800 = vpop.f32.mrf.mxu0
      %v801 = vadd.f32 0.0, %v800
      %v802 = vpop.f32.mrf.mxu0
      %v803 = vpop.f32.mrf.mxu0
      %v804 = vadd.f32 0.0, %v803
      %v805 = vpop.f32.mrf.mxu0
      %806 = vmatprep.mubr.bf16.mxu0 0
      %807 = vmatmul.mubr.bf16.gmra.mxu0 %v718
      %v808 = vpop.f32.mrf.mxu0
      %v809 = vadd.f32 0.0, %v808
      %v810 = vpop.f32.mrf.mxu0
      %v811 = vpop.f32.mrf.mxu0
      %v812 = vadd.f32 0.0, %v811
      %v813 = vpop.f32.mrf.mxu0
      %814 = vmatprep.mubr.bf16.mxu0 0
      %815 = vmatmul.mubr.bf16.gmra.mxu0 %v721
      %v816 = vpop.f32.mrf.mxu0
      %v817 = vadd.f32 0.0, %v816
      %v818 = vpop.f32.mrf.mxu0
      %v819 = vpop.f32.mrf.mxu0
      %v820 = vadd.f32 0.0, %v819
      %v821 = vpop.f32.mrf.mxu0
      %822 = vmatprep.mubr.bf16.mxu0 0
      %823 = vmatmul.mubr.bf16.gmra.mxu0 %v724
      %v824 = vpop.f32.mrf.mxu0
      %v825 = vadd.f32 0.0, %v824
      %v826 = vpop.f32.mrf.mxu0
      %v827 = vpop.f32.mrf.mxu0
      %v828 = vadd.f32 0.0, %v827
      %v829 = vpop.f32.mrf.mxu0
      %830 = vmatprep.mubr.bf16.mxu0 0
      %831 = vmatmul.mubr.bf16.gmra.mxu0 %v727
      %v832 = vpop.f32.mrf.mxu0
      %v833 = vadd.f32 0.0, %v832
      %v834 = vpop.f32.mrf.mxu0
      %v835 = vpop.f32.mrf.mxu0
      %v836 = vadd.f32 0.0, %v835
      %v837 = vpop.f32.mrf.mxu0
      %838 = vmatprep.mubr.bf16.mxu0 0
      %839 = vmatmul.mubr.bf16.gmra.mxu0 %v730
      %v840 = vpop.f32.mrf.mxu0
      %v841 = vadd.f32 0.0, %v840
      %v842 = vpop.f32.mrf.mxu0
      %v843 = vpop.f32.mrf.mxu0
      %v844 = vadd.f32 0.0, %v843
      %v845 = vpop.f32.mrf.mxu0
      %846 = vmatprep.mubr.bf16.mxu0 0
      %847 = vmatmul.mubr.bf16.gmra.mxu0 %v733
      %v848 = vpop.f32.mrf.mxu0
      %v849 = vadd.f32 0.0, %v848
      %v850 = vpop.f32.mrf.mxu0
      %v851 = vpop.f32.mrf.mxu0
      %v852 = vadd.f32 0.0, %v851
      %v853 = vpop.f32.mrf.mxu0
      %854 = vmatprep.mubr.bf16.mxu0 0
      %855 = vmatmul.mubr.bf16.gmra.mxu0 %v736
      %v856 = vpop.f32.mrf.mxu0
      %v857 = vadd.f32 0.0, %v856
      %v858 = vpop.f32.mrf.mxu0
      %v859 = vpop.f32.mrf.mxu0
      %v860 = vadd.f32 0.0, %v859
      %v861 = vpop.f32.mrf.mxu0
      %862 = vmatprep.mubr.bf16.mxu0 0
      %863 = vmatmul.mubr.bf16.gmra.mxu0 %v739
      %v864 = vpop.f32.mrf.mxu0
      %v865 = vadd.f32 0.0, %v864
      %v866 = vpop.f32.mrf.mxu0
      %v867 = vpop.f32.mrf.mxu0
      %v868 = vadd.f32 0.0, %v867
      %v869 = vpop.f32.mrf.mxu0
      %870 = vmatprep.mubr.bf16.mxu0 0
      %871 = vmatmul.mubr.bf16.gmra.mxu0 %v742
      %v872 = vpop.f32.mrf.mxu0
      %v873 = vadd.f32 0.0, %v872
      %v874 = vpop.f32.mrf.mxu0
      %v875 = vpop.f32.mrf.mxu0
      %v876 = vadd.f32 0.0, %v875
      %v877 = vpop.f32.mrf.mxu0
      %878 = vmatprep.mubr.bf16.mxu0 0
      %879 = vmatmul.mubr.bf16.gmra.mxu0 %v745
      %v880 = vpop.f32.mrf.mxu0
      %v881 = vadd.f32 0.0, %v880
      %v882 = vpop.f32.mrf.mxu0
      %v883 = vpop.f32.mrf.mxu0
      %v884 = vadd.f32 0.0, %v883
      %v885 = vpop.f32.mrf.mxu0
      %886 = vmatprep.mubr.bf16.mxu0 0
      %887 = vmatmul.mubr.bf16.gmra.mxu0 %v748
      %v888 = vpop.f32.mrf.mxu0
      %v889 = vadd.f32 0.0, %v888
      %v890 = vpop.f32.mrf.mxu0
      %v891 = vpop.f32.mrf.mxu0
      %v892 = vadd.f32 0.0, %v891
      %v893 = vpop.f32.mrf.mxu0
      %894 = vmatprep.mubr.bf16.mxu0 0
      %895 = vmatmul.mubr.bf16.gmra.mxu0 %v751
      %v896 = vpop.f32.mrf.mxu0
      %v897 = vadd.f32 0.0, %v896
      %v898 = vpop.f32.mrf.mxu0
      %v899 = vpop.f32.mrf.mxu0
      %v900 = vadd.f32 0.0, %v899
      %v901 = vpop.f32.mrf.mxu0
      %902 = vmatprep.mubr.bf16.mxu0 0
      %903 = vmatmul.mubr.bf16.gmra.mxu0 %v754
      %v904 = vpop.f32.mrf.mxu0
      %v905 = vadd.f32 0.0, %v904
      %v906 = vpop.f32.mrf.mxu0
      %v907 = vpop.f32.mrf.mxu0
      %v908 = vadd.f32 0.0, %v907
      %v909 = vpop.f32.mrf.mxu0
      %910 = vmatprep.mubr.bf16.mxu0 0
      %911 = vmatmul.mubr.bf16.gmra.mxu0 %v757
      %v912 = vpop.f32.mrf.mxu0
      %v913 = vadd.f32 0.0, %v912
      %v914 = vpop.f32.mrf.mxu0
      %v915 = vpop.f32.mrf.mxu0
      %v916 = vadd.f32 0.0, %v915
      %v917 = vpop.f32.mrf.mxu0
      %918 = vmatprep.mubr.bf16.mxu0 0
      %919 = vmatmul.mubr.bf16.gmra.mxu0 %v760
      %v920 = vpop.f32.mrf.mxu0
      %v921 = vadd.f32 0.0, %v920
      %v922 = vpop.f32.mrf.mxu0
      %v923 = vpop.f32.mrf.mxu0
      %v924 = vadd.f32 0.0, %v923
      %v925 = vpop.f32.mrf.mxu0
      %926 = vdwg.mxu0
      %v959 = vunpack.c.l.b16 %v221
      %v960 = vunpack.c.l.b16 %v222
      %v961 = vunpack.c.l.b16 %v224
      %v962 = vunpack.c.l.b16 %v225
      %v963 = vunpack.c.l.b16 %v227
      %v964 = vunpack.c.l.b16 %v228
      %v965 = vunpack.c.l.b16 %v230
      %v966 = vunpack.c.l.b16 %v231
      %v967 = vunpack.c.l.b16 %v233
      %v968 = vunpack.c.l.b16 %v234
      %v969 = vunpack.c.l.b16 %v236
      %v970 = vunpack.c.l.b16 %v237
      %v971 = vunpack.c.l.b16 %v239
      %v972 = vunpack.c.l.b16 %v240
      %v973 = vunpack.c.l.b16 %v242
      %v974 = vunpack.c.l.b16 %v243
      %v975 = vunpack.c.l.b16 %v245
      %v976 = vunpack.c.l.b16 %v246
      %v977 = vunpack.c.l.b16 %v248
      %v978 = vunpack.c.l.b16 %v249
      %v979 = vunpack.c.l.b16 %v251
      %v980 = vunpack.c.l.b16 %v252
      %v981 = vunpack.c.l.b16 %v254
      %v982 = vunpack.c.l.b16 %v255
      %v983 = vunpack.c.l.b16 %v257
      %v984 = vunpack.c.l.b16 %v258
      %v985 = vunpack.c.l.b16 %v260
      %v986 = vunpack.c.l.b16 %v261
      %v987 = vunpack.c.l.b16 %v263
      %v988 = vunpack.c.l.b16 %v264
      %v989 = vunpack.c.l.b16 %v266
      %v990 = vunpack.c.l.b16 %v267
      %v991 = vpack.c.b16 %v960, %v959
      %v992 = vpack.c.b16 %v962, %v961
      %v993 = vpack.c.b16 %v964, %v963
      %v994 = vpack.c.b16 %v966, %v965
      %v995 = vpack.c.b16 %v968, %v967
      %v996 = vpack.c.b16 %v970, %v969
      %v997 = vpack.c.b16 %v972, %v971
      %v998 = vpack.c.b16 %v974, %v973
      %v999 = vpack.c.b16 %v976, %v975
      %v1000 = vpack.c.b16 %v978, %v977
      %v1001 = vpack.c.b16 %v980, %v979
      %v1002 = vpack.c.b16 %v982, %v981
      %v1003 = vpack.c.b16 %v984, %v983
      %v1004 = vpack.c.b16 %v986, %v985
      %v1005 = vpack.c.b16 %v988, %v987
      %v1006 = vpack.c.b16 %v990, %v989
      %v1008 = vsel %vm713, %v991, 0
      %v1011 = vsel %vm713, %v992, 0
      %v1014 = vsel %vm713, %v993, 0
      %v1017 = vsel %vm713, %v994, 0
      %v1020 = vsel %vm713, %v995, 0
      %v1023 = vsel %vm713, %v996, 0
      %v1026 = vsel %vm713, %v997, 0
      %v1029 = vsel %vm713, %v998, 0
      %v1032 = vsel %vm713, %v999, 0
      %v1035 = vsel %vm713, %v1000, 0
      %v1038 = vsel %vm713, %v1001, 0
      %v1041 = vsel %vm713, %v1002, 0
      %v1044 = vsel %vm713, %v1003, 0
      %v1047 = vsel %vm713, %v1004, 0
      %v1050 = vsel %vm713, %v1005, 0
      %v1053 = vsel %vm713, %v1006, 0
      %v1056 = vsel %vm762, %v275, 0
      %1058 = vmatprep.subr.bf16.mxu0 0
      %1059 = vmatpush1.bf16.msra.mxu0 0
      %1060 = vmatprep.subr.bf16.mxu0 0
      %1061 = vmatpush1.bf16.msra.mxu0 0
      %1062 = vmatprep.subr.bf16.mxu0 0
      %1063 = vmatpush1.bf16.msra.mxu0 0
      %1064 = vmatprep.subr.bf16.mxu0 0
      %1065 = vmatpush1.bf16.msra.mxu0 0
      %1066 = vmatprep.subr.bf16.mxu0 0
      %1067 = vmatpush1.bf16.msra.mxu0 0
      %1068 = vmatprep.subr.bf16.mxu0 0
      %1069 = vmatpush1.bf16.msra.mxu0 0
      %1070 = vmatprep.subr.bf16.mxu0 0
      %1071 = vmatpush1.bf16.msra.mxu0 0
      %1072 = vmatprep.subr.bf16.mxu0 0
      %1073 = vmatpush1.bf16.msra.mxu0 %v1056
      %1074 = vmatprep.subr.bf16.mxu0 0
      %1075 = vmatpush2.bf16.msra.mxu0 0
      %1076 = vmatprep.subr.bf16.mxu0 0
      %1077 = vmatpush2.bf16.msra.mxu0 0
      %1078 = vmatprep.subr.bf16.mxu0 0
      %1079 = vmatpush2.bf16.msra.mxu0 0
      %1080 = vmatprep.subr.bf16.mxu0 0
      %1081 = vmatpush2.bf16.msra.mxu0 0
      %1082 = vmatprep.subr.bf16.mxu0 0
      %1083 = vmatpush2.bf16.msra.mxu0 0
      %1084 = vmatprep.subr.bf16.mxu0 0
      %1085 = vmatpush2.bf16.msra.mxu0 0
      %1086 = vmatprep.subr.bf16.mxu0 0
      %1087 = vmatpush2.bf16.msra.mxu0 0
      %1088 = vmatprep.subr.bf16.mxu0 0
      %1089 = vmatpush2.bf16.msra.mxu0 0
      %1090 = vmatprep.mubr.bf16.mxu0 0
      %1091 = vmatmul.mubr.bf16.gmra.mxu0 %v1008
      %v1092 = vpop.f32.mrf.mxu0
      %v1093 = vadd.f32 %v801, %v1092
      %v1094 = vpop.f32.mrf.mxu0
      %v1095 = vpop.f32.mrf.mxu0
      %v1096 = vadd.f32 %v804, %v1095
      %v1097 = vpop.f32.mrf.mxu0
      %1098 = vmatprep.mubr.bf16.mxu0 0
      %1099 = vmatmul.mubr.bf16.gmra.mxu0 %v1011
      %v1100 = vpop.f32.mrf.mxu0
      %v1101 = vadd.f32 %v809, %v1100
      %v1102 = vpop.f32.mrf.mxu0
      %v1103 = vpop.f32.mrf.mxu0
      %v1104 = vadd.f32 %v812, %v1103
      %v1105 = vpop.f32.mrf.mxu0
      %1106 = vmatprep.mubr.bf16.mxu0 0
      %1107 = vmatmul.mubr.bf16.gmra.mxu0 %v1014
      %v1108 = vpop.f32.mrf.mxu0
      %v1109 = vadd.f32 %v817, %v1108
      %v1110 = vpop.f32.mrf.mxu0
      %v1111 = vpop.f32.mrf.mxu0
      %v1112 = vadd.f32 %v820, %v1111
      %v1113 = vpop.f32.mrf.mxu0
      %1114 = vmatprep.mubr.bf16.mxu0 0
      %1115 = vmatmul.mubr.bf16.gmra.mxu0 %v1017
      %v1116 = vpop.f32.mrf.mxu0
      %v1117 = vadd.f32 %v825, %v1116
      %v1118 = vpop.f32.mrf.mxu0
      %v1119 = vpop.f32.mrf.mxu0
      %v1120 = vadd.f32 %v828, %v1119
      %v1121 = vpop.f32.mrf.mxu0
      %1122 = vmatprep.mubr.bf16.mxu0 0
      %1123 = vmatmul.mubr.bf16.gmra.mxu0 %v1020
      %v1124 = vpop.f32.mrf.mxu0
      %v1125 = vadd.f32 %v833, %v1124
      %v1126 = vpop.f32.mrf.mxu0
      %v1127 = vpop.f32.mrf.mxu0
      %v1128 = vadd.f32 %v836, %v1127
      %v1129 = vpop.f32.mrf.mxu0
      %1130 = vmatprep.mubr.bf16.mxu0 0
      %1131 = vmatmul.mubr.bf16.gmra.mxu0 %v1023
      %v1132 = vpop.f32.mrf.mxu0
      %v1133 = vadd.f32 %v841, %v1132
      %v1134 = vpop.f32.mrf.mxu0
      %v1135 = vpop.f32.mrf.mxu0
      %v1136 = vadd.f32 %v844, %v1135
      %v1137 = vpop.f32.mrf.mxu0
      %1138 = vmatprep.mubr.bf16.mxu0 0
      %1139 = vmatmul.mubr.bf16.gmra.mxu0 %v1026
      %v1140 = vpop.f32.mrf.mxu0
      %v1141 = vadd.f32 %v849, %v1140
      %v1142 = vpop.f32.mrf.mxu0
      %v1143 = vpop.f32.mrf.mxu0
      %v1144 = vadd.f32 %v852, %v1143
      %v1145 = vpop.f32.mrf.mxu0
      %1146 = vmatprep.mubr.bf16.mxu0 0
      %1147 = vmatmul.mubr.bf16.gmra.mxu0 %v1029
      %v1148 = vpop.f32.mrf.mxu0
      %v1149 = vadd.f32 %v857, %v1148
      %v1150 = vpop.f32.mrf.mxu0
      %v1151 = vpop.f32.mrf.mxu0
      %v1152 = vadd.f32 %v860, %v1151
      %v1153 = vpop.f32.mrf.mxu0
      %1154 = vmatprep.mubr.bf16.mxu0 0
      %1155 = vmatmul.mubr.bf16.gmra.mxu0 %v1032
      %v1156 = vpop.f32.mrf.mxu0
      %v1157 = vadd.f32 %v865, %v1156
      %v1158 = vpop.f32.mrf.mxu0
      %v1159 = vpop.f32.mrf.mxu0
      %v1160 = vadd.f32 %v868, %v1159
      %v1161 = vpop.f32.mrf.mxu0
      %1162 = vmatprep.mubr.bf16.mxu0 0
      %1163 = vmatmul.mubr.bf16.gmra.mxu0 %v1035
      %v1164 = vpop.f32.mrf.mxu0
      %v1165 = vadd.f32 %v873, %v1164
      %v1166 = vpop.f32.mrf.mxu0
      %v1167 = vpop.f32.mrf.mxu0
      %v1168 = vadd.f32 %v876, %v1167
      %v1169 = vpop.f32.mrf.mxu0
      %1170 = vmatprep.mubr.bf16.mxu0 0
      %1171 = vmatmul.mubr.bf16.gmra.mxu0 %v1038
      %v1172 = vpop.f32.mrf.mxu0
      %v1173 = vadd.f32 %v881, %v1172
      %v1174 = vpop.f32.mrf.mxu0
      %v1175 = vpop.f32.mrf.mxu0
      %v1176 = vadd.f32 %v884, %v1175
      %v1177 = vpop.f32.mrf.mxu0
      %1178 = vmatprep.mubr.bf16.mxu0 0
      %1179 = vmatmul.mubr.bf16.gmra.mxu0 %v1041
      %v1180 = vpop.f32.mrf.mxu0
      %v1181 = vadd.f32 %v889, %v1180
      %v1182 = vpop.f32.mrf.mxu0
      %v1183 = vpop.f32.mrf.mxu0
      %v1184 = vadd.f32 %v892, %v1183
      %v1185 = vpop.f32.mrf.mxu0
      %1186 = vmatprep.mubr.bf16.mxu0 0
      %1187 = vmatmul.mubr.bf16.gmra.mxu0 %v1044
      %v1188 = vpop.f32.mrf.mxu0
      %v1189 = vadd.f32 %v897, %v1188
      %v1190 = vpop.f32.mrf.mxu0
      %v1191 = vpop.f32.mrf.mxu0
      %v1192 = vadd.f32 %v900, %v1191
      %v1193 = vpop.f32.mrf.mxu0
      %1194 = vmatprep.mubr.bf16.mxu0 0
      %1195 = vmatmul.mubr.bf16.gmra.mxu0 %v1047
      %v1196 = vpop.f32.mrf.mxu0
      %v1197 = vadd.f32 %v905, %v1196
      %v1198 = vpop.f32.mrf.mxu0
      %v1199 = vpop.f32.mrf.mxu0
      %v1200 = vadd.f32 %v908, %v1199
      %v1201 = vpop.f32.mrf.mxu0
      %1202 = vmatprep.mubr.bf16.mxu0 0
      %1203 = vmatmul.mubr.bf16.gmra.mxu0 %v1050
      %v1204 = vpop.f32.mrf.mxu0
      %v1205 = vadd.f32 %v913, %v1204
      %v1206 = vpop.f32.mrf.mxu0
      %v1207 = vpop.f32.mrf.mxu0
      %v1208 = vadd.f32 %v916, %v1207
      %v1209 = vpop.f32.mrf.mxu0
      %1210 = vmatprep.mubr.bf16.mxu0 0
      %1211 = vmatmul.mubr.bf16.gmra.mxu0 %v1053
      %v1212 = vpop.f32.mrf.mxu0
      %v1213 = vadd.f32 %v921, %v1212
      %v1214 = vpop.f32.mrf.mxu0
      %v1215 = vpop.f32.mrf.mxu0
      %v1216 = vadd.f32 %v924, %v1215
      %v1217 = vpop.f32.mrf.mxu0
      %1218 = vdwg.mxu0
      %vm1235 = vcmask 1042432
      %vm1236 = vcmask 1046532
      %vm1237 = vmor %vm1235, %vm1236
      %v1238 = vrot.slane %v221, 5
      %v1239 = vrot.slane %v1238, 4
      %v1240 = vrot.slane %v222, 5
      %v1241 = vsel %vm1237, %v1239, %v1240
      %v1242 = vrot.slane %v1240, 4
      %v1243 = vrot.slane %v223, 5
      %v1244 = vsel %vm1237, %v1242, %v1243
      %v1245 = vrot.slane %v224, 5
      %v1246 = vrot.slane %v1245, 4
      %v1247 = vrot.slane %v225, 5
      %v1248 = vsel %vm1237, %v1246, %v1247
      %v1249 = vrot.slane %v1247, 4
      %v1250 = vrot.slane %v226, 5
      %v1251 = vsel %vm1237, %v1249, %v1250
      %v1252 = vrot.slane %v227, 5
      %v1253 = vrot.slane %v1252, 4
      %v1254 = vrot.slane %v228, 5
      %v1255 = vsel %vm1237, %v1253, %v1254
      %v1256 = vrot.slane %v1254, 4
      %v1257 = vrot.slane %v229, 5
      %v1258 = vsel %vm1237, %v1256, %v1257
      %v1259 = vrot.slane %v230, 5
      %v1260 = vrot.slane %v1259, 4
      %v1261 = vrot.slane %v231, 5
      %v1262 = vsel %vm1237, %v1260, %v1261
      %v1263 = vrot.slane %v1261, 4
      %v1264 = vrot.slane %v232, 5
      %v1265 = vsel %vm1237, %v1263, %v1264
      %v1266 = vrot.slane %v233, 5
      %v1267 = vrot.slane %v1266, 4
      %v1268 = vrot.slane %v234, 5
      %v1269 = vsel %vm1237, %v1267, %v1268
      %v1270 = vrot.slane %v1268, 4
      %v1271 = vrot.slane %v235, 5
      %v1272 = vsel %vm1237, %v1270, %v1271
      %v1273 = vrot.slane %v236, 5
      %v1274 = vrot.slane %v1273, 4
      %v1275 = vrot.slane %v237, 5
      %v1276 = vsel %vm1237, %v1274, %v1275
      %v1277 = vrot.slane %v1275, 4
      %v1278 = vrot.slane %v238, 5
      %v1279 = vsel %vm1237, %v1277, %v1278
      %v1280 = vrot.slane %v239, 5
      %v1281 = vrot.slane %v1280, 4
      %v1282 = vrot.slane %v240, 5
      %v1283 = vsel %vm1237, %v1281, %v1282
      %v1284 = vrot.slane %v1282, 4
      %v1285 = vrot.slane %v241, 5
      %v1286 = vsel %vm1237, %v1284, %v1285
      %v1287 = vrot.slane %v242, 5
      %v1288 = vrot.slane %v1287, 4
      %v1289 = vrot.slane %v243, 5
      %v1290 = vsel %vm1237, %v1288, %v1289
      %v1291 = vrot.slane %v1289, 4
      %v1292 = vrot.slane %v244, 5
      %v1293 = vsel %vm1237, %v1291, %v1292
      %v1294 = vrot.slane %v245, 5
      %v1295 = vrot.slane %v1294, 4
      %v1296 = vrot.slane %v246, 5
      %v1297 = vsel %vm1237, %v1295, %v1296
      %v1298 = vrot.slane %v1296, 4
      %v1299 = vrot.slane %v247, 5
      %v1300 = vsel %vm1237, %v1298, %v1299
      %v1301 = vrot.slane %v248, 5
      %v1302 = vrot.slane %v1301, 4
      %v1303 = vrot.slane %v249, 5
      %v1304 = vsel %vm1237, %v1302, %v1303
      %v1305 = vrot.slane %v1303, 4
      %v1306 = vrot.slane %v250, 5
      %v1307 = vsel %vm1237, %v1305, %v1306
      %v1308 = vrot.slane %v251, 5
      %v1309 = vrot.slane %v1308, 4
      %v1310 = vrot.slane %v252, 5
      %v1311 = vsel %vm1237, %v1309, %v1310
      %v1312 = vrot.slane %v1310, 4
      %v1313 = vrot.slane %v253, 5
      %v1314 = vsel %vm1237, %v1312, %v1313
      %v1315 = vrot.slane %v254, 5
      %v1316 = vrot.slane %v1315, 4
      %v1317 = vrot.slane %v255, 5
      %v1318 = vsel %vm1237, %v1316, %v1317
      %v1319 = vrot.slane %v1317, 4
      %v1320 = vrot.slane %v256, 5
      %v1321 = vsel %vm1237, %v1319, %v1320
      %v1322 = vrot.slane %v257, 5
      %v1323 = vrot.slane %v1322, 4
      %v1324 = vrot.slane %v258, 5
      %v1325 = vsel %vm1237, %v1323, %v1324
      %v1326 = vrot.slane %v1324, 4
      %v1327 = vrot.slane %v259, 5
      %v1328 = vsel %vm1237, %v1326, %v1327
      %v1329 = vrot.slane %v260, 5
      %v1330 = vrot.slane %v1329, 4
      %v1331 = vrot.slane %v261, 5
      %v1332 = vsel %vm1237, %v1330, %v1331
      %v1333 = vrot.slane %v1331, 4
      %v1334 = vrot.slane %v262, 5
      %v1335 = vsel %vm1237, %v1333, %v1334
      %v1336 = vrot.slane %v263, 5
      %v1337 = vrot.slane %v1336, 4
      %v1338 = vrot.slane %v264, 5
      %v1339 = vsel %vm1237, %v1337, %v1338
      %v1340 = vrot.slane %v1338, 4
      %v1341 = vrot.slane %v265, 5
      %v1342 = vsel %vm1237, %v1340, %v1341
      %v1343 = vrot.slane %v266, 5
      %v1344 = vrot.slane %v1343, 4
      %v1345 = vrot.slane %v267, 5
      %v1346 = vsel %vm1237, %v1344, %v1345
      %v1347 = vrot.slane %v1345, 4
      %v1348 = vrot.slane %v268, 5
      %v1349 = vsel %vm1237, %v1347, %v1348
      %s1350 = scalar_lea.vmem %s1, 4
      %v1351 = vld [vmem:[%s1350] sm:$0x3]
      %v1352 = vunpack.c.l.b16 %v1241
      %v1353 = vunpack.c.l.b16 %v1244
      %v1354 = vunpack.c.l.b16 %v1248
      %v1355 = vunpack.c.l.b16 %v1251
      %v1356 = vunpack.c.l.b16 %v1255
      %v1357 = vunpack.c.l.b16 %v1258
      %v1358 = vunpack.c.l.b16 %v1262
      %v1359 = vunpack.c.l.b16 %v1265
      %v1360 = vunpack.c.l.b16 %v1269
      %v1361 = vunpack.c.l.b16 %v1272
      %v1362 = vunpack.c.l.b16 %v1276
      %v1363 = vunpack.c.l.b16 %v1279
      %v1364 = vunpack.c.l.b16 %v1283
      %v1365 = vunpack.c.l.b16 %v1286
      %v1366 = vunpack.c.l.b16 %v1290
      %v1367 = vunpack.c.l.b16 %v1293
      %v1368 = vunpack.c.l.b16 %v1297
      %v1369 = vunpack.c.l.b16 %v1300
      %v1370 = vunpack.c.l.b16 %v1304
      %v1371 = vunpack.c.l.b16 %v1307
      %v1372 = vunpack.c.l.b16 %v1311
      %v1373 = vunpack.c.l.b16 %v1314
      %v1374 = vunpack.c.l.b16 %v1318
      %v1375 = vunpack.c.l.b16 %v1321
      %v1376 = vunpack.c.l.b16 %v1325
      %v1377 = vunpack.c.l.b16 %v1328
      %v1378 = vunpack.c.l.b16 %v1332
      %v1379 = vunpack.c.l.b16 %v1335
      %v1380 = vunpack.c.l.b16 %v1339
      %v1381 = vunpack.c.l.b16 %v1342
      %v1382 = vunpack.c.l.b16 %v1346
      %v1383 = vunpack.c.l.b16 %v1349
      %v1384 = vpack.c.b16 %v1353, %v1352
      %v1385 = vpack.c.b16 %v1355, %v1354
      %v1386 = vpack.c.b16 %v1357, %v1356
      %v1387 = vpack.c.b16 %v1359, %v1358
      %v1388 = vpack.c.b16 %v1361, %v1360
      %v1389 = vpack.c.b16 %v1363, %v1362
      %v1390 = vpack.c.b16 %v1365, %v1364
      %v1391 = vpack.c.b16 %v1367, %v1366
      %v1392 = vpack.c.b16 %v1369, %v1368
      %v1393 = vpack.c.b16 %v1371, %v1370
      %v1394 = vpack.c.b16 %v1373, %v1372
      %v1395 = vpack.c.b16 %v1375, %v1374
      %v1396 = vpack.c.b16 %v1377, %v1376
      %v1397 = vpack.c.b16 %v1379, %v1378
      %v1398 = vpack.c.b16 %v1381, %v1380
      %v1399 = vpack.c.b16 %v1383, %v1382
      %v1401 = vsel %vm713, %v1384, 0
      %v1404 = vsel %vm713, %v1385, 0
      %v1407 = vsel %vm713, %v1386, 0
      %v1410 = vsel %vm713, %v1387, 0
      %v1413 = vsel %vm713, %v1388, 0
      %v1416 = vsel %vm713, %v1389, 0
      %v1419 = vsel %vm713, %v1390, 0
      %v1422 = vsel %vm713, %v1391, 0
      %v1425 = vsel %vm713, %v1392, 0
      %v1428 = vsel %vm713, %v1393, 0
      %v1431 = vsel %vm713, %v1394, 0
      %v1434 = vsel %vm713, %v1395, 0
      %v1437 = vsel %vm713, %v1396, 0
      %v1440 = vsel %vm713, %v1397, 0
      %v1443 = vsel %vm713, %v1398, 0
      %v1446 = vsel %vm713, %v1399, 0
      %v1449 = vsel %vm762, %v1351, 0
      %1451 = vmatprep.subr.bf16.mxu0 0
      %1452 = vmatpush1.bf16.msra.mxu0 0
      %1453 = vmatprep.subr.bf16.mxu0 0
      %1454 = vmatpush1.bf16.msra.mxu0 0
      %1455 = vmatprep.subr.bf16.mxu0 0
      %1456 = vmatpush1.bf16.msra.mxu0 0
      %1457 = vmatprep.subr.bf16.mxu0 0
      %1458 = vmatpush1.bf16.msra.mxu0 0
      %1459 = vmatprep.subr.bf16.mxu0 0
      %1460 = vmatpush1.bf16.msra.mxu0 0
      %1461 = vmatprep.subr.bf16.mxu0 0
      %1462 = vmatpush1.bf16.msra.mxu0 0
      %1463 = vmatprep.subr.bf16.mxu0 0
      %1464 = vmatpush1.bf16.msra.mxu0 0
      %1465 = vmatprep.subr.bf16.mxu0 0
      %1466 = vmatpush1.bf16.msra.mxu0 %v1449
      %1467 = vmatprep.subr.bf16.mxu0 0
      %1468 = vmatpush2.bf16.msra.mxu0 0
      %1469 = vmatprep.subr.bf16.mxu0 0
      %1470 = vmatpush2.bf16.msra.mxu0 0
      %1471 = vmatprep.subr.bf16.mxu0 0
      %1472 = vmatpush2.bf16.msra.mxu0 0
      %1473 = vmatprep.subr.bf16.mxu0 0
      %1474 = vmatpush2.bf16.msra.mxu0 0
      %1475 = vmatprep.subr.bf16.mxu0 0
      %1476 = vmatpush2.bf16.msra.mxu0 0
      %1477 = vmatprep.subr.bf16.mxu0 0
      %1478 = vmatpush2.bf16.msra.mxu0 0
      %1479 = vmatprep.subr.bf16.mxu0 0
      %1480 = vmatpush2.bf16.msra.mxu0 0
      %1481 = vmatprep.subr.bf16.mxu0 0
      %1482 = vmatpush2.bf16.msra.mxu0 0
      %1483 = vmatprep.mubr.bf16.mxu0 0
      %1484 = vmatmul.mubr.bf16.gmra.mxu0 %v1401
      %v1485 = vpop.f32.mrf.mxu0
      %v1486 = vadd.f32 0.0, %v1485
      %v1487 = vpop.f32.mrf.mxu0
      %v1488 = vpop.f32.mrf.mxu0
      %v1489 = vadd.f32 0.0, %v1488
      %v1490 = vpop.f32.mrf.mxu0
      %1491 = vmatprep.mubr.bf16.mxu0 0
      %1492 = vmatmul.mubr.bf16.gmra.mxu0 %v1404
      %v1493 = vpop.f32.mrf.mxu0
      %v1494 = vadd.f32 0.0, %v1493
      %v1495 = vpop.f32.mrf.mxu0
      %v1496 = vpop.f32.mrf.mxu0
      %v1497 = vadd.f32 0.0, %v1496
      %v1498 = vpop.f32.mrf.mxu0
      %1499 = vmatprep.mubr.bf16.mxu0 0
      %1500 = vmatmul.mubr.bf16.gmra.mxu0 %v1407
      %v1501 = vpop.f32.mrf.mxu0
      %v1502 = vadd.f32 0.0, %v1501
      %v1503 = vpop.f32.mrf.mxu0
      %v1504 = vpop.f32.mrf.mxu0
      %v1505 = vadd.f32 0.0, %v1504
      %v1506 = vpop.f32.mrf.mxu0
      %1507 = vmatprep.mubr.bf16.mxu0 0
      %1508 = vmatmul.mubr.bf16.gmra.mxu0 %v1410
      %v1509 = vpop.f32.mrf.mxu0
      %v1510 = vadd.f32 0.0, %v1509
      %v1511 = vpop.f32.mrf.mxu0
      %v1512 = vpop.f32.mrf.mxu0
      %v1513 = vadd.f32 0.0, %v1512
      %v1514 = vpop.f32.mrf.mxu0
      %1515 = vmatprep.mubr.bf16.mxu0 0
      %1516 = vmatmul.mubr.bf16.gmra.mxu0 %v1413
      %v1517 = vpop.f32.mrf.mxu0
      %v1518 = vadd.f32 0.0, %v1517
      %v1519 = vpop.f32.mrf.mxu0
      %v1520 = vpop.f32.mrf.mxu0
      %v1521 = vadd.f32 0.0, %v1520
      %v1522 = vpop.f32.mrf.mxu0
      %1523 = vmatprep.mubr.bf16.mxu0 0
      %1524 = vmatmul.mubr.bf16.gmra.mxu0 %v1416
      %v1525 = vpop.f32.mrf.mxu0
      %v1526 = vadd.f32 0.0, %v1525
      %v1527 = vpop.f32.mrf.mxu0
      %v1528 = vpop.f32.mrf.mxu0
      %v1529 = vadd.f32 0.0, %v1528
      %v1530 = vpop.f32.mrf.mxu0
      %1531 = vmatprep.mubr.bf16.mxu0 0
      %1532 = vmatmul.mubr.bf16.gmra.mxu0 %v1419
      %v1533 = vpop.f32.mrf.mxu0
      %v1534 = vadd.f32 0.0, %v1533
      %v1535 = vpop.f32.mrf.mxu0
      %v1536 = vpop.f32.mrf.mxu0
      %v1537 = vadd.f32 0.0, %v1536
      %v1538 = vpop.f32.mrf.mxu0
      %1539 = vmatprep.mubr.bf16.mxu0 0
      %1540 = vmatmul.mubr.bf16.gmra.mxu0 %v1422
      %v1541 = vpop.f32.mrf.mxu0
      %v1542 = vadd.f32 0.0, %v1541
      %v1543 = vpop.f32.mrf.mxu0
      %v1544 = vpop.f32.mrf.mxu0
      %v1545 = vadd.f32 0.0, %v1544
      %v1546 = vpop.f32.mrf.mxu0
      %1547 = vmatprep.mubr.bf16.mxu0 0
      %1548 = vmatmul.mubr.bf16.gmra.mxu0 %v1425
      %v1549 = vpop.f32.mrf.mxu0
      %v1550 = vadd.f32 0.0, %v1549
      %v1551 = vpop.f32.mrf.mxu0
      %v1552 = vpop.f32.mrf.mxu0
      %v1553 = vadd.f32 0.0, %v1552
      %v1554 = vpop.f32.mrf.mxu0
      %1555 = vmatprep.mubr.bf16.mxu0 0
      %1556 = vmatmul.mubr.bf16.gmra.mxu0 %v1428
      %v1557 = vpop.f32.mrf.mxu0
      %v1558 = vadd.f32 0.0, %v1557
      %v1559 = vpop.f32.mrf.mxu0
      %v1560 = vpop.f32.mrf.mxu0
      %v1561 = vadd.f32 0.0, %v1560
      %v1562 = vpop.f32.mrf.mxu0
      %1563 = vmatprep.mubr.bf16.mxu0 0
      %1564 = vmatmul.mubr.bf16.gmra.mxu0 %v1431
      %v1565 = vpop.f32.mrf.mxu0
      %v1566 = vadd.f32 0.0, %v1565
      %v1567 = vpop.f32.mrf.mxu0
      %v1568 = vpop.f32.mrf.mxu0
      %v1569 = vadd.f32 0.0, %v1568
      %v1570 = vpop.f32.mrf.mxu0
      %1571 = vmatprep.mubr.bf16.mxu0 0
      %1572 = vmatmul.mubr.bf16.gmra.mxu0 %v1434
      %v1573 = vpop.f32.mrf.mxu0
      %v1574 = vadd.f32 0.0, %v1573
      %v1575 = vpop.f32.mrf.mxu0
      %v1576 = vpop.f32.mrf.mxu0
      %v1577 = vadd.f32 0.0, %v1576
      %v1578 = vpop.f32.mrf.mxu0
      %1579 = vmatprep.mubr.bf16.mxu0 0
      %1580 = vmatmul.mubr.bf16.gmra.mxu0 %v1437
      %v1581 = vpop.f32.mrf.mxu0
      %v1582 = vadd.f32 0.0, %v1581
      %v1583 = vpop.f32.mrf.mxu0
      %v1584 = vpop.f32.mrf.mxu0
      %v1585 = vadd.f32 0.0, %v1584
      %v1586 = vpop.f32.mrf.mxu0
      %1587 = vmatprep.mubr.bf16.mxu0 0
      %1588 = vmatmul.mubr.bf16.gmra.mxu0 %v1440
      %v1589 = vpop.f32.mrf.mxu0
      %v1590 = vadd.f32 0.0, %v1589
      %v1591 = vpop.f32.mrf.mxu0
      %v1592 = vpop.f32.mrf.mxu0
      %v1593 = vadd.f32 0.0, %v1592
      %v1594 = vpop.f32.mrf.mxu0
      %1595 = vmatprep.mubr.bf16.mxu0 0
      %1596 = vmatmul.mubr.bf16.gmra.mxu0 %v1443
      %v1597 = vpop.f32.mrf.mxu0
      %v1598 = vadd.f32 0.0, %v1597
      %v1599 = vpop.f32.mrf.mxu0
      %v1600 = vpop.f32.mrf.mxu0
      %v1601 = vadd.f32 0.0, %v1600
      %v1602 = vpop.f32.mrf.mxu0
      %1603 = vmatprep.mubr.bf16.mxu0 0
      %1604 = vmatmul.mubr.bf16.gmra.mxu0 %v1446
      %v1605 = vpop.f32.mrf.mxu0
      %v1606 = vadd.f32 0.0, %v1605
      %v1607 = vpop.f32.mrf.mxu0
      %v1608 = vpop.f32.mrf.mxu0
      %v1609 = vadd.f32 0.0, %v1608
      %v1610 = vpop.f32.mrf.mxu0
      %1611 = vdwg.mxu0
      %v1612 = vadd.f32 %v1093, %v1486
      %v1613 = vadd.f32 %v1096, %v1489
      %v1614 = vadd.f32 %v1101, %v1494
      %v1615 = vadd.f32 %v1104, %v1497
      %v1616 = vadd.f32 %v1109, %v1502
      %v1617 = vadd.f32 %v1112, %v1505
      %v1618 = vadd.f32 %v1117, %v1510
      %v1619 = vadd.f32 %v1120, %v1513
      %v1620 = vadd.f32 %v1125, %v1518
      %v1621 = vadd.f32 %v1128, %v1521
      %v1622 = vadd.f32 %v1133, %v1526
      %v1623 = vadd.f32 %v1136, %v1529
      %v1624 = vadd.f32 %v1141, %v1534
      %v1625 = vadd.f32 %v1144, %v1537
      %v1626 = vadd.f32 %v1149, %v1542
      %v1627 = vadd.f32 %v1152, %v1545
      %v1628 = vadd.f32 %v1157, %v1550
      %v1629 = vadd.f32 %v1160, %v1553
      %v1630 = vadd.f32 %v1165, %v1558
      %v1631 = vadd.f32 %v1168, %v1561
      %v1632 = vadd.f32 %v1173, %v1566
      %v1633 = vadd.f32 %v1176, %v1569
      %v1634 = vadd.f32 %v1181, %v1574
      %v1635 = vadd.f32 %v1184, %v1577
      %v1636 = vadd.f32 %v1189, %v1582
      %v1637 = vadd.f32 %v1192, %v1585
      %v1638 = vadd.f32 %v1197, %v1590
      %v1639 = vadd.f32 %v1200, %v1593
      %v1640 = vadd.f32 %v1205, %v1598
      %v1641 = vadd.f32 %v1208, %v1601
      %v1642 = vadd.f32 %v1213, %v1606
      %v1643 = vadd.f32 %v1216, %v1609
      %s1644 = scalar_lea.vmem %s1, 6
      %v1645 = vld [vmem:[%s1644] sm:$0x3]
      %v1648 = vunpack.c.l.b16 %v269
      %v1649 = vunpack.c.l.b16 %v270
      %v1650 = vpack.c.b16 %v1649, %v1648
      %v1652 = vsel %vm713, %v1650, 0
      %v1655 = vsel %vm762, %v1645, 0
      %1657 = vmatprep.subr.bf16.mxu0 0
      %1658 = vmatpush1.bf16.msra.mxu0 0
      %1659 = vmatprep.subr.bf16.mxu0 0
      %1660 = vmatpush1.bf16.msra.mxu0 0
      %1661 = vmatprep.subr.bf16.mxu0 0
      %1662 = vmatpush1.bf16.msra.mxu0 0
      %1663 = vmatprep.subr.bf16.mxu0 0
      %1664 = vmatpush1.bf16.msra.mxu0 0
      %1665 = vmatprep.subr.bf16.mxu0 0
      %1666 = vmatpush1.bf16.msra.mxu0 0
      %1667 = vmatprep.subr.bf16.mxu0 0
      %1668 = vmatpush1.bf16.msra.mxu0 0
      %1669 = vmatprep.subr.bf16.mxu0 0
      %1670 = vmatpush1.bf16.msra.mxu0 0
      %1671 = vmatprep.subr.bf16.mxu0 0
      %1672 = vmatpush1.bf16.msra.mxu0 %v1655
      %1673 = vmatprep.subr.bf16.mxu0 0
      %1674 = vmatpush2.bf16.msra.mxu0 0
      %1675 = vmatprep.subr.bf16.mxu0 0
      %1676 = vmatpush2.bf16.msra.mxu0 0
      %1677 = vmatprep.subr.bf16.mxu0 0
      %1678 = vmatpush2.bf16.msra.mxu0 0
      %1679 = vmatprep.subr.bf16.mxu0 0
      %1680 = vmatpush2.bf16.msra.mxu0 0
      %1681 = vmatprep.subr.bf16.mxu0 0
      %1682 = vmatpush2.bf16.msra.mxu0 0
      %1683 = vmatprep.subr.bf16.mxu0 0
      %1684 = vmatpush2.bf16.msra.mxu0 0
      %1685 = vmatprep.subr.bf16.mxu0 0
      %1686 = vmatpush2.bf16.msra.mxu0 0
      %1687 = vmatprep.subr.bf16.mxu0 0
      %1688 = vmatpush2.bf16.msra.mxu0 0
      %1689 = vmatprep.mubr.bf16.mxu0 0
      %1690 = vmatmul.mubr.bf16.gmra.mxu0 %v1011
      %v1691 = vpop.f32.mrf.mxu0
      %v1692 = vadd.f32 0.0, %v1691
      %v1693 = vpop.f32.mrf.mxu0
      %v1694 = vpop.f32.mrf.mxu0
      %v1695 = vadd.f32 0.0, %v1694
      %v1696 = vpop.f32.mrf.mxu0
      %1697 = vmatprep.mubr.bf16.mxu0 0
      %1698 = vmatmul.mubr.bf16.gmra.mxu0 %v1014
      %v1699 = vpop.f32.mrf.mxu0
      %v1700 = vadd.f32 0.0, %v1699
      %v1701 = vpop.f32.mrf.mxu0
      %v1702 = vpop.f32.mrf.mxu0
      %v1703 = vadd.f32 0.0, %v1702
      %v1704 = vpop.f32.mrf.mxu0
      %1705 = vmatprep.mubr.bf16.mxu0 0
      %1706 = vmatmul.mubr.bf16.gmra.mxu0 %v1017
      %v1707 = vpop.f32.mrf.mxu0
      %v1708 = vadd.f32 0.0, %v1707
      %v1709 = vpop.f32.mrf.mxu0
      %v1710 = vpop.f32.mrf.mxu0
      %v1711 = vadd.f32 0.0, %v1710
      %v1712 = vpop.f32.mrf.mxu0
      %1713 = vmatprep.mubr.bf16.mxu0 0
      %1714 = vmatmul.mubr.bf16.gmra.mxu0 %v1020
      %v1715 = vpop.f32.mrf.mxu0
      %v1716 = vadd.f32 0.0, %v1715
      %v1717 = vpop.f32.mrf.mxu0
      %v1718 = vpop.f32.mrf.mxu0
      %v1719 = vadd.f32 0.0, %v1718
      %v1720 = vpop.f32.mrf.mxu0
      %1721 = vmatprep.mubr.bf16.mxu0 0
      %1722 = vmatmul.mubr.bf16.gmra.mxu0 %v1023
      %v1723 = vpop.f32.mrf.mxu0
      %v1724 = vadd.f32 0.0, %v1723
      %v1725 = vpop.f32.mrf.mxu0
      %v1726 = vpop.f32.mrf.mxu0
      %v1727 = vadd.f32 0.0, %v1726
      %v1728 = vpop.f32.mrf.mxu0
      %1729 = vmatprep.mubr.bf16.mxu0 0
      %1730 = vmatmul.mubr.bf16.gmra.mxu0 %v1026
      %v1731 = vpop.f32.mrf.mxu0
      %v1732 = vadd.f32 0.0, %v1731
      %v1733 = vpop.f32.mrf.mxu0
      %v1734 = vpop.f32.mrf.mxu0
      %v1735 = vadd.f32 0.0, %v1734
      %v1736 = vpop.f32.mrf.mxu0
      %1737 = vmatprep.mubr.bf16.mxu0 0
      %1738 = vmatmul.mubr.bf16.gmra.mxu0 %v1029
      %v1739 = vpop.f32.mrf.mxu0
      %v1740 = vadd.f32 0.0, %v1739
      %v1741 = vpop.f32.mrf.mxu0
      %v1742 = vpop.f32.mrf.mxu0
      %v1743 = vadd.f32 0.0, %v1742
      %v1744 = vpop.f32.mrf.mxu0
      %1745 = vmatprep.mubr.bf16.mxu0 0
      %1746 = vmatmul.mubr.bf16.gmra.mxu0 %v1032
      %v1747 = vpop.f32.mrf.mxu0
      %v1748 = vadd.f32 0.0, %v1747
      %v1749 = vpop.f32.mrf.mxu0
      %v1750 = vpop.f32.mrf.mxu0
      %v1751 = vadd.f32 0.0, %v1750
      %v1752 = vpop.f32.mrf.mxu0
      %1753 = vmatprep.mubr.bf16.mxu0 0
      %1754 = vmatmul.mubr.bf16.gmra.mxu0 %v1035
      %v1755 = vpop.f32.mrf.mxu0
      %v1756 = vadd.f32 0.0, %v1755
      %v1757 = vpop.f32.mrf.mxu0
      %v1758 = vpop.f32.mrf.mxu0
      %v1759 = vadd.f32 0.0, %v1758
      %v1760 = vpop.f32.mrf.mxu0
      %1761 = vmatprep.mubr.bf16.mxu0 0
      %1762 = vmatmul.mubr.bf16.gmra.mxu0 %v1038
      %v1763 = vpop.f32.mrf.mxu0
      %v1764 = vadd.f32 0.0, %v1763
      %v1765 = vpop.f32.mrf.mxu0
      %v1766 = vpop.f32.mrf.mxu0
      %v1767 = vadd.f32 0.0, %v1766
      %v1768 = vpop.f32.mrf.mxu0
      %1769 = vmatprep.mubr.bf16.mxu0 0
      %1770 = vmatmul.mubr.bf16.gmra.mxu0 %v1041
      %v1771 = vpop.f32.mrf.mxu0
      %v1772 = vadd.f32 0.0, %v1771
      %v1773 = vpop.f32.mrf.mxu0
      %v1774 = vpop.f32.mrf.mxu0
      %v1775 = vadd.f32 0.0, %v1774
      %v1776 = vpop.f32.mrf.mxu0
      %1777 = vmatprep.mubr.bf16.mxu0 0
      %1778 = vmatmul.mubr.bf16.gmra.mxu0 %v1044
      %v1779 = vpop.f32.mrf.mxu0
      %v1780 = vadd.f32 0.0, %v1779
      %v1781 = vpop.f32.mrf.mxu0
      %v1782 = vpop.f32.mrf.mxu0
      %v1783 = vadd.f32 0.0, %v1782
      %v1784 = vpop.f32.mrf.mxu0
      %1785 = vmatprep.mubr.bf16.mxu0 0
      %1786 = vmatmul.mubr.bf16.gmra.mxu0 %v1047
      %v1787 = vpop.f32.mrf.mxu0
      %v1788 = vadd.f32 0.0, %v1787
      %v1789 = vpop.f32.mrf.mxu0
      %v1790 = vpop.f32.mrf.mxu0
      %v1791 = vadd.f32 0.0, %v1790
      %v1792 = vpop.f32.mrf.mxu0
      %1793 = vmatprep.mubr.bf16.mxu0 0
      %1794 = vmatmul.mubr.bf16.gmra.mxu0 %v1050
      %v1795 = vpop.f32.mrf.mxu0
      %v1796 = vadd.f32 0.0, %v1795
      %v1797 = vpop.f32.mrf.mxu0
      %v1798 = vpop.f32.mrf.mxu0
      %v1799 = vadd.f32 0.0, %v1798
      %v1800 = vpop.f32.mrf.mxu0
      %1801 = vmatprep.mubr.bf16.mxu0 0
      %1802 = vmatmul.mubr.bf16.gmra.mxu0 %v1053
      %v1803 = vpop.f32.mrf.mxu0
      %v1804 = vadd.f32 0.0, %v1803
      %v1805 = vpop.f32.mrf.mxu0
      %v1806 = vpop.f32.mrf.mxu0
      %v1807 = vadd.f32 0.0, %v1806
      %v1808 = vpop.f32.mrf.mxu0
      %1809 = vmatprep.mubr.bf16.mxu0 0
      %1810 = vmatmul.mubr.bf16.gmra.mxu0 %v1652
      %v1811 = vpop.f32.mrf.mxu0
      %v1812 = vadd.f32 0.0, %v1811
      %v1813 = vpop.f32.mrf.mxu0
      %v1814 = vpop.f32.mrf.mxu0
      %v1815 = vadd.f32 0.0, %v1814
      %v1816 = vpop.f32.mrf.mxu0
      %1817 = vdwg.mxu0
      %v1818 = vadd.f32 %v1612, %v1692
      %v1819 = vadd.f32 %v1613, %v1695
      %v1820 = vadd.f32 %v1614, %v1700
      %v1821 = vadd.f32 %v1615, %v1703
      %v1822 = vadd.f32 %v1616, %v1708
      %v1823 = vadd.f32 %v1617, %v1711
      %v1824 = vadd.f32 %v1618, %v1716
      %v1825 = vadd.f32 %v1619, %v1719
      %v1826 = vadd.f32 %v1620, %v1724
      %v1827 = vadd.f32 %v1621, %v1727
      %v1828 = vadd.f32 %v1622, %v1732
      %v1829 = vadd.f32 %v1623, %v1735
      %v1830 = vadd.f32 %v1624, %v1740
      %v1831 = vadd.f32 %v1625, %v1743
      %v1832 = vadd.f32 %v1626, %v1748
      %v1833 = vadd.f32 %v1627, %v1751
      %v1834 = vadd.f32 %v1628, %v1756
      %v1835 = vadd.f32 %v1629, %v1759
      %v1836 = vadd.f32 %v1630, %v1764
      %v1837 = vadd.f32 %v1631, %v1767
      %v1838 = vadd.f32 %v1632, %v1772
      %v1839 = vadd.f32 %v1633, %v1775
      %v1840 = vadd.f32 %v1634, %v1780
      %v1841 = vadd.f32 %v1635, %v1783
      %v1842 = vadd.f32 %v1636, %v1788
      %v1843 = vadd.f32 %v1637, %v1791
      %v1844 = vadd.f32 %v1638, %v1796
      %v1845 = vadd.f32 %v1639, %v1799
      %v1846 = vadd.f32 %v1640, %v1804
      %v1847 = vadd.f32 %v1641, %v1807
      %v1848 = vadd.f32 %v1642, %v1812
      %v1849 = vadd.f32 %v1643, %v1815
      %v1851 = vshrl.u32 %v269, 16
      %v1853 = vrot.slane %v1851, 4
      %v1854 = vshll.u32 %v269, 16
      %v1856 = vrot.slane %v1854, 5
      %v1857 = vor.u32 %v1853, %v1856
      %v1858 = vrot.slane %v1857, 4
      %v1860 = vshll.u32 %v270, 16
      %v1862 = vrot.slane %v1860, 5
      %v1863 = vsel %vm278, %v1858, %v1862
      %v1864 = vshrl.u32 %v270, 16
      %v1866 = vrot.slane %v1864, 4
      %v1867 = vor.u32 %v1866, %v1862
      %v1868 = vrot.slane %v1867, 4
      %v1870 = vshll.u32 %v271, 16
      %v1872 = vrot.slane %v1870, 5
      %v1873 = vsel %vm278, %v1868, %v1872
      %s1874 = scalar_lea.vmem %s1, 8
      %v1875 = vld [vmem:[%s1874] sm:$0x3]
      %v1876 = vunpack.c.l.b16 %v1863
      %v1877 = vunpack.c.l.b16 %v1873
      %v1878 = vpack.c.b16 %v1877, %v1876
      %v1880 = vsel %vm713, %v1878, 0
      %v1883 = vsel %vm762, %v1875, 0
      %1885 = vmatprep.subr.bf16.mxu0 0
      %1886 = vmatpush1.bf16.msra.mxu0 0
      %1887 = vmatprep.subr.bf16.mxu0 0
      %1888 = vmatpush1.bf16.msra.mxu0 0
      %1889 = vmatprep.subr.bf16.mxu0 0
      %1890 = vmatpush1.bf16.msra.mxu0 0
      %1891 = vmatprep.subr.bf16.mxu0 0
      %1892 = vmatpush1.bf16.msra.mxu0 0
      %1893 = vmatprep.subr.bf16.mxu0 0
      %1894 = vmatpush1.bf16.msra.mxu0 0
      %1895 = vmatprep.subr.bf16.mxu0 0
      %1896 = vmatpush1.bf16.msra.mxu0 0
      %1897 = vmatprep.subr.bf16.mxu0 0
      %1898 = vmatpush1.bf16.msra.mxu0 0
      %1899 = vmatprep.subr.bf16.mxu0 0
      %1900 = vmatpush1.bf16.msra.mxu0 %v1883
      %1901 = vmatprep.subr.bf16.mxu0 0
      %1902 = vmatpush2.bf16.msra.mxu0 0
      %1903 = vmatprep.subr.bf16.mxu0 0
      %1904 = vmatpush2.bf16.msra.mxu0 0
      %1905 = vmatprep.subr.bf16.mxu0 0
      %1906 = vmatpush2.bf16.msra.mxu0 0
      %1907 = vmatprep.subr.bf16.mxu0 0
      %1908 = vmatpush2.bf16.msra.mxu0 0
      %1909 = vmatprep.subr.bf16.mxu0 0
      %1910 = vmatpush2.bf16.msra.mxu0 0
      %1911 = vmatprep.subr.bf16.mxu0 0
      %1912 = vmatpush2.bf16.msra.mxu0 0
      %1913 = vmatprep.subr.bf16.mxu0 0
      %1914 = vmatpush2.bf16.msra.mxu0 0
      %1915 = vmatprep.subr.bf16.mxu0 0
      %1916 = vmatpush2.bf16.msra.mxu0 0
      %1917 = vmatprep.mubr.bf16.mxu0 0
      %1918 = vmatmul.mubr.bf16.gmra.mxu0 %v718
      %v1919 = vpop.f32.mrf.mxu0
      %v1920 = vadd.f32 0.0, %v1919
      %v1921 = vpop.f32.mrf.mxu0
      %v1922 = vpop.f32.mrf.mxu0
      %v1923 = vadd.f32 0.0, %v1922
      %v1924 = vpop.f32.mrf.mxu0
      %1925 = vmatprep.mubr.bf16.mxu0 0
      %1926 = vmatmul.mubr.bf16.gmra.mxu0 %v721
      %v1927 = vpop.f32.mrf.mxu0
      %v1928 = vadd.f32 0.0, %v1927
      %v1929 = vpop.f32.mrf.mxu0
      %v1930 = vpop.f32.mrf.mxu0
      %v1931 = vadd.f32 0.0, %v1930
      %v1932 = vpop.f32.mrf.mxu0
      %1933 = vmatprep.mubr.bf16.mxu0 0
      %1934 = vmatmul.mubr.bf16.gmra.mxu0 %v724
      %v1935 = vpop.f32.mrf.mxu0
      %v1936 = vadd.f32 0.0, %v1935
      %v1937 = vpop.f32.mrf.mxu0
      %v1938 = vpop.f32.mrf.mxu0
      %v1939 = vadd.f32 0.0, %v1938
      %v1940 = vpop.f32.mrf.mxu0
      %1941 = vmatprep.mubr.bf16.mxu0 0
      %1942 = vmatmul.mubr.bf16.gmra.mxu0 %v727
      %v1943 = vpop.f32.mrf.mxu0
      %v1944 = vadd.f32 0.0, %v1943
      %v1945 = vpop.f32.mrf.mxu0
      %v1946 = vpop.f32.mrf.mxu0
      %v1947 = vadd.f32 0.0, %v1946
      %v1948 = vpop.f32.mrf.mxu0
      %1949 = vmatprep.mubr.bf16.mxu0 0
      %1950 = vmatmul.mubr.bf16.gmra.mxu0 %v730
      %v1951 = vpop.f32.mrf.mxu0
      %v1952 = vadd.f32 0.0, %v1951
      %v1953 = vpop.f32.mrf.mxu0
      %v1954 = vpop.f32.mrf.mxu0
      %v1955 = vadd.f32 0.0, %v1954
      %v1956 = vpop.f32.mrf.mxu0
      %1957 = vmatprep.mubr.bf16.mxu0 0
      %1958 = vmatmul.mubr.bf16.gmra.mxu0 %v733
      %v1959 = vpop.f32.mrf.mxu0
      %v1960 = vadd.f32 0.0, %v1959
      %v1961 = vpop.f32.mrf.mxu0
      %v1962 = vpop.f32.mrf.mxu0
      %v1963 = vadd.f32 0.0, %v1962
      %v1964 = vpop.f32.mrf.mxu0
      %1965 = vmatprep.mubr.bf16.mxu0 0
      %1966 = vmatmul.mubr.bf16.gmra.mxu0 %v736
      %v1967 = vpop.f32.mrf.mxu0
      %v1968 = vadd.f32 0.0, %v1967
      %v1969 = vpop.f32.mrf.mxu0
      %v1970 = vpop.f32.mrf.mxu0
      %v1971 = vadd.f32 0.0, %v1970
      %v1972 = vpop.f32.mrf.mxu0
      %1973 = vmatprep.mubr.bf16.mxu0 0
      %1974 = vmatmul.mubr.bf16.gmra.mxu0 %v739
      %v1975 = vpop.f32.mrf.mxu0
      %v1976 = vadd.f32 0.0, %v1975
      %v1977 = vpop.f32.mrf.mxu0
      %v1978 = vpop.f32.mrf.mxu0
      %v1979 = vadd.f32 0.0, %v1978
      %v1980 = vpop.f32.mrf.mxu0
      %1981 = vmatprep.mubr.bf16.mxu0 0
      %1982 = vmatmul.mubr.bf16.gmra.mxu0 %v742
      %v1983 = vpop.f32.mrf.mxu0
      %v1984 = vadd.f32 0.0, %v1983
      %v1985 = vpop.f32.mrf.mxu0
      %v1986 = vpop.f32.mrf.mxu0
      %v1987 = vadd.f32 0.0, %v1986
      %v1988 = vpop.f32.mrf.mxu0
      %1989 = vmatprep.mubr.bf16.mxu0 0
      %1990 = vmatmul.mubr.bf16.gmra.mxu0 %v745
      %v1991 = vpop.f32.mrf.mxu0
      %v1992 = vadd.f32 0.0, %v1991
      %v1993 = vpop.f32.mrf.mxu0
      %v1994 = vpop.f32.mrf.mxu0
      %v1995 = vadd.f32 0.0, %v1994
      %v1996 = vpop.f32.mrf.mxu0
      %1997 = vmatprep.mubr.bf16.mxu0 0
      %1998 = vmatmul.mubr.bf16.gmra.mxu0 %v748
      %v1999 = vpop.f32.mrf.mxu0
      %v2000 = vadd.f32 0.0, %v1999
      %v2001 = vpop.f32.mrf.mxu0
      %v2002 = vpop.f32.mrf.mxu0
      %v2003 = vadd.f32 0.0, %v2002
      %v2004 = vpop.f32.mrf.mxu0
      %2005 = vmatprep.mubr.bf16.mxu0 0
      %2006 = vmatmul.mubr.bf16.gmra.mxu0 %v751
      %v2007 = vpop.f32.mrf.mxu0
      %v2008 = vadd.f32 0.0, %v2007
      %v2009 = vpop.f32.mrf.mxu0
      %v2010 = vpop.f32.mrf.mxu0
      %v2011 = vadd.f32 0.0, %v2010
      %v2012 = vpop.f32.mrf.mxu0
      %2013 = vmatprep.mubr.bf16.mxu0 0
      %2014 = vmatmul.mubr.bf16.gmra.mxu0 %v754
      %v2015 = vpop.f32.mrf.mxu0
      %v2016 = vadd.f32 0.0, %v2015
      %v2017 = vpop.f32.mrf.mxu0
      %v2018 = vpop.f32.mrf.mxu0
      %v2019 = vadd.f32 0.0, %v2018
      %v2020 = vpop.f32.mrf.mxu0
      %2021 = vmatprep.mubr.bf16.mxu0 0
      %2022 = vmatmul.mubr.bf16.gmra.mxu0 %v757
      %v2023 = vpop.f32.mrf.mxu0
      %v2024 = vadd.f32 0.0, %v2023
      %v2025 = vpop.f32.mrf.mxu0
      %v2026 = vpop.f32.mrf.mxu0
      %v2027 = vadd.f32 0.0, %v2026
      %v2028 = vpop.f32.mrf.mxu0
      %2029 = vmatprep.mubr.bf16.mxu0 0
      %2030 = vmatmul.mubr.bf16.gmra.mxu0 %v760
      %v2031 = vpop.f32.mrf.mxu0
      %v2032 = vadd.f32 0.0, %v2031
      %v2033 = vpop.f32.mrf.mxu0
      %v2034 = vpop.f32.mrf.mxu0
      %v2035 = vadd.f32 0.0, %v2034
      %v2036 = vpop.f32.mrf.mxu0
      %2037 = vmatprep.mubr.bf16.mxu0 0
      %2038 = vmatmul.mubr.bf16.gmra.mxu0 %v1880
      %v2039 = vpop.f32.mrf.mxu0
      %v2040 = vadd.f32 0.0, %v2039
      %v2041 = vpop.f32.mrf.mxu0
      %v2042 = vpop.f32.mrf.mxu0
      %v2043 = vadd.f32 0.0, %v2042
      %v2044 = vpop.f32.mrf.mxu0
      %2045 = vdwg.mxu0
      %v2046 = vadd.f32 %v1818, %v1920
      %v2047 = vadd.f32 %v1819, %v1923
      %v2048 = vadd.f32 %v1820, %v1928
      %v2049 = vadd.f32 %v1821, %v1931
      %v2050 = vadd.f32 %v1822, %v1936
      %v2051 = vadd.f32 %v1823, %v1939
      %v2052 = vadd.f32 %v1824, %v1944
      %v2053 = vadd.f32 %v1825, %v1947
      %v2054 = vadd.f32 %v1826, %v1952
      %v2055 = vadd.f32 %v1827, %v1955
      %v2056 = vadd.f32 %v1828, %v1960
      %v2057 = vadd.f32 %v1829, %v1963
      %v2058 = vadd.f32 %v1830, %v1968
      %v2059 = vadd.f32 %v1831, %v1971
      %v2060 = vadd.f32 %v1832, %v1976
      %v2061 = vadd.f32 %v1833, %v1979
      %v2062 = vadd.f32 %v1834, %v1984
      %v2063 = vadd.f32 %v1835, %v1987
      %v2064 = vadd.f32 %v1836, %v1992
      %v2065 = vadd.f32 %v1837, %v1995
      %v2066 = vadd.f32 %v1838, %v2000
      %v2067 = vadd.f32 %v1839, %v2003
      %v2068 = vadd.f32 %v1840, %v2008
      %v2069 = vadd.f32 %v1841, %v2011
      %v2070 = vadd.f32 %v1842, %v2016
      %v2071 = vadd.f32 %v1843, %v2019
      %v2072 = vadd.f32 %v1844, %v2024
      %v2073 = vadd.f32 %v1845, %v2027
      %v2074 = vadd.f32 %v1846, %v2032
      %v2075 = vadd.f32 %v1847, %v2035
      %v2076 = vadd.f32 %v1848, %v2040
      %v2077 = vadd.f32 %v1849, %v2043
      %v2079 = vrot.slane %v269, 5
      %v2080 = vrot.slane %v2079, 4
      %v2081 = vrot.slane %v270, 5
      %v2082 = vsel %vm1237, %v2080, %v2081
      %v2083 = vrot.slane %v2081, 4
      %v2084 = vrot.slane %v271, 5
      %v2085 = vsel %vm1237, %v2083, %v2084
      %s2086 = scalar_lea.vmem %s1, 10
      %v2087 = vld [vmem:[%s2086] sm:$0x3]
      %v2088 = vunpack.c.l.b16 %v2082
      %v2089 = vunpack.c.l.b16 %v2085
      %v2090 = vpack.c.b16 %v2089, %v2088
      %v2092 = vsel %vm713, %v2090, 0
      %v2095 = vsel %vm762, %v2087, 0
      %2097 = vmatprep.subr.bf16.mxu0 0
      %2098 = vmatpush1.bf16.msra.mxu0 0
      %2099 = vmatprep.subr.bf16.mxu0 0
      %2100 = vmatpush1.bf16.msra.mxu0 0
      %2101 = vmatprep.subr.bf16.mxu0 0
      %2102 = vmatpush1.bf16.msra.mxu0 0
      %2103 = vmatprep.subr.bf16.mxu0 0
      %2104 = vmatpush1.bf16.msra.mxu0 0
      %2105 = vmatprep.subr.bf16.mxu0 0
      %2106 = vmatpush1.bf16.msra.mxu0 0
      %2107 = vmatprep.subr.bf16.mxu0 0
      %2108 = vmatpush1.bf16.msra.mxu0 0
      %2109 = vmatprep.subr.bf16.mxu0 0
      %2110 = vmatpush1.bf16.msra.mxu0 0
      %2111 = vmatprep.subr.bf16.mxu0 0
      %2112 = vmatpush1.bf16.msra.mxu0 %v2095
      %2113 = vmatprep.subr.bf16.mxu0 0
      %2114 = vmatpush2.bf16.msra.mxu0 0
      %2115 = vmatprep.subr.bf16.mxu0 0
      %2116 = vmatpush2.bf16.msra.mxu0 0
      %2117 = vmatprep.subr.bf16.mxu0 0
      %2118 = vmatpush2.bf16.msra.mxu0 0
      %2119 = vmatprep.subr.bf16.mxu0 0
      %2120 = vmatpush2.bf16.msra.mxu0 0
      %2121 = vmatprep.subr.bf16.mxu0 0
      %2122 = vmatpush2.bf16.msra.mxu0 0
      %2123 = vmatprep.subr.bf16.mxu0 0
      %2124 = vmatpush2.bf16.msra.mxu0 0
      %2125 = vmatprep.subr.bf16.mxu0 0
      %2126 = vmatpush2.bf16.msra.mxu0 0
      %2127 = vmatprep.subr.bf16.mxu0 0
      %2128 = vmatpush2.bf16.msra.mxu0 0
      %2129 = vmatprep.mubr.bf16.mxu0 0
      %2130 = vmatmul.mubr.bf16.gmra.mxu0 %v1404
      %v2131 = vpop.f32.mrf.mxu0
      %v2132 = vadd.f32 0.0, %v2131
      %v2133 = vpop.f32.mrf.mxu0
      %v2134 = vpop.f32.mrf.mxu0
      %v2135 = vadd.f32 0.0, %v2134
      %v2136 = vpop.f32.mrf.mxu0
      %2137 = vmatprep.mubr.bf16.mxu0 0
      %2138 = vmatmul.mubr.bf16.gmra.mxu0 %v1407
      %v2139 = vpop.f32.mrf.mxu0
      %v2140 = vadd.f32 0.0, %v2139
      %v2141 = vpop.f32.mrf.mxu0
      %v2142 = vpop.f32.mrf.mxu0
      %v2143 = vadd.f32 0.0, %v2142
      %v2144 = vpop.f32.mrf.mxu0
      %2145 = vmatprep.mubr.bf16.mxu0 0
      %2146 = vmatmul.mubr.bf16.gmra.mxu0 %v1410
      %v2147 = vpop.f32.mrf.mxu0
      %v2148 = vadd.f32 0.0, %v2147
      %v2149 = vpop.f32.mrf.mxu0
      %v2150 = vpop.f32.mrf.mxu0
      %v2151 = vadd.f32 0.0, %v2150
      %v2152 = vpop.f32.mrf.mxu0
      %2153 = vmatprep.mubr.bf16.mxu0 0
      %2154 = vmatmul.mubr.bf16.gmra.mxu0 %v1413
      %v2155 = vpop.f32.mrf.mxu0
      %v2156 = vadd.f32 0.0, %v2155
      %v2157 = vpop.f32.mrf.mxu0
      %v2158 = vpop.f32.mrf.mxu0
      %v2159 = vadd.f32 0.0, %v2158
      %v2160 = vpop.f32.mrf.mxu0
      %2161 = vmatprep.mubr.bf16.mxu0 0
      %2162 = vmatmul.mubr.bf16.gmra.mxu0 %v1416
      %v2163 = vpop.f32.mrf.mxu0
      %v2164 = vadd.f32 0.0, %v2163
      %v2165 = vpop.f32.mrf.mxu0
      %v2166 = vpop.f32.mrf.mxu0
      %v2167 = vadd.f32 0.0, %v2166
      %v2168 = vpop.f32.mrf.mxu0
      %2169 = vmatprep.mubr.bf16.mxu0 0
      %2170 = vmatmul.mubr.bf16.gmra.mxu0 %v1419
      %v2171 = vpop.f32.mrf.mxu0
      %v2172 = vadd.f32 0.0, %v2171
      %v2173 = vpop.f32.mrf.mxu0
      %v2174 = vpop.f32.mrf.mxu0
      %v2175 = vadd.f32 0.0, %v2174
      %v2176 = vpop.f32.mrf.mxu0
      %2177 = vmatprep.mubr.bf16.mxu0 0
      %2178 = vmatmul.mubr.bf16.gmra.mxu0 %v1422
      %v2179 = vpop.f32.mrf.mxu0
      %v2180 = vadd.f32 0.0, %v2179
      %v2181 = vpop.f32.mrf.mxu0
      %v2182 = vpop.f32.mrf.mxu0
      %v2183 = vadd.f32 0.0, %v2182
      %v2184 = vpop.f32.mrf.mxu0
      %2185 = vmatprep.mubr.bf16.mxu0 0
      %2186 = vmatmul.mubr.bf16.gmra.mxu0 %v1425
      %v2187 = vpop.f32.mrf.mxu0
      %v2188 = vadd.f32 0.0, %v2187
      %v2189 = vpop.f32.mrf.mxu0
      %v2190 = vpop.f32.mrf.mxu0
      %v2191 = vadd.f32 0.0, %v2190
      %v2192 = vpop.f32.mrf.mxu0
      %2193 = vmatprep.mubr.bf16.mxu0 0
      %2194 = vmatmul.mubr.bf16.gmra.mxu0 %v1428
      %v2195 = vpop.f32.mrf.mxu0
      %v2196 = vadd.f32 0.0, %v2195
      %v2197 = vpop.f32.mrf.mxu0
      %v2198 = vpop.f32.mrf.mxu0
      %v2199 = vadd.f32 0.0, %v2198
      %v2200 = vpop.f32.mrf.mxu0
      %2201 = vmatprep.mubr.bf16.mxu0 0
      %2202 = vmatmul.mubr.bf16.gmra.mxu0 %v1431
      %v2203 = vpop.f32.mrf.mxu0
      %v2204 = vadd.f32 0.0, %v2203
      %v2205 = vpop.f32.mrf.mxu0
      %v2206 = vpop.f32.mrf.mxu0
      %v2207 = vadd.f32 0.0, %v2206
      %v2208 = vpop.f32.mrf.mxu0
      %2209 = vmatprep.mubr.bf16.mxu0 0
      %2210 = vmatmul.mubr.bf16.gmra.mxu0 %v1434
      %v2211 = vpop.f32.mrf.mxu0
      %v2212 = vadd.f32 0.0, %v2211
      %v2213 = vpop.f32.mrf.mxu0
      %v2214 = vpop.f32.mrf.mxu0
      %v2215 = vadd.f32 0.0, %v2214
      %v2216 = vpop.f32.mrf.mxu0
      %2217 = vmatprep.mubr.bf16.mxu0 0
      %2218 = vmatmul.mubr.bf16.gmra.mxu0 %v1437
      %v2219 = vpop.f32.mrf.mxu0
      %v2220 = vadd.f32 0.0, %v2219
      %v2221 = vpop.f32.mrf.mxu0
      %v2222 = vpop.f32.mrf.mxu0
      %v2223 = vadd.f32 0.0, %v2222
      %v2224 = vpop.f32.mrf.mxu0
      %2225 = vmatprep.mubr.bf16.mxu0 0
      %2226 = vmatmul.mubr.bf16.gmra.mxu0 %v1440
      %v2227 = vpop.f32.mrf.mxu0
      %v2228 = vadd.f32 0.0, %v2227
      %v2229 = vpop.f32.mrf.mxu0
      %v2230 = vpop.f32.mrf.mxu0
      %v2231 = vadd.f32 0.0, %v2230
      %v2232 = vpop.f32.mrf.mxu0
      %2233 = vmatprep.mubr.bf16.mxu0 0
      %2234 = vmatmul.mubr.bf16.gmra.mxu0 %v1443
      %v2235 = vpop.f32.mrf.mxu0
      %v2236 = vadd.f32 0.0, %v2235
      %v2237 = vpop.f32.mrf.mxu0
      %v2238 = vpop.f32.mrf.mxu0
      %v2239 = vadd.f32 0.0, %v2238
      %v2240 = vpop.f32.mrf.mxu0
      %2241 = vmatprep.mubr.bf16.mxu0 0
      %2242 = vmatmul.mubr.bf16.gmra.mxu0 %v1446
      %v2243 = vpop.f32.mrf.mxu0
      %v2244 = vadd.f32 0.0, %v2243
      %v2245 = vpop.f32.mrf.mxu0
      %v2246 = vpop.f32.mrf.mxu0
      %v2247 = vadd.f32 0.0, %v2246
      %v2248 = vpop.f32.mrf.mxu0
      %2249 = vmatprep.mubr.bf16.mxu0 0
      %2250 = vmatmul.mubr.bf16.gmra.mxu0 %v2092
      %v2251 = vpop.f32.mrf.mxu0
      %v2252 = vadd.f32 0.0, %v2251
      %v2253 = vpop.f32.mrf.mxu0
      %v2254 = vpop.f32.mrf.mxu0
      %v2255 = vadd.f32 0.0, %v2254
      %v2256 = vpop.f32.mrf.mxu0
      %2257 = vdwg.mxu0
      %v2258 = vadd.f32 %v2046, %v2132
      %v2259 = vadd.f32 %v2047, %v2135
      %v2260 = vadd.f32 %v2048, %v2140
      %v2261 = vadd.f32 %v2049, %v2143
      %v2262 = vadd.f32 %v2050, %v2148
      %v2263 = vadd.f32 %v2051, %v2151
      %v2264 = vadd.f32 %v2052, %v2156
      %v2265 = vadd.f32 %v2053, %v2159
      %v2266 = vadd.f32 %v2054, %v2164
      %v2267 = vadd.f32 %v2055, %v2167
      %v2268 = vadd.f32 %v2056, %v2172
      %v2269 = vadd.f32 %v2057, %v2175
      %v2270 = vadd.f32 %v2058, %v2180
      %v2271 = vadd.f32 %v2059, %v2183
      %v2272 = vadd.f32 %v2060, %v2188
      %v2273 = vadd.f32 %v2061, %v2191
      %v2274 = vadd.f32 %v2062, %v2196
      %v2275 = vadd.f32 %v2063, %v2199
      %v2276 = vadd.f32 %v2064, %v2204
      %v2277 = vadd.f32 %v2065, %v2207
      %v2278 = vadd.f32 %v2066, %v2212
      %v2279 = vadd.f32 %v2067, %v2215
      %v2280 = vadd.f32 %v2068, %v2220
      %v2281 = vadd.f32 %v2069, %v2223
      %v2282 = vadd.f32 %v2070, %v2228
      %v2283 = vadd.f32 %v2071, %v2231
      %v2284 = vadd.f32 %v2072, %v2236
      %v2285 = vadd.f32 %v2073, %v2239
      %v2286 = vadd.f32 %v2074, %v2244
      %v2287 = vadd.f32 %v2075, %v2247
      %v2288 = vadd.f32 %v2076, %v2252
      %v2289 = vadd.f32 %v2077, %v2255
      %s2290 = scalar_lea.vmem %s1, 12
      %v2291 = vld [vmem:[%s2290] sm:$0x3]
      %v2294 = vunpack.c.l.b16 %v272
      %v2295 = vunpack.c.l.b16 %v273
      %v2296 = vpack.c.b16 %v2295, %v2294
      %v2298 = vsel %vm713, %v2296, 0
      %v2301 = vsel %vm762, %v2291, 0
      %2303 = vmatprep.subr.bf16.mxu0 0
      %2304 = vmatpush1.bf16.msra.mxu0 0
      %2305 = vmatprep.subr.bf16.mxu0 0
      %2306 = vmatpush1.bf16.msra.mxu0 0
      %2307 = vmatprep.subr.bf16.mxu0 0
      %2308 = vmatpush1.bf16.msra.mxu0 0
      %2309 = vmatprep.subr.bf16.mxu0 0
      %2310 = vmatpush1.bf16.msra.mxu0 0
      %2311 = vmatprep.subr.bf16.mxu0 0
      %2312 = vmatpush1.bf16.msra.mxu0 0
      %2313 = vmatprep.subr.bf16.mxu0 0
      %2314 = vmatpush1.bf16.msra.mxu0 0
      %2315 = vmatprep.subr.bf16.mxu0 0
      %2316 = vmatpush1.bf16.msra.mxu0 0
      %2317 = vmatprep.subr.bf16.mxu0 0
      %2318 = vmatpush1.bf16.msra.mxu0 %v2301
      %2319 = vmatprep.subr.bf16.mxu0 0
      %2320 = vmatpush2.bf16.msra.mxu0 0
      %2321 = vmatprep.subr.bf16.mxu0 0
      %2322 = vmatpush2.bf16.msra.mxu0 0
      %2323 = vmatprep.subr.bf16.mxu0 0
      %2324 = vmatpush2.bf16.msra.mxu0 0
      %2325 = vmatprep.subr.bf16.mxu0 0
      %2326 = vmatpush2.bf16.msra.mxu0 0
      %2327 = vmatprep.subr.bf16.mxu0 0
      %2328 = vmatpush2.bf16.msra.mxu0 0
      %2329 = vmatprep.subr.bf16.mxu0 0
      %2330 = vmatpush2.bf16.msra.mxu0 0
      %2331 = vmatprep.subr.bf16.mxu0 0
      %2332 = vmatpush2.bf16.msra.mxu0 0
      %2333 = vmatprep.subr.bf16.mxu0 0
      %2334 = vmatpush2.bf16.msra.mxu0 0
      %2335 = vmatprep.mubr.bf16.mxu0 0
      %2336 = vmatmul.mubr.bf16.gmra.mxu0 %v1014
      %v2337 = vpop.f32.mrf.mxu0
      %v2338 = vadd.f32 0.0, %v2337
      %v2339 = vpop.f32.mrf.mxu0
      %v2340 = vpop.f32.mrf.mxu0
      %v2341 = vadd.f32 0.0, %v2340
      %v2342 = vpop.f32.mrf.mxu0
      %2343 = vmatprep.mubr.bf16.mxu0 0
      %2344 = vmatmul.mubr.bf16.gmra.mxu0 %v1017
      %v2345 = vpop.f32.mrf.mxu0
      %v2346 = vadd.f32 0.0, %v2345
      %v2347 = vpop.f32.mrf.mxu0
      %v2348 = vpop.f32.mrf.mxu0
      %v2349 = vadd.f32 0.0, %v2348
      %v2350 = vpop.f32.mrf.mxu0
      %2351 = vmatprep.mubr.bf16.mxu0 0
      %2352 = vmatmul.mubr.bf16.gmra.mxu0 %v1020
      %v2353 = vpop.f32.mrf.mxu0
      %v2354 = vadd.f32 0.0, %v2353
      %v2355 = vpop.f32.mrf.mxu0
      %v2356 = vpop.f32.mrf.mxu0
      %v2357 = vadd.f32 0.0, %v2356
      %v2358 = vpop.f32.mrf.mxu0
      %2359 = vmatprep.mubr.bf16.mxu0 0
      %2360 = vmatmul.mubr.bf16.gmra.mxu0 %v1023
      %v2361 = vpop.f32.mrf.mxu0
      %v2362 = vadd.f32 0.0, %v2361
      %v2363 = vpop.f32.mrf.mxu0
      %v2364 = vpop.f32.mrf.mxu0
      %v2365 = vadd.f32 0.0, %v2364
      %v2366 = vpop.f32.mrf.mxu0
      %2367 = vmatprep.mubr.bf16.mxu0 0
      %2368 = vmatmul.mubr.bf16.gmra.mxu0 %v1026
      %v2369 = vpop.f32.mrf.mxu0
      %v2370 = vadd.f32 0.0, %v2369
      %v2371 = vpop.f32.mrf.mxu0
      %v2372 = vpop.f32.mrf.mxu0
      %v2373 = vadd.f32 0.0, %v2372
      %v2374 = vpop.f32.mrf.mxu0
      %2375 = vmatprep.mubr.bf16.mxu0 0
      %2376 = vmatmul.mubr.bf16.gmra.mxu0 %v1029
      %v2377 = vpop.f32.mrf.mxu0
      %v2378 = vadd.f32 0.0, %v2377
      %v2379 = vpop.f32.mrf.mxu0
      %v2380 = vpop.f32.mrf.mxu0
      %v2381 = vadd.f32 0.0, %v2380
      %v2382 = vpop.f32.mrf.mxu0
      %2383 = vmatprep.mubr.bf16.mxu0 0
      %2384 = vmatmul.mubr.bf16.gmra.mxu0 %v1032
      %v2385 = vpop.f32.mrf.mxu0
      %v2386 = vadd.f32 0.0, %v2385
      %v2387 = vpop.f32.mrf.mxu0
      %v2388 = vpop.f32.mrf.mxu0
      %v2389 = vadd.f32 0.0, %v2388
      %v2390 = vpop.f32.mrf.mxu0
      %2391 = vmatprep.mubr.bf16.mxu0 0
      %2392 = vmatmul.mubr.bf16.gmra.mxu0 %v1035
      %v2393 = vpop.f32.mrf.mxu0
      %v2394 = vadd.f32 0.0, %v2393
      %v2395 = vpop.f32.mrf.mxu0
      %v2396 = vpop.f32.mrf.mxu0
      %v2397 = vadd.f32 0.0, %v2396
      %v2398 = vpop.f32.mrf.mxu0
      %2399 = vmatprep.mubr.bf16.mxu0 0
      %2400 = vmatmul.mubr.bf16.gmra.mxu0 %v1038
      %v2401 = vpop.f32.mrf.mxu0
      %v2402 = vadd.f32 0.0, %v2401
      %v2403 = vpop.f32.mrf.mxu0
      %v2404 = vpop.f32.mrf.mxu0
      %v2405 = vadd.f32 0.0, %v2404
      %v2406 = vpop.f32.mrf.mxu0
      %2407 = vmatprep.mubr.bf16.mxu0 0
      %2408 = vmatmul.mubr.bf16.gmra.mxu0 %v1041
      %v2409 = vpop.f32.mrf.mxu0
      %v2410 = vadd.f32 0.0, %v2409
      %v2411 = vpop.f32.mrf.mxu0
      %v2412 = vpop.f32.mrf.mxu0
      %v2413 = vadd.f32 0.0, %v2412
      %v2414 = vpop.f32.mrf.mxu0
      %2415 = vmatprep.mubr.bf16.mxu0 0
      %2416 = vmatmul.mubr.bf16.gmra.mxu0 %v1044
      %v2417 = vpop.f32.mrf.mxu0
      %v2418 = vadd.f32 0.0, %v2417
      %v2419 = vpop.f32.mrf.mxu0
      %v2420 = vpop.f32.mrf.mxu0
      %v2421 = vadd.f32 0.0, %v2420
      %v2422 = vpop.f32.mrf.mxu0
      %2423 = vmatprep.mubr.bf16.mxu0 0
      %2424 = vmatmul.mubr.bf16.gmra.mxu0 %v1047
      %v2425 = vpop.f32.mrf.mxu0
      %v2426 = vadd.f32 0.0, %v2425
      %v2427 = vpop.f32.mrf.mxu0
      %v2428 = vpop.f32.mrf.mxu0
      %v2429 = vadd.f32 0.0, %v2428
      %v2430 = vpop.f32.mrf.mxu0
      %2431 = vmatprep.mubr.bf16.mxu0 0
      %2432 = vmatmul.mubr.bf16.gmra.mxu0 %v1050
      %v2433 = vpop.f32.mrf.mxu0
      %v2434 = vadd.f32 0.0, %v2433
      %v2435 = vpop.f32.mrf.mxu0
      %v2436 = vpop.f32.mrf.mxu0
      %v2437 = vadd.f32 0.0, %v2436
      %v2438 = vpop.f32.mrf.mxu0
      %2439 = vmatprep.mubr.bf16.mxu0 0
      %2440 = vmatmul.mubr.bf16.gmra.mxu0 %v1053
      %v2441 = vpop.f32.mrf.mxu0
      %v2442 = vadd.f32 0.0, %v2441
      %v2443 = vpop.f32.mrf.mxu0
      %v2444 = vpop.f32.mrf.mxu0
      %v2445 = vadd.f32 0.0, %v2444
      %v2446 = vpop.f32.mrf.mxu0
      %2447 = vmatprep.mubr.bf16.mxu0 0
      %2448 = vmatmul.mubr.bf16.gmra.mxu0 %v1652
      %v2449 = vpop.f32.mrf.mxu0
      %v2450 = vadd.f32 0.0, %v2449
      %v2451 = vpop.f32.mrf.mxu0
      %v2452 = vpop.f32.mrf.mxu0
      %v2453 = vadd.f32 0.0, %v2452
      %v2454 = vpop.f32.mrf.mxu0
      %2455 = vmatprep.mubr.bf16.mxu0 0
      %2456 = vmatmul.mubr.bf16.gmra.mxu0 %v2298
      %v2457 = vpop.f32.mrf.mxu0
      %v2458 = vadd.f32 0.0, %v2457
      %v2459 = vpop.f32.mrf.mxu0
      %v2460 = vpop.f32.mrf.mxu0
      %v2461 = vadd.f32 0.0, %v2460
      %v2462 = vpop.f32.mrf.mxu0
      %2463 = vdwg.mxu0
      %v2464 = vadd.f32 %v2258, %v2338
      %v2465 = vadd.f32 %v2259, %v2341
      %v2466 = vadd.f32 %v2260, %v2346
      %v2467 = vadd.f32 %v2261, %v2349
      %v2468 = vadd.f32 %v2262, %v2354
      %v2469 = vadd.f32 %v2263, %v2357
      %v2470 = vadd.f32 %v2264, %v2362
      %v2471 = vadd.f32 %v2265, %v2365
      %v2472 = vadd.f32 %v2266, %v2370
      %v2473 = vadd.f32 %v2267, %v2373
      %v2474 = vadd.f32 %v2268, %v2378
      %v2475 = vadd.f32 %v2269, %v2381
      %v2476 = vadd.f32 %v2270, %v2386
      %v2477 = vadd.f32 %v2271, %v2389
      %v2478 = vadd.f32 %v2272, %v2394
      %v2479 = vadd.f32 %v2273, %v2397
      %v2480 = vadd.f32 %v2274, %v2402
      %v2481 = vadd.f32 %v2275, %v2405
      %v2482 = vadd.f32 %v2276, %v2410
      %v2483 = vadd.f32 %v2277, %v2413
      %v2484 = vadd.f32 %v2278, %v2418
      %v2485 = vadd.f32 %v2279, %v2421
      %v2486 = vadd.f32 %v2280, %v2426
      %v2487 = vadd.f32 %v2281, %v2429
      %v2488 = vadd.f32 %v2282, %v2434
      %v2489 = vadd.f32 %v2283, %v2437
      %v2490 = vadd.f32 %v2284, %v2442
      %v2491 = vadd.f32 %v2285, %v2445
      %v2492 = vadd.f32 %v2286, %v2450
      %v2493 = vadd.f32 %v2287, %v2453
      %v2494 = vadd.f32 %v2288, %v2458
      %v2495 = vadd.f32 %v2289, %v2461
      %v2497 = vshrl.u32 %v272, 16
      %v2499 = vrot.slane %v2497, 4
      %v2500 = vshll.u32 %v272, 16
      %v2502 = vrot.slane %v2500, 5
      %v2503 = vor.u32 %v2499, %v2502
      %v2504 = vrot.slane %v2503, 4
      %v2506 = vshll.u32 %v273, 16
      %v2508 = vrot.slane %v2506, 5
      %v2509 = vsel %vm278, %v2504, %v2508
      %v2510 = vshrl.u32 %v273, 16
      %v2512 = vrot.slane %v2510, 4
      %v2513 = vor.u32 %v2512, %v2508
      %v2514 = vrot.slane %v2513, 4
      %v2516 = vshll.u32 %v274, 16
      %v2518 = vrot.slane %v2516, 5
      %v2519 = vsel %vm278, %v2514, %v2518
      %s2520 = scalar_lea.vmem %s1, 14
      %v2521 = vld [vmem:[%s2520] sm:$0x3]
      %v2522 = vunpack.c.l.b16 %v2509
      %v2523 = vunpack.c.l.b16 %v2519
      %v2524 = vpack.c.b16 %v2523, %v2522
      %v2526 = vsel %vm713, %v2524, 0
      %v2529 = vsel %vm762, %v2521, 0
      %2531 = vmatprep.subr.bf16.mxu0 0
      %2532 = vmatpush1.bf16.msra.mxu0 0
      %2533 = vmatprep.subr.bf16.mxu0 0
      %2534 = vmatpush1.bf16.msra.mxu0 0
      %2535 = vmatprep.subr.bf16.mxu0 0
      %2536 = vmatpush1.bf16.msra.mxu0 0
      %2537 = vmatprep.subr.bf16.mxu0 0
      %2538 = vmatpush1.bf16.msra.mxu0 0
      %2539 = vmatprep.subr.bf16.mxu0 0
      %2540 = vmatpush1.bf16.msra.mxu0 0
      %2541 = vmatprep.subr.bf16.mxu0 0
      %2542 = vmatpush1.bf16.msra.mxu0 0
      %2543 = vmatprep.subr.bf16.mxu0 0
      %2544 = vmatpush1.bf16.msra.mxu0 0
      %2545 = vmatprep.subr.bf16.mxu0 0
      %2546 = vmatpush1.bf16.msra.mxu0 %v2529
      %2547 = vmatprep.subr.bf16.mxu0 0
      %2548 = vmatpush2.bf16.msra.mxu0 0
      %2549 = vmatprep.subr.bf16.mxu0 0
      %2550 = vmatpush2.bf16.msra.mxu0 0
      %2551 = vmatprep.subr.bf16.mxu0 0
      %2552 = vmatpush2.bf16.msra.mxu0 0
      %2553 = vmatprep.subr.bf16.mxu0 0
      %2554 = vmatpush2.bf16.msra.mxu0 0
      %2555 = vmatprep.subr.bf16.mxu0 0
      %2556 = vmatpush2.bf16.msra.mxu0 0
      %2557 = vmatprep.subr.bf16.mxu0 0
      %2558 = vmatpush2.bf16.msra.mxu0 0
      %2559 = vmatprep.subr.bf16.mxu0 0
      %2560 = vmatpush2.bf16.msra.mxu0 0
      %2561 = vmatprep.subr.bf16.mxu0 0
      %2562 = vmatpush2.bf16.msra.mxu0 0
      %2563 = vmatprep.mubr.bf16.mxu0 0
      %2564 = vmatmul.mubr.bf16.gmra.mxu0 %v721
      %v2565 = vpop.f32.mrf.mxu0
      %v2566 = vadd.f32 0.0, %v2565
      %v2567 = vpop.f32.mrf.mxu0
      %v2568 = vpop.f32.mrf.mxu0
      %v2569 = vadd.f32 0.0, %v2568
      %v2570 = vpop.f32.mrf.mxu0
      %2571 = vmatprep.mubr.bf16.mxu0 0
      %2572 = vmatmul.mubr.bf16.gmra.mxu0 %v724
      %v2573 = vpop.f32.mrf.mxu0
      %v2574 = vadd.f32 0.0, %v2573
      %v2575 = vpop.f32.mrf.mxu0
      %v2576 = vpop.f32.mrf.mxu0
      %v2577 = vadd.f32 0.0, %v2576
      %v2578 = vpop.f32.mrf.mxu0
      %2579 = vmatprep.mubr.bf16.mxu0 0
      %2580 = vmatmul.mubr.bf16.gmra.mxu0 %v727
      %v2581 = vpop.f32.mrf.mxu0
      %v2582 = vadd.f32 0.0, %v2581
      %v2583 = vpop.f32.mrf.mxu0
      %v2584 = vpop.f32.mrf.mxu0
      %v2585 = vadd.f32 0.0, %v2584
      %v2586 = vpop.f32.mrf.mxu0
      %2587 = vmatprep.mubr.bf16.mxu0 0
      %2588 = vmatmul.mubr.bf16.gmra.mxu0 %v730
      %v2589 = vpop.f32.mrf.mxu0
      %v2590 = vadd.f32 0.0, %v2589
      %v2591 = vpop.f32.mrf.mxu0
      %v2592 = vpop.f32.mrf.mxu0
      %v2593 = vadd.f32 0.0, %v2592
      %v2594 = vpop.f32.mrf.mxu0
      %2595 = vmatprep.mubr.bf16.mxu0 0
      %2596 = vmatmul.mubr.bf16.gmra.mxu0 %v733
      %v2597 = vpop.f32.mrf.mxu0
      %v2598 = vadd.f32 0.0, %v2597
      %v2599 = vpop.f32.mrf.mxu0
      %v2600 = vpop.f32.mrf.mxu0
      %v2601 = vadd.f32 0.0, %v2600
      %v2602 = vpop.f32.mrf.mxu0
      %2603 = vmatprep.mubr.bf16.mxu0 0
      %2604 = vmatmul.mubr.bf16.gmra.mxu0 %v736
      %v2605 = vpop.f32.mrf.mxu0
      %v2606 = vadd.f32 0.0, %v2605
      %v2607 = vpop.f32.mrf.mxu0
      %v2608 = vpop.f32.mrf.mxu0
      %v2609 = vadd.f32 0.0, %v2608
      %v2610 = vpop.f32.mrf.mxu0
      %2611 = vmatprep.mubr.bf16.mxu0 0
      %2612 = vmatmul.mubr.bf16.gmra.mxu0 %v739
      %v2613 = vpop.f32.mrf.mxu0
      %v2614 = vadd.f32 0.0, %v2613
      %v2615 = vpop.f32.mrf.mxu0
      %v2616 = vpop.f32.mrf.mxu0
      %v2617 = vadd.f32 0.0, %v2616
      %v2618 = vpop.f32.mrf.mxu0
      %2619 = vmatprep.mubr.bf16.mxu0 0
      %2620 = vmatmul.mubr.bf16.gmra.mxu0 %v742
      %v2621 = vpop.f32.mrf.mxu0
      %v2622 = vadd.f32 0.0, %v2621
      %v2623 = vpop.f32.mrf.mxu0
      %v2624 = vpop.f32.mrf.mxu0
      %v2625 = vadd.f32 0.0, %v2624
      %v2626 = vpop.f32.mrf.mxu0
      %2627 = vmatprep.mubr.bf16.mxu0 0
      %2628 = vmatmul.mubr.bf16.gmra.mxu0 %v745
      %v2629 = vpop.f32.mrf.mxu0
      %v2630 = vadd.f32 0.0, %v2629
      %v2631 = vpop.f32.mrf.mxu0
      %v2632 = vpop.f32.mrf.mxu0
      %v2633 = vadd.f32 0.0, %v2632
      %v2634 = vpop.f32.mrf.mxu0
      %2635 = vmatprep.mubr.bf16.mxu0 0
      %2636 = vmatmul.mubr.bf16.gmra.mxu0 %v748
      %v2637 = vpop.f32.mrf.mxu0
      %v2638 = vadd.f32 0.0, %v2637
      %v2639 = vpop.f32.mrf.mxu0
      %v2640 = vpop.f32.mrf.mxu0
      %v2641 = vadd.f32 0.0, %v2640
      %v2642 = vpop.f32.mrf.mxu0
      %2643 = vmatprep.mubr.bf16.mxu0 0
      %2644 = vmatmul.mubr.bf16.gmra.mxu0 %v751
      %v2645 = vpop.f32.mrf.mxu0
      %v2646 = vadd.f32 0.0, %v2645
      %v2647 = vpop.f32.mrf.mxu0
      %v2648 = vpop.f32.mrf.mxu0
      %v2649 = vadd.f32 0.0, %v2648
      %v2650 = vpop.f32.mrf.mxu0
      %2651 = vmatprep.mubr.bf16.mxu0 0
      %2652 = vmatmul.mubr.bf16.gmra.mxu0 %v754
      %v2653 = vpop.f32.mrf.mxu0
      %v2654 = vadd.f32 0.0, %v2653
      %v2655 = vpop.f32.mrf.mxu0
      %v2656 = vpop.f32.mrf.mxu0
      %v2657 = vadd.f32 0.0, %v2656
      %v2658 = vpop.f32.mrf.mxu0
      %2659 = vmatprep.mubr.bf16.mxu0 0
      %2660 = vmatmul.mubr.bf16.gmra.mxu0 %v757
      %v2661 = vpop.f32.mrf.mxu0
      %v2662 = vadd.f32 0.0, %v2661
      %v2663 = vpop.f32.mrf.mxu0
      %v2664 = vpop.f32.mrf.mxu0
      %v2665 = vadd.f32 0.0, %v2664
      %v2666 = vpop.f32.mrf.mxu0
      %2667 = vmatprep.mubr.bf16.mxu0 0
      %2668 = vmatmul.mubr.bf16.gmra.mxu0 %v760
      %v2669 = vpop.f32.mrf.mxu0
      %v2670 = vadd.f32 0.0, %v2669
      %v2671 = vpop.f32.mrf.mxu0
      %v2672 = vpop.f32.mrf.mxu0
      %v2673 = vadd.f32 0.0, %v2672
      %v2674 = vpop.f32.mrf.mxu0
      %2675 = vmatprep.mubr.bf16.mxu0 0
      %2676 = vmatmul.mubr.bf16.gmra.mxu0 %v1880
      %v2677 = vpop.f32.mrf.mxu0
      %v2678 = vadd.f32 0.0, %v2677
      %v2679 = vpop.f32.mrf.mxu0
      %v2680 = vpop.f32.mrf.mxu0
      %v2681 = vadd.f32 0.0, %v2680
      %v2682 = vpop.f32.mrf.mxu0
      %2683 = vmatprep.mubr.bf16.mxu0 0
      %2684 = vmatmul.mubr.bf16.gmra.mxu0 %v2526
      %v2685 = vpop.f32.mrf.mxu0
      %v2686 = vadd.f32 0.0, %v2685
      %v2687 = vpop.f32.mrf.mxu0
      %v2688 = vpop.f32.mrf.mxu0
      %v2689 = vadd.f32 0.0, %v2688
      %v2690 = vpop.f32.mrf.mxu0
      %2691 = vdwg.mxu0
      %v2692 = vadd.f32 %v2464, %v2566
      %v2693 = vadd.f32 %v2465, %v2569
      %v2694 = vadd.f32 %v2466, %v2574
      %v2695 = vadd.f32 %v2467, %v2577
      %v2696 = vadd.f32 %v2468, %v2582
      %v2697 = vadd.f32 %v2469, %v2585
      %v2698 = vadd.f32 %v2470, %v2590
      %v2699 = vadd.f32 %v2471, %v2593
      %v2700 = vadd.f32 %v2472, %v2598
      %v2701 = vadd.f32 %v2473, %v2601
      %v2702 = vadd.f32 %v2474, %v2606
      %v2703 = vadd.f32 %v2475, %v2609
      %v2704 = vadd.f32 %v2476, %v2614
      %v2705 = vadd.f32 %v2477, %v2617
      %v2706 = vadd.f32 %v2478, %v2622
      %v2707 = vadd.f32 %v2479, %v2625
      %v2708 = vadd.f32 %v2480, %v2630
      %v2709 = vadd.f32 %v2481, %v2633
      %v2710 = vadd.f32 %v2482, %v2638
      %v2711 = vadd.f32 %v2483, %v2641
      %v2712 = vadd.f32 %v2484, %v2646
      %v2713 = vadd.f32 %v2485, %v2649
      %v2714 = vadd.f32 %v2486, %v2654
      %v2715 = vadd.f32 %v2487, %v2657
      %v2716 = vadd.f32 %v2488, %v2662
      %v2717 = vadd.f32 %v2489, %v2665
      %v2718 = vadd.f32 %v2490, %v2670
      %v2719 = vadd.f32 %v2491, %v2673
      %v2720 = vadd.f32 %v2492, %v2678
      %v2721 = vadd.f32 %v2493, %v2681
      %v2722 = vadd.f32 %v2494, %v2686
      %v2723 = vadd.f32 %v2495, %v2689
      %v2725 = vrot.slane %v272, 5
      %v2726 = vrot.slane %v2725, 4
      %v2727 = vrot.slane %v273, 5
      %v2728 = vsel %vm1237, %v2726, %v2727
      %v2729 = vrot.slane %v2727, 4
      %v2730 = vrot.slane %v274, 5
      %v2731 = vsel %vm1237, %v2729, %v2730
      %s2732 = scalar_lea.vmem %s1, 16
      %v2733 = vld [vmem:[%s2732] sm:$0x3]
      %v2734 = vunpack.c.l.b16 %v2728
      %v2735 = vunpack.c.l.b16 %v2731
      %v2736 = vpack.c.b16 %v2735, %v2734
      %v2738 = vsel %vm713, %v2736, 0
      %v2741 = vsel %vm762, %v2733, 0
      %2743 = vmatprep.subr.bf16.mxu0 0
      %2744 = vmatpush1.bf16.msra.mxu0 0
      %2745 = vmatprep.subr.bf16.mxu0 0
      %2746 = vmatpush1.bf16.msra.mxu0 0
      %2747 = vmatprep.subr.bf16.mxu0 0
      %2748 = vmatpush1.bf16.msra.mxu0 0
      %2749 = vmatprep.subr.bf16.mxu0 0
      %2750 = vmatpush1.bf16.msra.mxu0 0
      %2751 = vmatprep.subr.bf16.mxu0 0
      %2752 = vmatpush1.bf16.msra.mxu0 0
      %2753 = vmatprep.subr.bf16.mxu0 0
      %2754 = vmatpush1.bf16.msra.mxu0 0
      %2755 = vmatprep.subr.bf16.mxu0 0
      %2756 = vmatpush1.bf16.msra.mxu0 0
      %2757 = vmatprep.subr.bf16.mxu0 0
      %2758 = vmatpush1.bf16.msra.mxu0 %v2741
      %2759 = vmatprep.subr.bf16.mxu0 0
      %2760 = vmatpush2.bf16.msra.mxu0 0
      %2761 = vmatprep.subr.bf16.mxu0 0
      %2762 = vmatpush2.bf16.msra.mxu0 0
      %2763 = vmatprep.subr.bf16.mxu0 0
      %2764 = vmatpush2.bf16.msra.mxu0 0
      %2765 = vmatprep.subr.bf16.mxu0 0
      %2766 = vmatpush2.bf16.msra.mxu0 0
      %2767 = vmatprep.subr.bf16.mxu0 0
      %2768 = vmatpush2.bf16.msra.mxu0 0
      %2769 = vmatprep.subr.bf16.mxu0 0
      %2770 = vmatpush2.bf16.msra.mxu0 0
      %2771 = vmatprep.subr.bf16.mxu0 0
      %2772 = vmatpush2.bf16.msra.mxu0 0
      %2773 = vmatprep.subr.bf16.mxu0 0
      %2774 = vmatpush2.bf16.msra.mxu0 0
      %2775 = vmatprep.mubr.bf16.mxu0 0
      %2776 = vmatmul.mubr.bf16.gmra.mxu0 %v1407
      %v2777 = vpop.f32.mrf.mxu0
      %v2778 = vadd.f32 0.0, %v2777
      %v2779 = vpop.f32.mrf.mxu0
      %v2780 = vpop.f32.mrf.mxu0
      %v2781 = vadd.f32 0.0, %v2780
      %v2782 = vpop.f32.mrf.mxu0
      %2783 = vmatprep.mubr.bf16.mxu0 0
      %2784 = vmatmul.mubr.bf16.gmra.mxu0 %v1410
      %v2785 = vpop.f32.mrf.mxu0
      %v2786 = vadd.f32 0.0, %v2785
      %v2787 = vpop.f32.mrf.mxu0
      %v2788 = vpop.f32.mrf.mxu0
      %v2789 = vadd.f32 0.0, %v2788
      %v2790 = vpop.f32.mrf.mxu0
      %2791 = vmatprep.mubr.bf16.mxu0 0
      %2792 = vmatmul.mubr.bf16.gmra.mxu0 %v1413
      %v2793 = vpop.f32.mrf.mxu0
      %v2794 = vadd.f32 0.0, %v2793
      %v2795 = vpop.f32.mrf.mxu0
      %v2796 = vpop.f32.mrf.mxu0
      %v2797 = vadd.f32 0.0, %v2796
      %v2798 = vpop.f32.mrf.mxu0
      %2799 = vmatprep.mubr.bf16.mxu0 0
      %2800 = vmatmul.mubr.bf16.gmra.mxu0 %v1416
      %v2801 = vpop.f32.mrf.mxu0
      %v2802 = vadd.f32 0.0, %v2801
      %v2803 = vpop.f32.mrf.mxu0
      %v2804 = vpop.f32.mrf.mxu0
      %v2805 = vadd.f32 0.0, %v2804
      %v2806 = vpop.f32.mrf.mxu0
      %2807 = vmatprep.mubr.bf16.mxu0 0
      %2808 = vmatmul.mubr.bf16.gmra.mxu0 %v1419
      %v2809 = vpop.f32.mrf.mxu0
      %v2810 = vadd.f32 0.0, %v2809
      %v2811 = vpop.f32.mrf.mxu0
      %v2812 = vpop.f32.mrf.mxu0
      %v2813 = vadd.f32 0.0, %v2812
      %v2814 = vpop.f32.mrf.mxu0
      %2815 = vmatprep.mubr.bf16.mxu0 0
      %2816 = vmatmul.mubr.bf16.gmra.mxu0 %v1422
      %v2817 = vpop.f32.mrf.mxu0
      %v2818 = vadd.f32 0.0, %v2817
      %v2819 = vpop.f32.mrf.mxu0
      %v2820 = vpop.f32.mrf.mxu0
      %v2821 = vadd.f32 0.0, %v2820
      %v2822 = vpop.f32.mrf.mxu0
      %2823 = vmatprep.mubr.bf16.mxu0 0
      %2824 = vmatmul.mubr.bf16.gmra.mxu0 %v1425
      %v2825 = vpop.f32.mrf.mxu0
      %v2826 = vadd.f32 0.0, %v2825
      %v2827 = vpop.f32.mrf.mxu0
      %v2828 = vpop.f32.mrf.mxu0
      %v2829 = vadd.f32 0.0, %v2828
      %v2830 = vpop.f32.mrf.mxu0
      %2831 = vmatprep.mubr.bf16.mxu0 0
      %2832 = vmatmul.mubr.bf16.gmra.mxu0 %v1428
      %v2833 = vpop.f32.mrf.mxu0
      %v2834 = vadd.f32 0.0, %v2833
      %v2835 = vpop.f32.mrf.mxu0
      %v2836 = vpop.f32.mrf.mxu0
      %v2837 = vadd.f32 0.0, %v2836
      %v2838 = vpop.f32.mrf.mxu0
      %2839 = vmatprep.mubr.bf16.mxu0 0
      %2840 = vmatmul.mubr.bf16.gmra.mxu0 %v1431
      %v2841 = vpop.f32.mrf.mxu0
      %v2842 = vadd.f32 0.0, %v2841
      %v2843 = vpop.f32.mrf.mxu0
      %v2844 = vpop.f32.mrf.mxu0
      %v2845 = vadd.f32 0.0, %v2844
      %v2846 = vpop.f32.mrf.mxu0
      %2847 = vmatprep.mubr.bf16.mxu0 0
      %2848 = vmatmul.mubr.bf16.gmra.mxu0 %v1434
      %v2849 = vpop.f32.mrf.mxu0
      %v2850 = vadd.f32 0.0, %v2849
      %v2851 = vpop.f32.mrf.mxu0
      %v2852 = vpop.f32.mrf.mxu0
      %v2853 = vadd.f32 0.0, %v2852
      %v2854 = vpop.f32.mrf.mxu0
      %2855 = vmatprep.mubr.bf16.mxu0 0
      %2856 = vmatmul.mubr.bf16.gmra.mxu0 %v1437
      %v2857 = vpop.f32.mrf.mxu0
      %v2858 = vadd.f32 0.0, %v2857
      %v2859 = vpop.f32.mrf.mxu0
      %v2860 = vpop.f32.mrf.mxu0
      %v2861 = vadd.f32 0.0, %v2860
      %v2862 = vpop.f32.mrf.mxu0
      %2863 = vmatprep.mubr.bf16.mxu0 0
      %2864 = vmatmul.mubr.bf16.gmra.mxu0 %v1440
      %v2865 = vpop.f32.mrf.mxu0
      %v2866 = vadd.f32 0.0, %v2865
      %v2867 = vpop.f32.mrf.mxu0
      %v2868 = vpop.f32.mrf.mxu0
      %v2869 = vadd.f32 0.0, %v2868
      %v2870 = vpop.f32.mrf.mxu0
      %2871 = vmatprep.mubr.bf16.mxu0 0
      %2872 = vmatmul.mubr.bf16.gmra.mxu0 %v1443
      %v2873 = vpop.f32.mrf.mxu0
      %v2874 = vadd.f32 0.0, %v2873
      %v2875 = vpop.f32.mrf.mxu0
      %v2876 = vpop.f32.mrf.mxu0
      %v2877 = vadd.f32 0.0, %v2876
      %v2878 = vpop.f32.mrf.mxu0
      %2879 = vmatprep.mubr.bf16.mxu0 0
      %2880 = vmatmul.mubr.bf16.gmra.mxu0 %v1446
      %v2881 = vpop.f32.mrf.mxu0
      %v2882 = vadd.f32 0.0, %v2881
      %v2883 = vpop.f32.mrf.mxu0
      %v2884 = vpop.f32.mrf.mxu0
      %v2885 = vadd.f32 0.0, %v2884
      %v2886 = vpop.f32.mrf.mxu0
      %2887 = vmatprep.mubr.bf16.mxu0 0
      %2888 = vmatmul.mubr.bf16.gmra.mxu0 %v2092
      %v2889 = vpop.f32.mrf.mxu0
      %v2890 = vadd.f32 0.0, %v2889
      %v2891 = vpop.f32.mrf.mxu0
      %v2892 = vpop.f32.mrf.mxu0
      %v2893 = vadd.f32 0.0, %v2892
      %v2894 = vpop.f32.mrf.mxu0
      %2895 = vmatprep.mubr.bf16.mxu0 0
      %2896 = vmatmul.mubr.bf16.gmra.mxu0 %v2738
      %v2897 = vpop.f32.mrf.mxu0
      %v2898 = vadd.f32 0.0, %v2897
      %v2899 = vpop.f32.mrf.mxu0
      %v2900 = vpop.f32.mrf.mxu0
      %v2901 = vadd.f32 0.0, %v2900
      %v2902 = vpop.f32.mrf.mxu0
      %2903 = vdwg.mxu0
      %v2904 = vadd.f32 %v2692, %v2778
      %v2905 = vadd.f32 %v2693, %v2781
      %v2906 = vadd.f32 %v2694, %v2786
      %v2907 = vadd.f32 %v2695, %v2789
      %v2908 = vadd.f32 %v2696, %v2794
      %v2909 = vadd.f32 %v2697, %v2797
      %v2910 = vadd.f32 %v2698, %v2802
      %v2911 = vadd.f32 %v2699, %v2805
      %v2912 = vadd.f32 %v2700, %v2810
      %v2913 = vadd.f32 %v2701, %v2813
      %v2914 = vadd.f32 %v2702, %v2818
      %v2915 = vadd.f32 %v2703, %v2821
      %v2916 = vadd.f32 %v2704, %v2826
      %v2917 = vadd.f32 %v2705, %v2829
      %v2918 = vadd.f32 %v2706, %v2834
      %v2919 = vadd.f32 %v2707, %v2837
      %v2920 = vadd.f32 %v2708, %v2842
      %v2921 = vadd.f32 %v2709, %v2845
      %v2922 = vadd.f32 %v2710, %v2850
      %v2923 = vadd.f32 %v2711, %v2853
      %v2924 = vadd.f32 %v2712, %v2858
      %v2925 = vadd.f32 %v2713, %v2861
      %v2926 = vadd.f32 %v2714, %v2866
      %v2927 = vadd.f32 %v2715, %v2869
      %v2928 = vadd.f32 %v2716, %v2874
      %v2929 = vadd.f32 %v2717, %v2877
      %v2930 = vadd.f32 %v2718, %v2882
      %v2931 = vadd.f32 %v2719, %v2885
      %v2932 = vadd.f32 %v2720, %v2890
      %v2933 = vadd.f32 %v2721, %v2893
      %v2934 = vadd.f32 %v2722, %v2898
      %v2935 = vadd.f32 %v2723, %v2901
      %v2936 = vld [vmem:[%s2] sm:$0x1]
      %v2938 = vlaneseq
      %v2939 = vshrl.u32 %v2938, 7
      %v2940 = vsub.s32 0, %v2939
      %v2941 = vrot.slane %v2936, %v2940
      %v2943 = vmul.f32 %v2904, %v2941
      %v2944 = vmul.f32 %v2905, %v2941
      %v2945 = vmul.f32 %v2906, %v2941
      %v2946 = vmul.f32 %v2907, %v2941
      %v2947 = vmul.f32 %v2908, %v2941
      %v2948 = vmul.f32 %v2909, %v2941
      %v2949 = vmul.f32 %v2910, %v2941
      %v2950 = vmul.f32 %v2911, %v2941
      %v2951 = vmul.f32 %v2912, %v2941
      %v2952 = vmul.f32 %v2913, %v2941
      %v2953 = vmul.f32 %v2914, %v2941
      %v2954 = vmul.f32 %v2915, %v2941
      %v2955 = vmul.f32 %v2916, %v2941
      %v2956 = vmul.f32 %v2917, %v2941
      %v2957 = vmul.f32 %v2918, %v2941
      %v2958 = vmul.f32 %v2919, %v2941
      %v2959 = vmul.f32 %v2920, %v2941
      %v2960 = vmul.f32 %v2921, %v2941
      %v2961 = vmul.f32 %v2922, %v2941
      %v2962 = vmul.f32 %v2923, %v2941
      %v2963 = vmul.f32 %v2924, %v2941
      %v2964 = vmul.f32 %v2925, %v2941
      %v2965 = vmul.f32 %v2926, %v2941
      %v2966 = vmul.f32 %v2927, %v2941
      %v2967 = vmul.f32 %v2928, %v2941
      %v2968 = vmul.f32 %v2929, %v2941
      %v2969 = vmul.f32 %v2930, %v2941
      %v2970 = vmul.f32 %v2931, %v2941
      %v2971 = vmul.f32 %v2932, %v2941
      %v2972 = vmul.f32 %v2933, %v2941
      %v2973 = vmul.f32 %v2934, %v2941
      %v2974 = vmul.f32 %v2935, %v2941
      %v2975 = vld [vmem:[%s3] sm:$0x1]
      %v2977 = vlaneseq
      %v2978 = vshrl.u32 %v2977, 7
      %v2979 = vsub.s32 0, %v2978
      %v2980 = vrot.slane %v2975, %v2979
      %v2982 = vadd.f32 %v2943, %v2980
      %v2983 = vadd.f32 %v2944, %v2980
      %v2984 = vadd.f32 %v2945, %v2980
      %v2985 = vadd.f32 %v2946, %v2980
      %v2986 = vadd.f32 %v2947, %v2980
      %v2987 = vadd.f32 %v2948, %v2980
      %v2988 = vadd.f32 %v2949, %v2980
      %v2989 = vadd.f32 %v2950, %v2980
      %v2990 = vadd.f32 %v2951, %v2980
      %v2991 = vadd.f32 %v2952, %v2980
      %v2992 = vadd.f32 %v2953, %v2980
      %v2993 = vadd.f32 %v2954, %v2980
      %v2994 = vadd.f32 %v2955, %v2980
      %v2995 = vadd.f32 %v2956, %v2980
      %v2996 = vadd.f32 %v2957, %v2980
      %v2997 = vadd.f32 %v2958, %v2980
      %v2998 = vadd.f32 %v2959, %v2980
      %v2999 = vadd.f32 %v2960, %v2980
      %v3000 = vadd.f32 %v2961, %v2980
      %v3001 = vadd.f32 %v2962, %v2980
      %v3002 = vadd.f32 %v2963, %v2980
      %v3003 = vadd.f32 %v2964, %v2980
      %v3004 = vadd.f32 %v2965, %v2980
      %v3005 = vadd.f32 %v2966, %v2980
      %v3006 = vadd.f32 %v2967, %v2980
      %v3007 = vadd.f32 %v2968, %v2980
      %v3008 = vadd.f32 %v2969, %v2980
      %v3009 = vadd.f32 %v2970, %v2980
      %v3010 = vadd.f32 %v2971, %v2980
      %v3011 = vadd.f32 %v2972, %v2980
      %v3012 = vadd.f32 %v2973, %v2980
      %v3013 = vadd.f32 %v2974, %v2980
      %vm3014 = vcmp.gt.f32.partialorder %v2982, 0.0
      %vm3015 = vcmp.gt.f32.partialorder %v2983, 0.0
      %vm3016 = vcmp.gt.f32.partialorder %v2984, 0.0
      %vm3017 = vcmp.gt.f32.partialorder %v2985, 0.0
      %vm3018 = vcmp.gt.f32.partialorder %v2986, 0.0
      %vm3019 = vcmp.gt.f32.partialorder %v2987, 0.0
      %vm3020 = vcmp.gt.f32.partialorder %v2988, 0.0
      %vm3021 = vcmp.gt.f32.partialorder %v2989, 0.0
      %vm3022 = vcmp.gt.f32.partialorder %v2990, 0.0
      %vm3023 = vcmp.gt.f32.partialorder %v2991, 0.0
      %vm3024 = vcmp.gt.f32.partialorder %v2992, 0.0
      %vm3025 = vcmp.gt.f32.partialorder %v2993, 0.0
      %vm3026 = vcmp.gt.f32.partialorder %v2994, 0.0
      %vm3027 = vcmp.gt.f32.partialorder %v2995, 0.0
      %vm3028 = vcmp.gt.f32.partialorder %v2996, 0.0
      %vm3029 = vcmp.gt.f32.partialorder %v2997, 0.0
      %vm3030 = vcmp.gt.f32.partialorder %v2998, 0.0
      %vm3031 = vcmp.gt.f32.partialorder %v2999, 0.0
      %vm3032 = vcmp.gt.f32.partialorder %v3000, 0.0
      %vm3033 = vcmp.gt.f32.partialorder %v3001, 0.0
      %vm3034 = vcmp.gt.f32.partialorder %v3002, 0.0
      %vm3035 = vcmp.gt.f32.partialorder %v3003, 0.0
      %vm3036 = vcmp.gt.f32.partialorder %v3004, 0.0
      %vm3037 = vcmp.gt.f32.partialorder %v3005, 0.0
      %vm3038 = vcmp.gt.f32.partialorder %v3006, 0.0
      %vm3039 = vcmp.gt.f32.partialorder %v3007, 0.0
      %vm3040 = vcmp.gt.f32.partialorder %v3008, 0.0
      %vm3041 = vcmp.gt.f32.partialorder %v3009, 0.0
      %vm3042 = vcmp.gt.f32.partialorder %v3010, 0.0
      %vm3043 = vcmp.gt.f32.partialorder %v3011, 0.0
      %vm3044 = vcmp.gt.f32.partialorder %v3012, 0.0
      %vm3045 = vcmp.gt.f32.partialorder %v3013, 0.0
      %v3046 = vmul.f32 %v2982, 0.2
      %v3047 = vmul.f32 %v2983, 0.2
      %v3048 = vmul.f32 %v2984, 0.2
      %v3049 = vmul.f32 %v2985, 0.2
      %v3050 = vmul.f32 %v2986, 0.2
      %v3051 = vmul.f32 %v2987, 0.2
      %v3052 = vmul.f32 %v2988, 0.2
      %v3053 = vmul.f32 %v2989, 0.2
      %v3054 = vmul.f32 %v2990, 0.2
      %v3055 = vmul.f32 %v2991, 0.2
      %v3056 = vmul.f32 %v2992, 0.2
      %v3057 = vmul.f32 %v2993, 0.2
      %v3058 = vmul.f32 %v2994, 0.2
      %v3059 = vmul.f32 %v2995, 0.2
      %v3060 = vmul.f32 %v2996, 0.2
      %v3061 = vmul.f32 %v2997, 0.2
      %v3062 = vmul.f32 %v2998, 0.2
      %v3063 = vmul.f32 %v2999, 0.2
      %v3064 = vmul.f32 %v3000, 0.2
      %v3065 = vmul.f32 %v3001, 0.2
      %v3066 = vmul.f32 %v3002, 0.2
      %v3067 = vmul.f32 %v3003, 0.2
      %v3068 = vmul.f32 %v3004, 0.2
      %v3069 = vmul.f32 %v3005, 0.2
      %v3070 = vmul.f32 %v3006, 0.2
      %v3071 = vmul.f32 %v3007, 0.2
      %v3072 = vmul.f32 %v3008, 0.2
      %v3073 = vmul.f32 %v3009, 0.2
      %v3074 = vmul.f32 %v3010, 0.2
      %v3075 = vmul.f32 %v3011, 0.2
      %v3076 = vmul.f32 %v3012, 0.2
      %v3077 = vmul.f32 %v3013, 0.2
      %v3078 = vsel %vm3014, %v2982, %v3046
      %v3079 = vsel %vm3015, %v2983, %v3047
      %v3080 = vsel %vm3016, %v2984, %v3048
      %v3081 = vsel %vm3017, %v2985, %v3049
      %v3082 = vsel %vm3018, %v2986, %v3050
      %v3083 = vsel %vm3019, %v2987, %v3051
      %v3084 = vsel %vm3020, %v2988, %v3052
      %v3085 = vsel %vm3021, %v2989, %v3053
      %v3086 = vsel %vm3022, %v2990, %v3054
      %v3087 = vsel %vm3023, %v2991, %v3055
      %v3088 = vsel %vm3024, %v2992, %v3056
      %v3089 = vsel %vm3025, %v2993, %v3057
      %v3090 = vsel %vm3026, %v2994, %v3058
      %v3091 = vsel %vm3027, %v2995, %v3059
      %v3092 = vsel %vm3028, %v2996, %v3060
      %v3093 = vsel %vm3029, %v2997, %v3061
      %v3094 = vsel %vm3030, %v2998, %v3062
      %v3095 = vsel %vm3031, %v2999, %v3063
      %v3096 = vsel %vm3032, %v3000, %v3064
      %v3097 = vsel %vm3033, %v3001, %v3065
      %v3098 = vsel %vm3034, %v3002, %v3066
      %v3099 = vsel %vm3035, %v3003, %v3067
      %v3100 = vsel %vm3036, %v3004, %v3068
      %v3101 = vsel %vm3037, %v3005, %v3069
      %v3102 = vsel %vm3038, %v3006, %v3070
      %v3103 = vsel %vm3039, %v3007, %v3071
      %v3104 = vsel %vm3040, %v3008, %v3072
      %v3105 = vsel %vm3041, %v3009, %v3073
      %v3106 = vsel %vm3042, %v3010, %v3074
      %v3107 = vsel %vm3043, %v3011, %v3075
      %v3108 = vsel %vm3044, %v3012, %v3076
      %v3109 = vsel %vm3045, %v3013, %v3077
      %3110 = vst [vmem:[%s213] sm:$0xff] %v3078
      %3111 = vst [vmem:[%s213 + $0x8] sm:$0xff] %v3079
      %3112 = vst [vmem:[%s213 + $0x10] sm:$0xff] %v3080
      %3113 = vst [vmem:[%s213 + $0x18] sm:$0xff] %v3081
      %3114 = vst [vmem:[%s213 + $0x20] sm:$0xff] %v3082
      %3115 = vst [vmem:[%s213 + $0x28] sm:$0xff] %v3083
      %3116 = vst [vmem:[%s213 + $0x30] sm:$0xff] %v3084
      %3117 = vst [vmem:[%s213 + $0x38] sm:$0xff] %v3085
      %3118 = vst [vmem:[%s213 + $0x40] sm:$0xff] %v3086
      %3119 = vst [vmem:[%s213 + $0x48] sm:$0xff] %v3087
      %3120 = vst [vmem:[%s213 + $0x50] sm:$0xff] %v3088
      %3121 = vst [vmem:[%s213 + $0x58] sm:$0xff] %v3089
      %3122 = vst [vmem:[%s213 + $0x60] sm:$0xff] %v3090
      %3123 = vst [vmem:[%s213 + $0x68] sm:$0xff] %v3091
      %3124 = vst [vmem:[%s213 + $0x70] sm:$0xff] %v3092
      %3125 = vst [vmem:[%s213 + $0x78] sm:$0xff] %v3093
      %3126 = vst [vmem:[%s213 + $0x80] sm:$0xff] %v3094
      %3127 = vst [vmem:[%s213 + $0x88] sm:$0xff] %v3095
      %3128 = vst [vmem:[%s213 + $0x90] sm:$0xff] %v3096
      %3129 = vst [vmem:[%s213 + $0x98] sm:$0xff] %v3097
      %3130 = vst [vmem:[%s213 + $0xa0] sm:$0xff] %v3098
      %3131 = vst [vmem:[%s213 + $0xa8] sm:$0xff] %v3099
      %3132 = vst [vmem:[%s213 + $0xb0] sm:$0xff] %v3100
      %3133 = vst [vmem:[%s213 + $0xb8] sm:$0xff] %v3101
      %3134 = vst [vmem:[%s213 + $0xc0] sm:$0xff] %v3102
      %3135 = vst [vmem:[%s213 + $0xc8] sm:$0xff] %v3103
      %3136 = vst [vmem:[%s213 + $0xd0] sm:$0xff] %v3104
      %3137 = vst [vmem:[%s213 + $0xd8] sm:$0xff] %v3105
      %3138 = vst [vmem:[%s213 + $0xe0] sm:$0xff] %v3106
      %3139 = vst [vmem:[%s213 + $0xe8] sm:$0xff] %v3107
      %3140 = vst [vmem:[%s213 + $0xf0] sm:$0xff] %v3108
      %3141 = vst [vmem:[%s213 + $0xf8] sm:$0xff] %v3109
      %s3142 = sadd.s32 %s19, %s20
      %s3143 = smul.u32 32, %s3142
      %p3144 = scmp.lt.s32.totalorder %s3143, 63
      %s3145 = scalar_select %p3144, %s3143, 63
      %s3146 = smul.addr %s3145, 8
      %s3147 = scalar_lea.vmem %s4, %s3146
      // Predicated region
      $region37: #{conv2d_block_forward.3} parent=35 // pred_check
        %p3148 = pneg %p136
      $region38: #{conv2d_block_forward.3} parent=35 // pred_check_branch
        %3150 = sbr.rel (%p3148) target = $region40
      $region39: #{conv2d_block_forward.3} parent=35 // pred_region
        %s3151 = sadd.s32 %s19, %s20
        %s3152 = smul.u32 32, %s3151
      $region40: #{conv2d_block_forward.3} parent=35 // pred_fallthru
        _
    $region36: #{conv2d_block_forward.3} parent=5 // pred_fallthru
      _
    %p3153 = scmp.le.s32.totalorder 2, %s10
    // Predicated region
    $region41: #{conv2d_block_forward.3} parent=5 // pred_check
      %p3154 = pneg %p3153
    $region42: #{conv2d_block_forward.3} parent=5 // pred_check_branch
      %3156 = sbr.rel (%p3154) target = $region44
    $region43: #{conv2d_block_forward.3} parent=5 // pred_region
      %s3157 = ssub.s32 %s10, 2
      // Predicated region
      $region45: #{conv2d_block_forward.3} parent=43 // pred_check
        %p3158 = pneg %p142
      $region46: #{conv2d_block_forward.3} parent=43 // pred_check_branch
        %3160 = sbr.rel (%p3158) target = $region48
      $region47: #{conv2d_block_forward.3} parent=43 // pred_region
        %s3161 = sadd.s32 %s21, %s22
        %s3162 = smul.u32 32, %s3161
        %p3163 = scmp.lt.s32.totalorder %s3162, 63
        %s3164 = scalar_select %p3163, %s3162, 63
        %s3165 = smul.addr %s3164, 8
        %s3166 = scalar_lea.vmem %s4, %s3165
      $region48: #{conv2d_block_forward.3} parent=43 // pred_fallthru
        _
    $region44: #{conv2d_block_forward.3} parent=5 // pred_fallthru
      _
  $region6: #{conv2d_block_forward.3} parent=0 // loop_footer
    %s14 = sadd.s32 1, %s10
  $region7: #{conv2d_block_forward.3} parent=0 // loop_footer_branch
    %9 = sbr.rel target = $region3
  $region8: #{conv2d_block_forward.3} parent=0 // loop_exit
    _

// kernel: conv2d_block_forward.2
$region0: #{conv2d_block_forward.2}
  #allocation0 [shape = 'u32[]', space=smem, size = 0x4, offset = 0x4, fixed_abs, tag = 'smem constant byte address 0x4 - core index']
  #allocation1 [shape = 'u32[144,128]{1,0:T(1,128)}', space=vmem, size = 0x12000, scoped, tag = 'internal scratch']
  %s0 = inlined_call_operand.vmem [shape: bf16[2,18,18,4], index: 0, kind: input, shape index: {}]
  %s1 = inlined_call_operand.vmem [shape: bf16[9,4,128], index: 1, kind: input, shape index: {}]
  %s2 = inlined_call_operand.vmem [shape: f32[2,2,128], index: 2, kind: output, shape index: {}]
  %s3 = sld [smem:[#allocation0]]
  $region41: #{conv2d_block_forward.2} parent=0
    _
  %s5 = ssub.s32 1, %s3
  %s6 = scalar_select 0, %s5, %s3
  loop: start=0, step=1, limit=4
  $region2: #{conv2d_block_forward.2} parent=0 // loop_pre_header
    _
  $region3: #{conv2d_block_forward.2} parent=0 // loop_header
    %s8 = sphi 0, %s12
    %p9 = scmp.ge.s32.totalorder %s8, 4
    %s15 = sphi 0, %s27
    %s16 = sphi 0, %s23
    %s17 = sphi 0, %s15
    %s18 = sphi 0, %s16
    %s19 = sphi 0, %s17
    %s20 = sphi 0, %s18
    %s30 = sphi 0, %s32
    %s33 = sphi 0, %s30
    %s34 = sphi 0, %s33
    %s50 = sphi 0, %s34
    %s54 = sphi 0, %s54
    %s56 = sphi 0, %s54
    %s57 = sphi 0, %s56
    %s71 = sphi 0, %s57
    %s79 = sphi 0, %s81
    %s82 = sphi 0, %s79
    %s83 = sphi 0, %s82
    %s99 = sphi 0, %s83
  $region4: #{conv2d_block_forward.2} parent=0 // loop_header_branch
    %11 = sbr.rel (%p9) target = $region8
  $region5: #{conv2d_block_forward.2} parent=0 // loop_body
    %s13 = ssub.s32 %s8, 1
    %s14 = ssub.s32 %s8, 2
    %s21 = sadd.s32 1, %s16
    %p22 = scmp.ge.s32.totalorder %s21, 1
    %s23 = scalar_select %p22, 0, %s21
    %s24 = sadd.s32 1, %s15
    %s25 = scalar_select %p22, %s24, %s15
    %p26 = scmp.ge.s32.totalorder %s25, 2
    %s27 = scalar_select %p26, 0, %s25
    %s28 = ssub.s32 %s15, %s27
    %p29 = scmp.eq.s32.totalorder %s28, 0
    %s31 = sadd.s32 %s30, 1
    %s32 = scalar_select %p29, %s30, %s31
    %p35 = pneg %p29
    %p36 = scmp.eq.s32.totalorder %s8, 1
    %p37 = por %p35, %p36
    %p38 = scmp.ne.s32.totalorder %s30, %s33
    %p39 = scmp.eq.s32.totalorder %s8, 0
    %p40 = por %p38, %p39
    %p41 = scmp.ne.s32.totalorder %s30, %s33
    %p42 = scmp.eq.s32.totalorder %s13, 1
    %p43 = por %p41, %p42
    %p44 = scmp.ne.s32.totalorder %s33, %s34
    %p45 = scmp.eq.s32.totalorder %s13, 0
    %p46 = por %p44, %p45
    %p47 = scmp.ne.s32.totalorder %s33, %s34
    %p48 = scmp.eq.s32.totalorder %s14, 1
    %p49 = por %p47, %p48
    %p51 = scmp.ne.s32.totalorder %s34, %s50
    %p52 = scmp.eq.s32.totalorder %s14, 0
    %p53 = por %p51, %p52
    %s55 = sadd.s32 %s54, 1
    %p58 = scmp.eq.s32.totalorder %s8, 1
    %p59 = scmp.ne.s32.totalorder %s54, %s56
    %p60 = scmp.eq.s32.totalorder %s8, 0
    %p61 = por %p59, %p60
    %p62 = scmp.ne.s32.totalorder %s54, %s56
    %p63 = scmp.eq.s32.totalorder %s13, 1
    %p64 = por %p62, %p63
    %p65 = scmp.ne.s32.totalorder %s56, %s57
    %p66 = scmp.eq.s32.totalorder %s13, 0
    %p67 = por %p65, %p66
    %p68 = scmp.ne.s32.totalorder %s56, %s57
    %p69 = scmp.eq.s32.totalorder %s14, 1
    %p70 = por %p68, %p69
    %p72 = scmp.ne.s32.totalorder %s57, %s71
    %p73 = scmp.eq.s32.totalorder %s14, 0
    %p74 = por %p72, %p73
    %s75 = sadd.s32 %s15, %s16
    %s76 = sadd.s32 %s27, %s23
    %s77 = ssub.s32 %s75, %s76
    %p78 = scmp.eq.s32.totalorder %s77, 0
    %s80 = sadd.s32 %s79, 1
    %s81 = scalar_select %p78, %s79, %s80
    %p84 = pneg %p78
    %p85 = scmp.eq.s32.totalorder %s8, 1
    %p86 = por %p84, %p85
    %p87 = scmp.ne.s32.totalorder %s79, %s82
    %p88 = scmp.eq.s32.totalorder %s8, 0
    %p89 = por %p87, %p88
    %p90 = scmp.ne.s32.totalorder %s79, %s82
    %p91 = scmp.eq.s32.totalorder %s13, 1
    %p92 = por %p90, %p91
    %p93 = scmp.ne.s32.totalorder %s82, %s83
    %p94 = scmp.eq.s32.totalorder %s13, 0
    %p95 = por %p93, %p94
    %p96 = scmp.ne.s32.totalorder %s82, %s83
    %p97 = scmp.eq.s32.totalorder %s14, 1
    %p98 = por %p96, %p97
    %p100 = scmp.ne.s32.totalorder %s83, %s99
    %p101 = scmp.eq.s32.totalorder %s14, 0
    %p102 = por %p100, %p101
    %p103 = scmp.le.s32.totalorder 1, %s8
    %p104 = scmp.lt.s32.totalorder %s8, 3
    %p105 = pnand %p103, %p104
    %p106 = pneg %p105
    // Predicated region
    $region9: #{conv2d_block_forward.2} parent=5 // pred_check
      _
    $region10: #{conv2d_block_forward.2} parent=5 // pred_check_branch
      %108 = sbr.rel (%p105) target = $region12
    $region11: #{conv2d_block_forward.2} parent=5 // pred_region
      %s109 = ssub.s32 %s8, 1
      // Predicated region
      $region13: #{conv2d_block_forward.2} parent=11 // pred_check
        %p110 = pneg %p67
      $region14: #{conv2d_block_forward.2} parent=11 // pred_check_branch
        %112 = sbr.rel (%p110) target = $region16
      $region15: #{conv2d_block_forward.2} parent=11 // pred_region
        _
      $region16: #{conv2d_block_forward.2} parent=11 // pred_fallthru
        _
    $region12: #{conv2d_block_forward.2} parent=5 // pred_fallthru
      _
    %p113 = scmp.lt.s32.totalorder %s8, 2
    // Predicated region
    $region17: #{conv2d_block_forward.2} parent=5 // pred_check
      %p114 = pneg %p113
    $region18: #{conv2d_block_forward.2} parent=5 // pred_check_branch
      %116 = sbr.rel (%p114) target = $region20
    $region19: #{conv2d_block_forward.2} parent=5 // pred_region
      // Predicated region
      $region21: #{conv2d_block_forward.2} parent=19 // pred_check
        %p117 = pneg %p40
      $region22: #{conv2d_block_forward.2} parent=19 // pred_check_branch
        %119 = sbr.rel (%p117) target = $region24
      $region23: #{conv2d_block_forward.2} parent=19 // pred_region
        %p120 = scmp.lt.s32.totalorder %s15, 1
        %s121 = scalar_select %p120, %s15, 1
        %s122 = smul.addr %s121, 54
        %s123 = smul.addr %s122, 4
        %s124 = scalar_lea.vmem %s0, %s123
      $region24: #{conv2d_block_forward.2} parent=19 // pred_fallthru
        _
    $region20: #{conv2d_block_forward.2} parent=5 // pred_fallthru
      _
    %p125 = scmp.le.s32.totalorder 1, %s8
    %p126 = scmp.lt.s32.totalorder %s8, 3
    %p127 = pnand %p125, %p126
    %p128 = pneg %p127
    // Predicated region
    $region25: #{conv2d_block_forward.2} parent=5 // pred_check
      _
    $region26: #{conv2d_block_forward.2} parent=5 // pred_check_branch
      %130 = sbr.rel (%p127) target = $region28
    $region27: #{conv2d_block_forward.2} parent=5 // pred_region
      %s131 = ssub.s32 %s8, 1
      %p132 = scmp.lt.s32.totalorder %s17, 1
      %s133 = scalar_select %p132, %s17, 1
      %s134 = smul.addr %s133, 54
      %s135 = smul.addr %s134, 4
      %s136 = scalar_lea.vmem %s0, %s135
      %p137 = pneg %p46
      %p138 = pneg %p43
      %p139 = pneg %p67
      %p140 = pneg %p64
      %p141 = pneg %p95
      %p142 = pneg %p92
      %s143 = sadd.s32 %s17, %s18
      %p144 = scmp.lt.s32.totalorder %s143, 1
      %s145 = scalar_select %p144, %s143, 1
      %s146 = smul.addr %s145, 2
      %s147 = scalar_lea.vmem %s2, %s146
      %p148 = scmp.lt.s32.totalorder %s17, 1
      %s149 = scalar_select %p148, %s17, 1
      %s150 = smul.addr %s149, 54
      %s151 = smul.addr %s150, 4
      %s152 = scalar_lea.vmem %s0, %s151
      %s153 = sadd.s32 %s17, %s18
      %p154 = scmp.lt.s32.totalorder %s153, 1
      %s155 = scalar_select %p154, %s153, 1
      %s156 = smul.addr %s155, 2
      %s157 = scalar_lea.vmem %s2, %s156
      %s158 = sadd.s32 %s17, %s18
      %s160 = smul.u32 %s18, 16
      %s161 = smul.u32 %s160, 3
      %s162 = smul.addr %s161, 4
      %s163 = scalar_lea.vmem %s152, %s162
      %v164 = vld [vmem:[%s163] sm:$0xf]
      %v165 = vld [vmem:[%s163 + $0x4] sm:$0xf]
      %v166 = vld [vmem:[%s163 + $0x8] sm:$0x1]
      %v167 = vld [vmem:[%s163 + $0xc] sm:$0xf]
      %v168 = vld [vmem:[%s163 + $0x10] sm:$0xf]
      %v169 = vld [vmem:[%s163 + $0x14] sm:$0x1]
      %v170 = vld [vmem:[%s163 + $0x18] sm:$0xf]
      %v171 = vld [vmem:[%s163 + $0x1c] sm:$0xf]
      %v172 = vld [vmem:[%s163 + $0x20] sm:$0x1]
      %v173 = vld [vmem:[%s163 + $0x24] sm:$0xf]
      %v174 = vld [vmem:[%s163 + $0x28] sm:$0xf]
      %v175 = vld [vmem:[%s163 + $0x2c] sm:$0x1]
      %v176 = vld [vmem:[%s163 + $0x30] sm:$0xf]
      %v177 = vld [vmem:[%s163 + $0x34] sm:$0xf]
      %v178 = vld [vmem:[%s163 + $0x38] sm:$0x1]
      %v179 = vld [vmem:[%s163 + $0x3c] sm:$0xf]
      %v180 = vld [vmem:[%s163 + $0x40] sm:$0xf]
      %v181 = vld [vmem:[%s163 + $0x44] sm:$0x1]
      %v182 = vld [vmem:[%s163 + $0x48] sm:$0xf]
      %v183 = vld [vmem:[%s163 + $0x4c] sm:$0xf]
      %v184 = vld [vmem:[%s163 + $0x50] sm:$0x1]
      %v185 = vld [vmem:[%s163 + $0x54] sm:$0xf]
      %v186 = vld [vmem:[%s163 + $0x58] sm:$0xf]
      %v187 = vld [vmem:[%s163 + $0x5c] sm:$0x1]
      %v188 = vld [vmem:[%s163 + $0x60] sm:$0xf]
      %v189 = vld [vmem:[%s163 + $0x64] sm:$0xf]
      %v190 = vld [vmem:[%s163 + $0x68] sm:$0x1]
      %v191 = vld [vmem:[%s163 + $0x6c] sm:$0xf]
      %v192 = vld [vmem:[%s163 + $0x70] sm:$0xf]
      %v193 = vld [vmem:[%s163 + $0x74] sm:$0x1]
      %v194 = vld [vmem:[%s163 + $0x78] sm:$0xf]
      %v195 = vld [vmem:[%s163 + $0x7c] sm:$0xf]
      %v196 = vld [vmem:[%s163 + $0x80] sm:$0x1]
      %v197 = vld [vmem:[%s163 + $0x84] sm:$0xf]
      %v198 = vld [vmem:[%s163 + $0x88] sm:$0xf]
      %v199 = vld [vmem:[%s163 + $0x8c] sm:$0x1]
      %v200 = vld [vmem:[%s163 + $0x90] sm:$0xf]
      %v201 = vld [vmem:[%s163 + $0x94] sm:$0xf]
      %v202 = vld [vmem:[%s163 + $0x98] sm:$0x1]
      %v203 = vld [vmem:[%s163 + $0x9c] sm:$0xf]
      %v204 = vld [vmem:[%s163 + $0xa0] sm:$0xf]
      %v205 = vld [vmem:[%s163 + $0xa4] sm:$0x1]
      %v206 = vld [vmem:[%s163 + $0xa8] sm:$0xf]
      %v207 = vld [vmem:[%s163 + $0xac] sm:$0xf]
      %v208 = vld [vmem:[%s163 + $0xb0] sm:$0x1]
      %v209 = vld [vmem:[%s163 + $0xb4] sm:$0xf]
      %v210 = vld [vmem:[%s163 + $0xb8] sm:$0xf]
      %v211 = vld [vmem:[%s163 + $0xbc] sm:$0x1]
      %v212 = vld [vmem:[%s163 + $0xc0] sm:$0xf]
      %v213 = vld [vmem:[%s163 + $0xc4] sm:$0xf]
      %v214 = vld [vmem:[%s163 + $0xc8] sm:$0x1]
      %v215 = vld [vmem:[%s163 + $0xcc] sm:$0xf]
      %v216 = vld [vmem:[%s163 + $0xd0] sm:$0xf]
      %v217 = vld [vmem:[%s163 + $0xd4] sm:$0x1]
      %v218 = vld [vmem:[%s1] sm:$0x3]
      %vm219 = vsmask.f32 3328
      %vm220 = vsmask.f32 7440
      %vm221 = vmor %vm219, %vm220
      %v223 = vshrl.u32 %v164, 16
      %v225 = vrot.slane %v223, 4
      %v226 = vshll.u32 %v164, 16
      %v228 = vrot.slane %v226, 5
      %v229 = vor.u32 %v225, %v228
      %v230 = vrot.slane %v229, 4
      %v232 = vshll.u32 %v165, 16
      %v234 = vrot.slane %v232, 5
      %v235 = vsel %vm221, %v230, %v234
      %v236 = vshrl.u32 %v165, 16
      %v238 = vrot.slane %v236, 4
      %v239 = vor.u32 %v238, %v234
      %v240 = vrot.slane %v239, 4
      %v242 = vshll.u32 %v166, 16
      %v244 = vrot.slane %v242, 5
      %v245 = vsel %vm221, %v240, %v244
      %v247 = vshrl.u32 %v167, 16
      %v249 = vrot.slane %v247, 4
      %v250 = vshll.u32 %v167, 16
      %v252 = vrot.slane %v250, 5
      %v253 = vor.u32 %v249, %v252
      %v254 = vrot.slane %v253, 4
      %v256 = vshll.u32 %v168, 16
      %v258 = vrot.slane %v256, 5
      %v259 = vsel %vm221, %v254, %v258
      %v260 = vshrl.u32 %v168, 16
      %v262 = vrot.slane %v260, 4
      %v263 = vor.u32 %v262, %v258
      %v264 = vrot.slane %v263, 4
      %v266 = vshll.u32 %v169, 16
      %v268 = vrot.slane %v266, 5
      %v269 = vsel %vm221, %v264, %v268
      %v271 = vshrl.u32 %v170, 16
      %v273 = vrot.slane %v271, 4
      %v274 = vshll.u32 %v170, 16
      %v276 = vrot.slane %v274, 5
      %v277 = vor.u32 %v273, %v276
      %v278 = vrot.slane %v277, 4
      %v280 = vshll.u32 %v171, 16
      %v282 = vrot.slane %v280, 5
      %v283 = vsel %vm221, %v278, %v282
      %v284 = vshrl.u32 %v171, 16
      %v286 = vrot.slane %v284, 4
      %v287 = vor.u32 %v286, %v282
      %v288 = vrot.slane %v287, 4
      %v290 = vshll.u32 %v172, 16
      %v292 = vrot.slane %v290, 5
      %v293 = vsel %vm221, %v288, %v292
      %v295 = vshrl.u32 %v173, 16
      %v297 = vrot.slane %v295, 4
      %v298 = vshll.u32 %v173, 16
      %v300 = vrot.slane %v298, 5
      %v301 = vor.u32 %v297, %v300
      %v302 = vrot.slane %v301, 4
      %v304 = vshll.u32 %v174, 16
      %v306 = vrot.slane %v304, 5
      %v307 = vsel %vm221, %v302, %v306
      %v308 = vshrl.u32 %v174, 16
      %v310 = vrot.slane %v308, 4
      %v311 = vor.u32 %v310, %v306
      %v312 = vrot.slane %v311, 4
      %v314 = vshll.u32 %v175, 16
      %v316 = vrot.slane %v314, 5
      %v317 = vsel %vm221, %v312, %v316
      %v319 = vshrl.u32 %v176, 16
      %v321 = vrot.slane %v319, 4
      %v322 = vshll.u32 %v176, 16
      %v324 = vrot.slane %v322, 5
      %v325 = vor.u32 %v321, %v324
      %v326 = vrot.slane %v325, 4
      %v328 = vshll.u32 %v177, 16
      %v330 = vrot.slane %v328, 5
      %v331 = vsel %vm221, %v326, %v330
      %v332 = vshrl.u32 %v177, 16
      %v334 = vrot.slane %v332, 4
      %v335 = vor.u32 %v334, %v330
      %v336 = vrot.slane %v335, 4
      %v338 = vshll.u32 %v178, 16
      %v340 = vrot.slane %v338, 5
      %v341 = vsel %vm221, %v336, %v340
      %v343 = vshrl.u32 %v179, 16
      %v345 = vrot.slane %v343, 4
      %v346 = vshll.u32 %v179, 16
      %v348 = vrot.slane %v346, 5
      %v349 = vor.u32 %v345, %v348
      %v350 = vrot.slane %v349, 4
      %v352 = vshll.u32 %v180, 16
      %v354 = vrot.slane %v352, 5
      %v355 = vsel %vm221, %v350, %v354
      %v356 = vshrl.u32 %v180, 16
      %v358 = vrot.slane %v356, 4
      %v359 = vor.u32 %v358, %v354
      %v360 = vrot.slane %v359, 4
      %v362 = vshll.u32 %v181, 16
      %v364 = vrot.slane %v362, 5
      %v365 = vsel %vm221, %v360, %v364
      %v367 = vshrl.u32 %v182, 16
      %v369 = vrot.slane %v367, 4
      %v370 = vshll.u32 %v182, 16
      %v372 = vrot.slane %v370, 5
      %v373 = vor.u32 %v369, %v372
      %v374 = vrot.slane %v373, 4
      %v376 = vshll.u32 %v183, 16
      %v378 = vrot.slane %v376, 5
      %v379 = vsel %vm221, %v374, %v378
      %v380 = vshrl.u32 %v183, 16
      %v382 = vrot.slane %v380, 4
      %v383 = vor.u32 %v382, %v378
      %v384 = vrot.slane %v383, 4
      %v386 = vshll.u32 %v184, 16
      %v388 = vrot.slane %v386, 5
      %v389 = vsel %vm221, %v384, %v388
      %v391 = vshrl.u32 %v185, 16
      %v393 = vrot.slane %v391, 4
      %v394 = vshll.u32 %v185, 16
      %v396 = vrot.slane %v394, 5
      %v397 = vor.u32 %v393, %v396
      %v398 = vrot.slane %v397, 4
      %v400 = vshll.u32 %v186, 16
      %v402 = vrot.slane %v400, 5
      %v403 = vsel %vm221, %v398, %v402
      %v404 = vshrl.u32 %v186, 16
      %v406 = vrot.slane %v404, 4
      %v407 = vor.u32 %v406, %v402
      %v408 = vrot.slane %v407, 4
      %v410 = vshll.u32 %v187, 16
      %v412 = vrot.slane %v410, 5
      %v413 = vsel %vm221, %v408, %v412
      %v415 = vshrl.u32 %v188, 16
      %v417 = vrot.slane %v415, 4
      %v418 = vshll.u32 %v188, 16
      %v420 = vrot.slane %v418, 5
      %v421 = vor.u32 %v417, %v420
      %v422 = vrot.slane %v421, 4
      %v424 = vshll.u32 %v189, 16
      %v426 = vrot.slane %v424, 5
      %v427 = vsel %vm221, %v422, %v426
      %v428 = vshrl.u32 %v189, 16
      %v430 = vrot.slane %v428, 4
      %v431 = vor.u32 %v430, %v426
      %v432 = vrot.slane %v431, 4
      %v434 = vshll.u32 %v190, 16
      %v436 = vrot.slane %v434, 5
      %v437 = vsel %vm221, %v432, %v436
      %v439 = vshrl.u32 %v191, 16
      %v441 = vrot.slane %v439, 4
      %v442 = vshll.u32 %v191, 16
      %v444 = vrot.slane %v442, 5
      %v445 = vor.u32 %v441, %v444
      %v446 = vrot.slane %v445, 4
      %v448 = vshll.u32 %v192, 16
      %v450 = vrot.slane %v448, 5
      %v451 = vsel %vm221, %v446, %v450
      %v452 = vshrl.u32 %v192, 16
      %v454 = vrot.slane %v452, 4
      %v455 = vor.u32 %v454, %v450
      %v456 = vrot.slane %v455, 4
      %v458 = vshll.u32 %v193, 16
      %v460 = vrot.slane %v458, 5
      %v461 = vsel %vm221, %v456, %v460
      %v463 = vshrl.u32 %v194, 16
      %v465 = vrot.slane %v463, 4
      %v466 = vshll.u32 %v194, 16
      %v468 = vrot.slane %v466, 5
      %v469 = vor.u32 %v465, %v468
      %v470 = vrot.slane %v469, 4
      %v472 = vshll.u32 %v195, 16
      %v474 = vrot.slane %v472, 5
      %v475 = vsel %vm221, %v470, %v474
      %v476 = vshrl.u32 %v195, 16
      %v478 = vrot.slane %v476, 4
      %v479 = vor.u32 %v478, %v474
      %v480 = vrot.slane %v479, 4
      %v482 = vshll.u32 %v196, 16
      %v484 = vrot.slane %v482, 5
      %v485 = vsel %vm221, %v480, %v484
      %v487 = vshrl.u32 %v197, 16
      %v489 = vrot.slane %v487, 4
      %v490 = vshll.u32 %v197, 16
      %v492 = vrot.slane %v490, 5
      %v493 = vor.u32 %v489, %v492
      %v494 = vrot.slane %v493, 4
      %v496 = vshll.u32 %v198, 16
      %v498 = vrot.slane %v496, 5
      %v499 = vsel %vm221, %v494, %v498
      %v500 = vshrl.u32 %v198, 16
      %v502 = vrot.slane %v500, 4
      %v503 = vor.u32 %v502, %v498
      %v504 = vrot.slane %v503, 4
      %v506 = vshll.u32 %v199, 16
      %v508 = vrot.slane %v506, 5
      %v509 = vsel %vm221, %v504, %v508
      %v511 = vshrl.u32 %v200, 16
      %v513 = vrot.slane %v511, 4
      %v514 = vshll.u32 %v200, 16
      %v516 = vrot.slane %v514, 5
      %v517 = vor.u32 %v513, %v516
      %v518 = vrot.slane %v517, 4
      %v520 = vshll.u32 %v201, 16
      %v522 = vrot.slane %v520, 5
      %v523 = vsel %vm221, %v518, %v522
      %v524 = vshrl.u32 %v201, 16
      %v526 = vrot.slane %v524, 4
      %v527 = vor.u32 %v526, %v522
      %v528 = vrot.slane %v527, 4
      %v530 = vshll.u32 %v202, 16
      %v532 = vrot.slane %v530, 5
      %v533 = vsel %vm221, %v528, %v532
      %v535 = vshrl.u32 %v203, 16
      %v537 = vrot.slane %v535, 4
      %v538 = vshll.u32 %v203, 16
      %v540 = vrot.slane %v538, 5
      %v541 = vor.u32 %v537, %v540
      %v542 = vrot.slane %v541, 4
      %v544 = vshll.u32 %v204, 16
      %v546 = vrot.slane %v544, 5
      %v547 = vsel %vm221, %v542, %v546
      %v548 = vshrl.u32 %v204, 16
      %v550 = vrot.slane %v548, 4
      %v551 = vor.u32 %v550, %v546
      %v552 = vrot.slane %v551, 4
      %v554 = vshll.u32 %v205, 16
      %v556 = vrot.slane %v554, 5
      %v557 = vsel %vm221, %v552, %v556
      %v559 = vshrl.u32 %v206, 16
      %v561 = vrot.slane %v559, 4
      %v562 = vshll.u32 %v206, 16
      %v564 = vrot.slane %v562, 5
      %v565 = vor.u32 %v561, %v564
      %v566 = vrot.slane %v565, 4
      %v568 = vshll.u32 %v207, 16
      %v570 = vrot.slane %v568, 5
      %v571 = vsel %vm221, %v566, %v570
      %v572 = vshrl.u32 %v207, 16
      %v574 = vrot.slane %v572, 4
      %v575 = vor.u32 %v574, %v570
      %v576 = vrot.slane %v575, 4
      %v578 = vshll.u32 %v208, 16
      %v580 = vrot.slane %v578, 5
      %v581 = vsel %vm221, %v576, %v580
      %v583 = vshrl.u32 %v209, 16
      %v585 = vrot.slane %v583, 4
      %v586 = vshll.u32 %v209, 16
      %v588 = vrot.slane %v586, 5
      %v589 = vor.u32 %v585, %v588
      %v590 = vrot.slane %v589, 4
      %v592 = vshll.u32 %v210, 16
      %v594 = vrot.slane %v592, 5
      %v595 = vsel %vm221, %v590, %v594
      %v596 = vshrl.u32 %v210, 16
      %v598 = vrot.slane %v596, 4
      %v599 = vor.u32 %v598, %v594
      %v600 = vrot.slane %v599, 4
      %v602 = vshll.u32 %v211, 16
      %v604 = vrot.slane %v602, 5
      %v605 = vsel %vm221, %v600, %v604
      %s606 = scalar_lea.vmem %s1, 2
      %v607 = vld [vmem:[%s606] sm:$0x3]
      %v608 = vunpack.c.l.b16 %v235
      %v609 = vunpack.c.l.b16 %v245
      %v610 = vunpack.c.l.b16 %v259
      %v611 = vunpack.c.l.b16 %v269
      %v612 = vunpack.c.l.b16 %v283
      %v613 = vunpack.c.l.b16 %v293
      %v614 = vunpack.c.l.b16 %v307
      %v615 = vunpack.c.l.b16 %v317
      %v616 = vunpack.c.l.b16 %v331
      %v617 = vunpack.c.l.b16 %v341
      %v618 = vunpack.c.l.b16 %v355
      %v619 = vunpack.c.l.b16 %v365
      %v620 = vunpack.c.l.b16 %v379
      %v621 = vunpack.c.l.b16 %v389
      %v622 = vunpack.c.l.b16 %v403
      %v623 = vunpack.c.l.b16 %v413
      %v624 = vunpack.c.l.b16 %v427
      %v625 = vunpack.c.l.b16 %v437
      %v626 = vunpack.c.l.b16 %v451
      %v627 = vunpack.c.l.b16 %v461
      %v628 = vunpack.c.l.b16 %v475
      %v629 = vunpack.c.l.b16 %v485
      %v630 = vunpack.c.l.b16 %v499
      %v631 = vunpack.c.l.b16 %v509
      %v632 = vunpack.c.l.b16 %v523
      %v633 = vunpack.c.l.b16 %v533
      %v634 = vunpack.c.l.b16 %v547
      %v635 = vunpack.c.l.b16 %v557
      %v636 = vunpack.c.l.b16 %v571
      %v637 = vunpack.c.l.b16 %v581
      %v638 = vunpack.c.l.b16 %v595
      %v639 = vunpack.c.l.b16 %v605
      %v640 = vpack.c.b16 %v609, %v608
      %v641 = vpack.c.b16 %v611, %v610
      %v642 = vpack.c.b16 %v613, %v612
      %v643 = vpack.c.b16 %v615, %v614
      %v644 = vpack.c.b16 %v617, %v616
      %v645 = vpack.c.b16 %v619, %v618
      %v646 = vpack.c.b16 %v621, %v620
      %v647 = vpack.c.b16 %v623, %v622
      %v648 = vpack.c.b16 %v625, %v624
      %v649 = vpack.c.b16 %v627, %v626
      %v650 = vpack.c.b16 %v629, %v628
      %v651 = vpack.c.b16 %v631, %v630
      %v652 = vpack.c.b16 %v633, %v632
      %v653 = vpack.c.b16 %v635, %v634
      %v654 = vpack.c.b16 %v637, %v636
      %v655 = vpack.c.b16 %v639, %v638
      %vm656 = vcmask 31744
      %v658 = vsel %vm656, %v640, 0
      %v661 = vsel %vm656, %v641, 0
      %v664 = vsel %vm656, %v642, 0
      %v667 = vsel %vm656, %v643, 0
      %v670 = vsel %vm656, %v644, 0
      %v673 = vsel %vm656, %v645, 0
      %v676 = vsel %vm656, %v646, 0
      %v679 = vsel %vm656, %v647, 0
      %v682 = vsel %vm656, %v648, 0
      %v685 = vsel %vm656, %v649, 0
      %v688 = vsel %vm656, %v650, 0
      %v691 = vsel %vm656, %v651, 0
      %v694 = vsel %vm656, %v652, 0
      %v697 = vsel %vm656, %v653, 0
      %v700 = vsel %vm656, %v654, 0
      %v703 = vsel %vm656, %v655, 0
      %vm705 = vcmask 1041408
      %v707 = vsel %vm705, %v607, 0
      %709 = vmatprep.subr.bf16.mxu0 0
      %710 = vmatpush1.bf16.msra.mxu0 0
      %711 = vmatprep.subr.bf16.mxu0 0
      %712 = vmatpush1.bf16.msra.mxu0 0
      %713 = vmatprep.subr.bf16.mxu0 0
      %714 = vmatpush1.bf16.msra.mxu0 0
      %715 = vmatprep.subr.bf16.mxu0 0
      %716 = vmatpush1.bf16.msra.mxu0 0
      %717 = vmatprep.subr.bf16.mxu0 0
      %718 = vmatpush1.bf16.msra.mxu0 0
      %719 = vmatprep.subr.bf16.mxu0 0
      %720 = vmatpush1.bf16.msra.mxu0 0
      %721 = vmatprep.subr.bf16.mxu0 0
      %722 = vmatpush1.bf16.msra.mxu0 0
      %723 = vmatprep.subr.bf16.mxu0 0
      %724 = vmatpush1.bf16.msra.mxu0 %v707
      %725 = vmatprep.subr.bf16.mxu0 0
      %726 = vmatpush2.bf16.msra.mxu0 0
      %727 = vmatprep.subr.bf16.mxu0 0
      %728 = vmatpush2.bf16.msra.mxu0 0
      %729 = vmatprep.subr.bf16.mxu0 0
      %730 = vmatpush2.bf16.msra.mxu0 0
      %731 = vmatprep.subr.bf16.mxu0 0
      %732 = vmatpush2.bf16.msra.mxu0 0
      %733 = vmatprep.subr.bf16.mxu0 0
      %734 = vmatpush2.bf16.msra.mxu0 0
      %735 = vmatprep.subr.bf16.mxu0 0
      %736 = vmatpush2.bf16.msra.mxu0 0
      %737 = vmatprep.subr.bf16.mxu0 0
      %738 = vmatpush2.bf16.msra.mxu0 0
      %739 = vmatprep.subr.bf16.mxu0 0
      %740 = vmatpush2.bf16.msra.mxu0 0
      %741 = vmatprep.mubr.bf16.mxu0 0
      %742 = vmatmul.mubr.bf16.gmra.mxu0 %v658
      %v743 = vpop.f32.mrf.mxu0
      %v744 = vadd.f32 0.0, %v743
      %v745 = vpop.f32.mrf.mxu0
      %v746 = vpop.f32.mrf.mxu0
      %v747 = vadd.f32 0.0, %v746
      %v748 = vpop.f32.mrf.mxu0
      %749 = vmatprep.mubr.bf16.mxu0 0
      %750 = vmatmul.mubr.bf16.gmra.mxu0 %v661
      %v751 = vpop.f32.mrf.mxu0
      %v752 = vadd.f32 0.0, %v751
      %v753 = vpop.f32.mrf.mxu0
      %v754 = vpop.f32.mrf.mxu0
      %v755 = vadd.f32 0.0, %v754
      %v756 = vpop.f32.mrf.mxu0
      %757 = vmatprep.mubr.bf16.mxu0 0
      %758 = vmatmul.mubr.bf16.gmra.mxu0 %v664
      %v759 = vpop.f32.mrf.mxu0
      %v760 = vadd.f32 0.0, %v759
      %v761 = vpop.f32.mrf.mxu0
      %v762 = vpop.f32.mrf.mxu0
      %v763 = vadd.f32 0.0, %v762
      %v764 = vpop.f32.mrf.mxu0
      %765 = vmatprep.mubr.bf16.mxu0 0
      %766 = vmatmul.mubr.bf16.gmra.mxu0 %v667
      %v767 = vpop.f32.mrf.mxu0
      %v768 = vadd.f32 0.0, %v767
      %v769 = vpop.f32.mrf.mxu0
      %v770 = vpop.f32.mrf.mxu0
      %v771 = vadd.f32 0.0, %v770
      %v772 = vpop.f32.mrf.mxu0
      %773 = vmatprep.mubr.bf16.mxu0 0
      %774 = vmatmul.mubr.bf16.gmra.mxu0 %v670
      %v775 = vpop.f32.mrf.mxu0
      %v776 = vadd.f32 0.0, %v775
      %v777 = vpop.f32.mrf.mxu0
      %v778 = vpop.f32.mrf.mxu0
      %v779 = vadd.f32 0.0, %v778
      %v780 = vpop.f32.mrf.mxu0
      %781 = vmatprep.mubr.bf16.mxu0 0
      %782 = vmatmul.mubr.bf16.gmra.mxu0 %v673
      %v783 = vpop.f32.mrf.mxu0
      %v784 = vadd.f32 0.0, %v783
      %v785 = vpop.f32.mrf.mxu0
      %v786 = vpop.f32.mrf.mxu0
      %v787 = vadd.f32 0.0, %v786
      %v788 = vpop.f32.mrf.mxu0
      %789 = vmatprep.mubr.bf16.mxu0 0
      %790 = vmatmul.mubr.bf16.gmra.mxu0 %v676
      %v791 = vpop.f32.mrf.mxu0
      %v792 = vadd.f32 0.0, %v791
      %v793 = vpop.f32.mrf.mxu0
      %v794 = vpop.f32.mrf.mxu0
      %v795 = vadd.f32 0.0, %v794
      %v796 = vpop.f32.mrf.mxu0
      %797 = vmatprep.mubr.bf16.mxu0 0
      %798 = vmatmul.mubr.bf16.gmra.mxu0 %v679
      %v799 = vpop.f32.mrf.mxu0
      %v800 = vadd.f32 0.0, %v799
      %v801 = vpop.f32.mrf.mxu0
      %v802 = vpop.f32.mrf.mxu0
      %v803 = vadd.f32 0.0, %v802
      %v804 = vpop.f32.mrf.mxu0
      %805 = vmatprep.mubr.bf16.mxu0 0
      %806 = vmatmul.mubr.bf16.gmra.mxu0 %v682
      %v807 = vpop.f32.mrf.mxu0
      %v808 = vadd.f32 0.0, %v807
      %v809 = vpop.f32.mrf.mxu0
      %v810 = vpop.f32.mrf.mxu0
      %v811 = vadd.f32 0.0, %v810
      %v812 = vpop.f32.mrf.mxu0
      %813 = vmatprep.mubr.bf16.mxu0 0
      %814 = vmatmul.mubr.bf16.gmra.mxu0 %v685
      %v815 = vpop.f32.mrf.mxu0
      %v816 = vadd.f32 0.0, %v815
      %v817 = vpop.f32.mrf.mxu0
      %v818 = vpop.f32.mrf.mxu0
      %v819 = vadd.f32 0.0, %v818
      %v820 = vpop.f32.mrf.mxu0
      %821 = vmatprep.mubr.bf16.mxu0 0
      %822 = vmatmul.mubr.bf16.gmra.mxu0 %v688
      %v823 = vpop.f32.mrf.mxu0
      %v824 = vadd.f32 0.0, %v823
      %v825 = vpop.f32.mrf.mxu0
      %v826 = vpop.f32.mrf.mxu0
      %v827 = vadd.f32 0.0, %v826
      %v828 = vpop.f32.mrf.mxu0
      %829 = vmatprep.mubr.bf16.mxu0 0
      %830 = vmatmul.mubr.bf16.gmra.mxu0 %v691
      %v831 = vpop.f32.mrf.mxu0
      %v832 = vadd.f32 0.0, %v831
      %v833 = vpop.f32.mrf.mxu0
      %v834 = vpop.f32.mrf.mxu0
      %v835 = vadd.f32 0.0, %v834
      %v836 = vpop.f32.mrf.mxu0
      %837 = vmatprep.mubr.bf16.mxu0 0
      %838 = vmatmul.mubr.bf16.gmra.mxu0 %v694
      %v839 = vpop.f32.mrf.mxu0
      %v840 = vadd.f32 0.0, %v839
      %v841 = vpop.f32.mrf.mxu0
      %v842 = vpop.f32.mrf.mxu0
      %v843 = vadd.f32 0.0, %v842
      %v844 = vpop.f32.mrf.mxu0
      %845 = vmatprep.mubr.bf16.mxu0 0
      %846 = vmatmul.mubr.bf16.gmra.mxu0 %v697
      %v847 = vpop.f32.mrf.mxu0
      %v848 = vadd.f32 0.0, %v847
      %v849 = vpop.f32.mrf.mxu0
      %v850 = vpop.f32.mrf.mxu0
      %v851 = vadd.f32 0.0, %v850
      %v852 = vpop.f32.mrf.mxu0
      %853 = vmatprep.mubr.bf16.mxu0 0
      %854 = vmatmul.mubr.bf16.gmra.mxu0 %v700
      %v855 = vpop.f32.mrf.mxu0
      %v856 = vadd.f32 0.0, %v855
      %v857 = vpop.f32.mrf.mxu0
      %v858 = vpop.f32.mrf.mxu0
      %v859 = vadd.f32 0.0, %v858
      %v860 = vpop.f32.mrf.mxu0
      %861 = vmatprep.mubr.bf16.mxu0 0
      %862 = vmatmul.mubr.bf16.gmra.mxu0 %v703
      %v863 = vpop.f32.mrf.mxu0
      %v864 = vadd.f32 0.0, %v863
      %v865 = vpop.f32.mrf.mxu0
      %v866 = vpop.f32.mrf.mxu0
      %v867 = vadd.f32 0.0, %v866
      %v868 = vpop.f32.mrf.mxu0
      %869 = vdwg.mxu0
      %v902 = vunpack.c.l.b16 %v164
      %v903 = vunpack.c.l.b16 %v165
      %v904 = vunpack.c.l.b16 %v167
      %v905 = vunpack.c.l.b16 %v168
      %v906 = vunpack.c.l.b16 %v170
      %v907 = vunpack.c.l.b16 %v171
      %v908 = vunpack.c.l.b16 %v173
      %v909 = vunpack.c.l.b16 %v174
      %v910 = vunpack.c.l.b16 %v176
      %v911 = vunpack.c.l.b16 %v177
      %v912 = vunpack.c.l.b16 %v179
      %v913 = vunpack.c.l.b16 %v180
      %v914 = vunpack.c.l.b16 %v182
      %v915 = vunpack.c.l.b16 %v183
      %v916 = vunpack.c.l.b16 %v185
      %v917 = vunpack.c.l.b16 %v186
      %v918 = vunpack.c.l.b16 %v188
      %v919 = vunpack.c.l.b16 %v189
      %v920 = vunpack.c.l.b16 %v191
      %v921 = vunpack.c.l.b16 %v192
      %v922 = vunpack.c.l.b16 %v194
      %v923 = vunpack.c.l.b16 %v195
      %v924 = vunpack.c.l.b16 %v197
      %v925 = vunpack.c.l.b16 %v198
      %v926 = vunpack.c.l.b16 %v200
      %v927 = vunpack.c.l.b16 %v201
      %v928 = vunpack.c.l.b16 %v203
      %v929 = vunpack.c.l.b16 %v204
      %v930 = vunpack.c.l.b16 %v206
      %v931 = vunpack.c.l.b16 %v207
      %v932 = vunpack.c.l.b16 %v209
      %v933 = vunpack.c.l.b16 %v210
      %v934 = vpack.c.b16 %v903, %v902
      %v935 = vpack.c.b16 %v905, %v904
      %v936 = vpack.c.b16 %v907, %v906
      %v937 = vpack.c.b16 %v909, %v908
      %v938 = vpack.c.b16 %v911, %v910
      %v939 = vpack.c.b16 %v913, %v912
      %v940 = vpack.c.b16 %v915, %v914
      %v941 = vpack.c.b16 %v917, %v916
      %v942 = vpack.c.b16 %v919, %v918
      %v943 = vpack.c.b16 %v921, %v920
      %v944 = vpack.c.b16 %v923, %v922
      %v945 = vpack.c.b16 %v925, %v924
      %v946 = vpack.c.b16 %v927, %v926
      %v947 = vpack.c.b16 %v929, %v928
      %v948 = vpack.c.b16 %v931, %v930
      %v949 = vpack.c.b16 %v933, %v932
      %v951 = vsel %vm656, %v934, 0
      %v954 = vsel %vm656, %v935, 0
      %v957 = vsel %vm656, %v936, 0
      %v960 = vsel %vm656, %v937, 0
      %v963 = vsel %vm656, %v938, 0
      %v966 = vsel %vm656, %v939, 0
      %v969 = vsel %vm656, %v940, 0
      %v972 = vsel %vm656, %v941, 0
      %v975 = vsel %vm656, %v942, 0
      %v978 = vsel %vm656, %v943, 0
      %v981 = vsel %vm656, %v944, 0
      %v984 = vsel %vm656, %v945, 0
      %v987 = vsel %vm656, %v946, 0
      %v990 = vsel %vm656, %v947, 0
      %v993 = vsel %vm656, %v948, 0
      %v996 = vsel %vm656, %v949, 0
      %v999 = vsel %vm705, %v218, 0
      %1001 = vmatprep.subr.bf16.mxu0 0
      %1002 = vmatpush1.bf16.msra.mxu0 0
      %1003 = vmatprep.subr.bf16.mxu0 0
      %1004 = vmatpush1.bf16.msra.mxu0 0
      %1005 = vmatprep.subr.bf16.mxu0 0
      %1006 = vmatpush1.bf16.msra.mxu0 0
      %1007 = vmatprep.subr.bf16.mxu0 0
      %1008 = vmatpush1.bf16.msra.mxu0 0
      %1009 = vmatprep.subr.bf16.mxu0 0
      %1010 = vmatpush1.bf16.msra.mxu0 0
      %1011 = vmatprep.subr.bf16.mxu0 0
      %1012 = vmatpush1.bf16.msra.mxu0 0
      %1013 = vmatprep.subr.bf16.mxu0 0
      %1014 = vmatpush1.bf16.msra.mxu0 0
      %1015 = vmatprep.subr.bf16.mxu0 0
      %1016 = vmatpush1.bf16.msra.mxu0 %v999
      %1017 = vmatprep.subr.bf16.mxu0 0
      %1018 = vmatpush2.bf16.msra.mxu0 0
      %1019 = vmatprep.subr.bf16.mxu0 0
      %1020 = vmatpush2.bf16.msra.mxu0 0
      %1021 = vmatprep.subr.bf16.mxu0 0
      %1022 = vmatpush2.bf16.msra.mxu0 0
      %1023 = vmatprep.subr.bf16.mxu0 0
      %1024 = vmatpush2.bf16.msra.mxu0 0
      %1025 = vmatprep.subr.bf16.mxu0 0
      %1026 = vmatpush2.bf16.msra.mxu0 0
      %1027 = vmatprep.subr.bf16.mxu0 0
      %1028 = vmatpush2.bf16.msra.mxu0 0
      %1029 = vmatprep.subr.bf16.mxu0 0
      %1030 = vmatpush2.bf16.msra.mxu0 0
      %1031 = vmatprep.subr.bf16.mxu0 0
      %1032 = vmatpush2.bf16.msra.mxu0 0
      %1033 = vmatprep.mubr.bf16.mxu0 0
      %1034 = vmatmul.mubr.bf16.gmra.mxu0 %v951
      %v1035 = vpop.f32.mrf.mxu0
      %v1036 = vadd.f32 %v744, %v1035
      %v1037 = vpop.f32.mrf.mxu0
      %v1038 = vpop.f32.mrf.mxu0
      %v1039 = vadd.f32 %v747, %v1038
      %v1040 = vpop.f32.mrf.mxu0
      %1041 = vmatprep.mubr.bf16.mxu0 0
      %1042 = vmatmul.mubr.bf16.gmra.mxu0 %v954
      %v1043 = vpop.f32.mrf.mxu0
      %v1044 = vadd.f32 %v752, %v1043
      %v1045 = vpop.f32.mrf.mxu0
      %v1046 = vpop.f32.mrf.mxu0
      %v1047 = vadd.f32 %v755, %v1046
      %v1048 = vpop.f32.mrf.mxu0
      %1049 = vmatprep.mubr.bf16.mxu0 0
      %1050 = vmatmul.mubr.bf16.gmra.mxu0 %v957
      %v1051 = vpop.f32.mrf.mxu0
      %v1052 = vadd.f32 %v760, %v1051
      %v1053 = vpop.f32.mrf.mxu0
      %v1054 = vpop.f32.mrf.mxu0
      %v1055 = vadd.f32 %v763, %v1054
      %v1056 = vpop.f32.mrf.mxu0
      %1057 = vmatprep.mubr.bf16.mxu0 0
      %1058 = vmatmul.mubr.bf16.gmra.mxu0 %v960
      %v1059 = vpop.f32.mrf.mxu0
      %v1060 = vadd.f32 %v768, %v1059
      %v1061 = vpop.f32.mrf.mxu0
      %v1062 = vpop.f32.mrf.mxu0
      %v1063 = vadd.f32 %v771, %v1062
      %v1064 = vpop.f32.mrf.mxu0
      %1065 = vmatprep.mubr.bf16.mxu0 0
      %1066 = vmatmul.mubr.bf16.gmra.mxu0 %v963
      %v1067 = vpop.f32.mrf.mxu0
      %v1068 = vadd.f32 %v776, %v1067
      %v1069 = vpop.f32.mrf.mxu0
      %v1070 = vpop.f32.mrf.mxu0
      %v1071 = vadd.f32 %v779, %v1070
      %v1072 = vpop.f32.mrf.mxu0
      %1073 = vmatprep.mubr.bf16.mxu0 0
      %1074 = vmatmul.mubr.bf16.gmra.mxu0 %v966
      %v1075 = vpop.f32.mrf.mxu0
      %v1076 = vadd.f32 %v784, %v1075
      %v1077 = vpop.f32.mrf.mxu0
      %v1078 = vpop.f32.mrf.mxu0
      %v1079 = vadd.f32 %v787, %v1078
      %v1080 = vpop.f32.mrf.mxu0
      %1081 = vmatprep.mubr.bf16.mxu0 0
      %1082 = vmatmul.mubr.bf16.gmra.mxu0 %v969
      %v1083 = vpop.f32.mrf.mxu0
      %v1084 = vadd.f32 %v792, %v1083
      %v1085 = vpop.f32.mrf.mxu0
      %v1086 = vpop.f32.mrf.mxu0
      %v1087 = vadd.f32 %v795, %v1086
      %v1088 = vpop.f32.mrf.mxu0
      %1089 = vmatprep.mubr.bf16.mxu0 0
      %1090 = vmatmul.mubr.bf16.gmra.mxu0 %v972
      %v1091 = vpop.f32.mrf.mxu0
      %v1092 = vadd.f32 %v800, %v1091
      %v1093 = vpop.f32.mrf.mxu0
      %v1094 = vpop.f32.mrf.mxu0
      %v1095 = vadd.f32 %v803, %v1094
      %v1096 = vpop.f32.mrf.mxu0
      %1097 = vmatprep.mubr.bf16.mxu0 0
      %1098 = vmatmul.mubr.bf16.gmra.mxu0 %v975
      %v1099 = vpop.f32.mrf.mxu0
      %v1100 = vadd.f32 %v808, %v1099
      %v1101 = vpop.f32.mrf.mxu0
      %v1102 = vpop.f32.mrf.mxu0
      %v1103 = vadd.f32 %v811, %v1102
      %v1104 = vpop.f32.mrf.mxu0
      %1105 = vmatprep.mubr.bf16.mxu0 0
      %1106 = vmatmul.mubr.bf16.gmra.mxu0 %v978
      %v1107 = vpop.f32.mrf.mxu0
      %v1108 = vadd.f32 %v816, %v1107
      %v1109 = vpop.f32.mrf.mxu0
      %v1110 = vpop.f32.mrf.mxu0
      %v1111 = vadd.f32 %v819, %v1110
      %v1112 = vpop.f32.mrf.mxu0
      %1113 = vmatprep.mubr.bf16.mxu0 0
      %1114 = vmatmul.mubr.bf16.gmra.mxu0 %v981
      %v1115 = vpop.f32.mrf.mxu0
      %v1116 = vadd.f32 %v824, %v1115
      %v1117 = vpop.f32.mrf.mxu0
      %v1118 = vpop.f32.mrf.mxu0
      %v1119 = vadd.f32 %v827, %v1118
      %v1120 = vpop.f32.mrf.mxu0
      %1121 = vmatprep.mubr.bf16.mxu0 0
      %1122 = vmatmul.mubr.bf16.gmra.mxu0 %v984
      %v1123 = vpop.f32.mrf.mxu0
      %v1124 = vadd.f32 %v832, %v1123
      %v1125 = vpop.f32.mrf.mxu0
      %v1126 = vpop.f32.mrf.mxu0
      %v1127 = vadd.f32 %v835, %v1126
      %v1128 = vpop.f32.mrf.mxu0
      %1129 = vmatprep.mubr.bf16.mxu0 0
      %1130 = vmatmul.mubr.bf16.gmra.mxu0 %v987
      %v1131 = vpop.f32.mrf.mxu0
      %v1132 = vadd.f32 %v840, %v1131
      %v1133 = vpop.f32.mrf.mxu0
      %v1134 = vpop.f32.mrf.mxu0
      %v1135 = vadd.f32 %v843, %v1134
      %v1136 = vpop.f32.mrf.mxu0
      %1137 = vmatprep.mubr.bf16.mxu0 0
      %1138 = vmatmul.mubr.bf16.gmra.mxu0 %v990
      %v1139 = vpop.f32.mrf.mxu0
      %v1140 = vadd.f32 %v848, %v1139
      %v1141 = vpop.f32.mrf.mxu0
      %v1142 = vpop.f32.mrf.mxu0
      %v1143 = vadd.f32 %v851, %v1142
      %v1144 = vpop.f32.mrf.mxu0
      %1145 = vmatprep.mubr.bf16.mxu0 0
      %1146 = vmatmul.mubr.bf16.gmra.mxu0 %v993
      %v1147 = vpop.f32.mrf.mxu0
      %v1148 = vadd.f32 %v856, %v1147
      %v1149 = vpop.f32.mrf.mxu0
      %v1150 = vpop.f32.mrf.mxu0
      %v1151 = vadd.f32 %v859, %v1150
      %v1152 = vpop.f32.mrf.mxu0
      %1153 = vmatprep.mubr.bf16.mxu0 0
      %1154 = vmatmul.mubr.bf16.gmra.mxu0 %v996
      %v1155 = vpop.f32.mrf.mxu0
      %v1156 = vadd.f32 %v864, %v1155
      %v1157 = vpop.f32.mrf.mxu0
      %v1158 = vpop.f32.mrf.mxu0
      %v1159 = vadd.f32 %v867, %v1158
      %v1160 = vpop.f32.mrf.mxu0
      %1161 = vdwg.mxu0
      %vm1178 = vcmask 1042432
      %vm1179 = vcmask 1046532
      %vm1180 = vmor %vm1178, %vm1179
      %v1181 = vrot.slane %v164, 5
      %v1182 = vrot.slane %v1181, 4
      %v1183 = vrot.slane %v165, 5
      %v1184 = vsel %vm1180, %v1182, %v1183
      %v1185 = vrot.slane %v1183, 4
      %v1186 = vrot.slane %v166, 5
      %v1187 = vsel %vm1180, %v1185, %v1186
      %v1188 = vrot.slane %v167, 5
      %v1189 = vrot.slane %v1188, 4
      %v1190 = vrot.slane %v168, 5
      %v1191 = vsel %vm1180, %v1189, %v1190
      %v1192 = vrot.slane %v1190, 4
      %v1193 = vrot.slane %v169, 5
      %v1194 = vsel %vm1180, %v1192, %v1193
      %v1195 = vrot.slane %v170, 5
      %v1196 = vrot.slane %v1195, 4
      %v1197 = vrot.slane %v171, 5
      %v1198 = vsel %vm1180, %v1196, %v1197
      %v1199 = vrot.slane %v1197, 4
      %v1200 = vrot.slane %v172, 5
      %v1201 = vsel %vm1180, %v1199, %v1200
      %v1202 = vrot.slane %v173, 5
      %v1203 = vrot.slane %v1202, 4
      %v1204 = vrot.slane %v174, 5
      %v1205 = vsel %vm1180, %v1203, %v1204
      %v1206 = vrot.slane %v1204, 4
      %v1207 = vrot.slane %v175, 5
      %v1208 = vsel %vm1180, %v1206, %v1207
      %v1209 = vrot.slane %v176, 5
      %v1210 = vrot.slane %v1209, 4
      %v1211 = vrot.slane %v177, 5
      %v1212 = vsel %vm1180, %v1210, %v1211
      %v1213 = vrot.slane %v1211, 4
      %v1214 = vrot.slane %v178, 5
      %v1215 = vsel %vm1180, %v1213, %v1214
      %v1216 = vrot.slane %v179, 5
      %v1217 = vrot.slane %v1216, 4
      %v1218 = vrot.slane %v180, 5
      %v1219 = vsel %vm1180, %v1217, %v1218
      %v1220 = vrot.slane %v1218, 4
      %v1221 = vrot.slane %v181, 5
      %v1222 = vsel %vm1180, %v1220, %v1221
      %v1223 = vrot.slane %v182, 5
      %v1224 = vrot.slane %v1223, 4
      %v1225 = vrot.slane %v183, 5
      %v1226 = vsel %vm1180, %v1224, %v1225
      %v1227 = vrot.slane %v1225, 4
      %v1228 = vrot.slane %v184, 5
      %v1229 = vsel %vm1180, %v1227, %v1228
      %v1230 = vrot.slane %v185, 5
      %v1231 = vrot.slane %v1230, 4
      %v1232 = vrot.slane %v186, 5
      %v1233 = vsel %vm1180, %v1231, %v1232
      %v1234 = vrot.slane %v1232, 4
      %v1235 = vrot.slane %v187, 5
      %v1236 = vsel %vm1180, %v1234, %v1235
      %v1237 = vrot.slane %v188, 5
      %v1238 = vrot.slane %v1237, 4
      %v1239 = vrot.slane %v189, 5
      %v1240 = vsel %vm1180, %v1238, %v1239
      %v1241 = vrot.slane %v1239, 4
      %v1242 = vrot.slane %v190, 5
      %v1243 = vsel %vm1180, %v1241, %v1242
      %v1244 = vrot.slane %v191, 5
      %v1245 = vrot.slane %v1244, 4
      %v1246 = vrot.slane %v192, 5
      %v1247 = vsel %vm1180, %v1245, %v1246
      %v1248 = vrot.slane %v1246, 4
      %v1249 = vrot.slane %v193, 5
      %v1250 = vsel %vm1180, %v1248, %v1249
      %v1251 = vrot.slane %v194, 5
      %v1252 = vrot.slane %v1251, 4
      %v1253 = vrot.slane %v195, 5
      %v1254 = vsel %vm1180, %v1252, %v1253
      %v1255 = vrot.slane %v1253, 4
      %v1256 = vrot.slane %v196, 5
      %v1257 = vsel %vm1180, %v1255, %v1256
      %v1258 = vrot.slane %v197, 5
      %v1259 = vrot.slane %v1258, 4
      %v1260 = vrot.slane %v198, 5
      %v1261 = vsel %vm1180, %v1259, %v1260
      %v1262 = vrot.slane %v1260, 4
      %v1263 = vrot.slane %v199, 5
      %v1264 = vsel %vm1180, %v1262, %v1263
      %v1265 = vrot.slane %v200, 5
      %v1266 = vrot.slane %v1265, 4
      %v1267 = vrot.slane %v201, 5
      %v1268 = vsel %vm1180, %v1266, %v1267
      %v1269 = vrot.slane %v1267, 4
      %v1270 = vrot.slane %v202, 5
      %v1271 = vsel %vm1180, %v1269, %v1270
      %v1272 = vrot.slane %v203, 5
      %v1273 = vrot.slane %v1272, 4
      %v1274 = vrot.slane %v204, 5
      %v1275 = vsel %vm1180, %v1273, %v1274
      %v1276 = vrot.slane %v1274, 4
      %v1277 = vrot.slane %v205, 5
      %v1278 = vsel %vm1180, %v1276, %v1277
      %v1279 = vrot.slane %v206, 5
      %v1280 = vrot.slane %v1279, 4
      %v1281 = vrot.slane %v207, 5
      %v1282 = vsel %vm1180, %v1280, %v1281
      %v1283 = vrot.slane %v1281, 4
      %v1284 = vrot.slane %v208, 5
      %v1285 = vsel %vm1180, %v1283, %v1284
      %v1286 = vrot.slane %v209, 5
      %v1287 = vrot.slane %v1286, 4
      %v1288 = vrot.slane %v210, 5
      %v1289 = vsel %vm1180, %v1287, %v1288
      %v1290 = vrot.slane %v1288, 4
      %v1291 = vrot.slane %v211, 5
      %v1292 = vsel %vm1180, %v1290, %v1291
      %s1293 = scalar_lea.vmem %s1, 4
      %v1294 = vld [vmem:[%s1293] sm:$0x3]
      %v1295 = vunpack.c.l.b16 %v1184
      %v1296 = vunpack.c.l.b16 %v1187
      %v1297 = vunpack.c.l.b16 %v1191
      %v1298 = vunpack.c.l.b16 %v1194
      %v1299 = vunpack.c.l.b16 %v1198
      %v1300 = vunpack.c.l.b16 %v1201
      %v1301 = vunpack.c.l.b16 %v1205
      %v1302 = vunpack.c.l.b16 %v1208
      %v1303 = vunpack.c.l.b16 %v1212
      %v1304 = vunpack.c.l.b16 %v1215
      %v1305 = vunpack.c.l.b16 %v1219
      %v1306 = vunpack.c.l.b16 %v1222
      %v1307 = vunpack.c.l.b16 %v1226
      %v1308 = vunpack.c.l.b16 %v1229
      %v1309 = vunpack.c.l.b16 %v1233
      %v1310 = vunpack.c.l.b16 %v1236
      %v1311 = vunpack.c.l.b16 %v1240
      %v1312 = vunpack.c.l.b16 %v1243
      %v1313 = vunpack.c.l.b16 %v1247
      %v1314 = vunpack.c.l.b16 %v1250
      %v1315 = vunpack.c.l.b16 %v1254
      %v1316 = vunpack.c.l.b16 %v1257
      %v1317 = vunpack.c.l.b16 %v1261
      %v1318 = vunpack.c.l.b16 %v1264
      %v1319 = vunpack.c.l.b16 %v1268
      %v1320 = vunpack.c.l.b16 %v1271
      %v1321 = vunpack.c.l.b16 %v1275
      %v1322 = vunpack.c.l.b16 %v1278
      %v1323 = vunpack.c.l.b16 %v1282
      %v1324 = vunpack.c.l.b16 %v1285
      %v1325 = vunpack.c.l.b16 %v1289
      %v1326 = vunpack.c.l.b16 %v1292
      %v1327 = vpack.c.b16 %v1296, %v1295
      %v1328 = vpack.c.b16 %v1298, %v1297
      %v1329 = vpack.c.b16 %v1300, %v1299
      %v1330 = vpack.c.b16 %v1302, %v1301
      %v1331 = vpack.c.b16 %v1304, %v1303
      %v1332 = vpack.c.b16 %v1306, %v1305
      %v1333 = vpack.c.b16 %v1308, %v1307
      %v1334 = vpack.c.b16 %v1310, %v1309
      %v1335 = vpack.c.b16 %v1312, %v1311
      %v1336 = vpack.c.b16 %v1314, %v1313
      %v1337 = vpack.c.b16 %v1316, %v1315
      %v1338 = vpack.c.b16 %v1318, %v1317
      %v1339 = vpack.c.b16 %v1320, %v1319
      %v1340 = vpack.c.b16 %v1322, %v1321
      %v1341 = vpack.c.b16 %v1324, %v1323
      %v1342 = vpack.c.b16 %v1326, %v1325
      %v1344 = vsel %vm656, %v1327, 0
      %v1347 = vsel %vm656, %v1328, 0
      %v1350 = vsel %vm656, %v1329, 0
      %v1353 = vsel %vm656, %v1330, 0
      %v1356 = vsel %vm656, %v1331, 0
      %v1359 = vsel %vm656, %v1332, 0
      %v1362 = vsel %vm656, %v1333, 0
      %v1365 = vsel %vm656, %v1334, 0
      %v1368 = vsel %vm656, %v1335, 0
      %v1371 = vsel %vm656, %v1336, 0
      %v1374 = vsel %vm656, %v1337, 0
      %v1377 = vsel %vm656, %v1338, 0
      %v1380 = vsel %vm656, %v1339, 0
      %v1383 = vsel %vm656, %v1340, 0
      %v1386 = vsel %vm656, %v1341, 0
      %v1389 = vsel %vm656, %v1342, 0
      %v1392 = vsel %vm705, %v1294, 0
      %1394 = vmatprep.subr.bf16.mxu0 0
      %1395 = vmatpush1.bf16.msra.mxu0 0
      %1396 = vmatprep.subr.bf16.mxu0 0
      %1397 = vmatpush1.bf16.msra.mxu0 0
      %1398 = vmatprep.subr.bf16.mxu0 0
      %1399 = vmatpush1.bf16.msra.mxu0 0
      %1400 = vmatprep.subr.bf16.mxu0 0
      %1401 = vmatpush1.bf16.msra.mxu0 0
      %1402 = vmatprep.subr.bf16.mxu0 0
      %1403 = vmatpush1.bf16.msra.mxu0 0
      %1404 = vmatprep.subr.bf16.mxu0 0
      %1405 = vmatpush1.bf16.msra.mxu0 0
      %1406 = vmatprep.subr.bf16.mxu0 0
      %1407 = vmatpush1.bf16.msra.mxu0 0
      %1408 = vmatprep.subr.bf16.mxu0 0
      %1409 = vmatpush1.bf16.msra.mxu0 %v1392
      %1410 = vmatprep.subr.bf16.mxu0 0
      %1411 = vmatpush2.bf16.msra.mxu0 0
      %1412 = vmatprep.subr.bf16.mxu0 0
      %1413 = vmatpush2.bf16.msra.mxu0 0
      %1414 = vmatprep.subr.bf16.mxu0 0
      %1415 = vmatpush2.bf16.msra.mxu0 0
      %1416 = vmatprep.subr.bf16.mxu0 0
      %1417 = vmatpush2.bf16.msra.mxu0 0
      %1418 = vmatprep.subr.bf16.mxu0 0
      %1419 = vmatpush2.bf16.msra.mxu0 0
      %1420 = vmatprep.subr.bf16.mxu0 0
      %1421 = vmatpush2.bf16.msra.mxu0 0
      %1422 = vmatprep.subr.bf16.mxu0 0
      %1423 = vmatpush2.bf16.msra.mxu0 0
      %1424 = vmatprep.subr.bf16.mxu0 0
      %1425 = vmatpush2.bf16.msra.mxu0 0
      %1426 = vmatprep.mubr.bf16.mxu0 0
      %1427 = vmatmul.mubr.bf16.gmra.mxu0 %v1344
      %v1428 = vpop.f32.mrf.mxu0
      %v1429 = vadd.f32 0.0, %v1428
      %v1430 = vpop.f32.mrf.mxu0
      %v1431 = vpop.f32.mrf.mxu0
      %v1432 = vadd.f32 0.0, %v1431
      %v1433 = vpop.f32.mrf.mxu0
      %1434 = vmatprep.mubr.bf16.mxu0 0
      %1435 = vmatmul.mubr.bf16.gmra.mxu0 %v1347
      %v1436 = vpop.f32.mrf.mxu0
      %v1437 = vadd.f32 0.0, %v1436
      %v1438 = vpop.f32.mrf.mxu0
      %v1439 = vpop.f32.mrf.mxu0
      %v1440 = vadd.f32 0.0, %v1439
      %v1441 = vpop.f32.mrf.mxu0
      %1442 = vmatprep.mubr.bf16.mxu0 0
      %1443 = vmatmul.mubr.bf16.gmra.mxu0 %v1350
      %v1444 = vpop.f32.mrf.mxu0
      %v1445 = vadd.f32 0.0, %v1444
      %v1446 = vpop.f32.mrf.mxu0
      %v1447 = vpop.f32.mrf.mxu0
      %v1448 = vadd.f32 0.0, %v1447
      %v1449 = vpop.f32.mrf.mxu0
      %1450 = vmatprep.mubr.bf16.mxu0 0
      %1451 = vmatmul.mubr.bf16.gmra.mxu0 %v1353
      %v1452 = vpop.f32.mrf.mxu0
      %v1453 = vadd.f32 0.0, %v1452
      %v1454 = vpop.f32.mrf.mxu0
      %v1455 = vpop.f32.mrf.mxu0
      %v1456 = vadd.f32 0.0, %v1455
      %v1457 = vpop.f32.mrf.mxu0
      %1458 = vmatprep.mubr.bf16.mxu0 0
      %1459 = vmatmul.mubr.bf16.gmra.mxu0 %v1356
      %v1460 = vpop.f32.mrf.mxu0
      %v1461 = vadd.f32 0.0, %v1460
      %v1462 = vpop.f32.mrf.mxu0
      %v1463 = vpop.f32.mrf.mxu0
      %v1464 = vadd.f32 0.0, %v1463
      %v1465 = vpop.f32.mrf.mxu0
      %1466 = vmatprep.mubr.bf16.mxu0 0
      %1467 = vmatmul.mubr.bf16.gmra.mxu0 %v1359
      %v1468 = vpop.f32.mrf.mxu0
      %v1469 = vadd.f32 0.0, %v1468
      %v1470 = vpop.f32.mrf.mxu0
      %v1471 = vpop.f32.mrf.mxu0
      %v1472 = vadd.f32 0.0, %v1471
      %v1473 = vpop.f32.mrf.mxu0
      %1474 = vmatprep.mubr.bf16.mxu0 0
      %1475 = vmatmul.mubr.bf16.gmra.mxu0 %v1362
      %v1476 = vpop.f32.mrf.mxu0
      %v1477 = vadd.f32 0.0, %v1476
      %v1478 = vpop.f32.mrf.mxu0
      %v1479 = vpop.f32.mrf.mxu0
      %v1480 = vadd.f32 0.0, %v1479
      %v1481 = vpop.f32.mrf.mxu0
      %1482 = vmatprep.mubr.bf16.mxu0 0
      %1483 = vmatmul.mubr.bf16.gmra.mxu0 %v1365
      %v1484 = vpop.f32.mrf.mxu0
      %v1485 = vadd.f32 0.0, %v1484
      %v1486 = vpop.f32.mrf.mxu0
      %v1487 = vpop.f32.mrf.mxu0
      %v1488 = vadd.f32 0.0, %v1487
      %v1489 = vpop.f32.mrf.mxu0
      %1490 = vmatprep.mubr.bf16.mxu0 0
      %1491 = vmatmul.mubr.bf16.gmra.mxu0 %v1368
      %v1492 = vpop.f32.mrf.mxu0
      %v1493 = vadd.f32 0.0, %v1492
      %v1494 = vpop.f32.mrf.mxu0
      %v1495 = vpop.f32.mrf.mxu0
      %v1496 = vadd.f32 0.0, %v1495
      %v1497 = vpop.f32.mrf.mxu0
      %1498 = vmatprep.mubr.bf16.mxu0 0
      %1499 = vmatmul.mubr.bf16.gmra.mxu0 %v1371
      %v1500 = vpop.f32.mrf.mxu0
      %v1501 = vadd.f32 0.0, %v1500
      %v1502 = vpop.f32.mrf.mxu0
      %v1503 = vpop.f32.mrf.mxu0
      %v1504 = vadd.f32 0.0, %v1503
      %v1505 = vpop.f32.mrf.mxu0
      %1506 = vmatprep.mubr.bf16.mxu0 0
      %1507 = vmatmul.mubr.bf16.gmra.mxu0 %v1374
      %v1508 = vpop.f32.mrf.mxu0
      %v1509 = vadd.f32 0.0, %v1508
      %v1510 = vpop.f32.mrf.mxu0
      %v1511 = vpop.f32.mrf.mxu0
      %v1512 = vadd.f32 0.0, %v1511
      %v1513 = vpop.f32.mrf.mxu0
      %1514 = vmatprep.mubr.bf16.mxu0 0
      %1515 = vmatmul.mubr.bf16.gmra.mxu0 %v1377
      %v1516 = vpop.f32.mrf.mxu0
      %v1517 = vadd.f32 0.0, %v1516
      %v1518 = vpop.f32.mrf.mxu0
      %v1519 = vpop.f32.mrf.mxu0
      %v1520 = vadd.f32 0.0, %v1519
      %v1521 = vpop.f32.mrf.mxu0
      %1522 = vmatprep.mubr.bf16.mxu0 0
      %1523 = vmatmul.mubr.bf16.gmra.mxu0 %v1380
      %v1524 = vpop.f32.mrf.mxu0
      %v1525 = vadd.f32 0.0, %v1524
      %v1526 = vpop.f32.mrf.mxu0
      %v1527 = vpop.f32.mrf.mxu0
      %v1528 = vadd.f32 0.0, %v1527
      %v1529 = vpop.f32.mrf.mxu0
      %1530 = vmatprep.mubr.bf16.mxu0 0
      %1531 = vmatmul.mubr.bf16.gmra.mxu0 %v1383
      %v1532 = vpop.f32.mrf.mxu0
      %v1533 = vadd.f32 0.0, %v1532
      %v1534 = vpop.f32.mrf.mxu0
      %v1535 = vpop.f32.mrf.mxu0
      %v1536 = vadd.f32 0.0, %v1535
      %v1537 = vpop.f32.mrf.mxu0
      %1538 = vmatprep.mubr.bf16.mxu0 0
      %1539 = vmatmul.mubr.bf16.gmra.mxu0 %v1386
      %v1540 = vpop.f32.mrf.mxu0
      %v1541 = vadd.f32 0.0, %v1540
      %v1542 = vpop.f32.mrf.mxu0
      %v1543 = vpop.f32.mrf.mxu0
      %v1544 = vadd.f32 0.0, %v1543
      %v1545 = vpop.f32.mrf.mxu0
      %1546 = vmatprep.mubr.bf16.mxu0 0
      %1547 = vmatmul.mubr.bf16.gmra.mxu0 %v1389
      %v1548 = vpop.f32.mrf.mxu0
      %v1549 = vadd.f32 0.0, %v1548
      %v1550 = vpop.f32.mrf.mxu0
      %v1551 = vpop.f32.mrf.mxu0
      %v1552 = vadd.f32 0.0, %v1551
      %v1553 = vpop.f32.mrf.mxu0
      %1554 = vdwg.mxu0
      %v1555 = vadd.f32 %v1036, %v1429
      %v1556 = vadd.f32 %v1039, %v1432
      %v1557 = vadd.f32 %v1044, %v1437
      %v1558 = vadd.f32 %v1047, %v1440
      %v1559 = vadd.f32 %v1052, %v1445
      %v1560 = vadd.f32 %v1055, %v1448
      %v1561 = vadd.f32 %v1060, %v1453
      %v1562 = vadd.f32 %v1063, %v1456
      %v1563 = vadd.f32 %v1068, %v1461
      %v1564 = vadd.f32 %v1071, %v1464
      %v1565 = vadd.f32 %v1076, %v1469
      %v1566 = vadd.f32 %v1079, %v1472
      %v1567 = vadd.f32 %v1084, %v1477
      %v1568 = vadd.f32 %v1087, %v1480
      %v1569 = vadd.f32 %v1092, %v1485
      %v1570 = vadd.f32 %v1095, %v1488
      %v1571 = vadd.f32 %v1100, %v1493
      %v1572 = vadd.f32 %v1103, %v1496
      %v1573 = vadd.f32 %v1108, %v1501
      %v1574 = vadd.f32 %v1111, %v1504
      %v1575 = vadd.f32 %v1116, %v1509
      %v1576 = vadd.f32 %v1119, %v1512
      %v1577 = vadd.f32 %v1124, %v1517
      %v1578 = vadd.f32 %v1127, %v1520
      %v1579 = vadd.f32 %v1132, %v1525
      %v1580 = vadd.f32 %v1135, %v1528
      %v1581 = vadd.f32 %v1140, %v1533
      %v1582 = vadd.f32 %v1143, %v1536
      %v1583 = vadd.f32 %v1148, %v1541
      %v1584 = vadd.f32 %v1151, %v1544
      %v1585 = vadd.f32 %v1156, %v1549
      %v1586 = vadd.f32 %v1159, %v1552
      %s1587 = scalar_lea.vmem %s1, 6
      %v1588 = vld [vmem:[%s1587] sm:$0x3]
      %v1591 = vunpack.c.l.b16 %v212
      %v1592 = vunpack.c.l.b16 %v213
      %v1593 = vpack.c.b16 %v1592, %v1591
      %v1595 = vsel %vm656, %v1593, 0
      %v1598 = vsel %vm705, %v1588, 0
      %1600 = vmatprep.subr.bf16.mxu0 0
      %1601 = vmatpush1.bf16.msra.mxu0 0
      %1602 = vmatprep.subr.bf16.mxu0 0
      %1603 = vmatpush1.bf16.msra.mxu0 0
      %1604 = vmatprep.subr.bf16.mxu0 0
      %1605 = vmatpush1.bf16.msra.mxu0 0
      %1606 = vmatprep.subr.bf16.mxu0 0
      %1607 = vmatpush1.bf16.msra.mxu0 0
      %1608 = vmatprep.subr.bf16.mxu0 0
      %1609 = vmatpush1.bf16.msra.mxu0 0
      %1610 = vmatprep.subr.bf16.mxu0 0
      %1611 = vmatpush1.bf16.msra.mxu0 0
      %1612 = vmatprep.subr.bf16.mxu0 0
      %1613 = vmatpush1.bf16.msra.mxu0 0
      %1614 = vmatprep.subr.bf16.mxu0 0
      %1615 = vmatpush1.bf16.msra.mxu0 %v1598
      %1616 = vmatprep.subr.bf16.mxu0 0
      %1617 = vmatpush2.bf16.msra.mxu0 0
      %1618 = vmatprep.subr.bf16.mxu0 0
      %1619 = vmatpush2.bf16.msra.mxu0 0
      %1620 = vmatprep.subr.bf16.mxu0 0
      %1621 = vmatpush2.bf16.msra.mxu0 0
      %1622 = vmatprep.subr.bf16.mxu0 0
      %1623 = vmatpush2.bf16.msra.mxu0 0
      %1624 = vmatprep.subr.bf16.mxu0 0
      %1625 = vmatpush2.bf16.msra.mxu0 0
      %1626 = vmatprep.subr.bf16.mxu0 0
      %1627 = vmatpush2.bf16.msra.mxu0 0
      %1628 = vmatprep.subr.bf16.mxu0 0
      %1629 = vmatpush2.bf16.msra.mxu0 0
      %1630 = vmatprep.subr.bf16.mxu0 0
      %1631 = vmatpush2.bf16.msra.mxu0 0
      %1632 = vmatprep.mubr.bf16.mxu0 0
      %1633 = vmatmul.mubr.bf16.gmra.mxu0 %v954
      %v1634 = vpop.f32.mrf.mxu0
      %v1635 = vadd.f32 0.0, %v1634
      %v1636 = vpop.f32.mrf.mxu0
      %v1637 = vpop.f32.mrf.mxu0
      %v1638 = vadd.f32 0.0, %v1637
      %v1639 = vpop.f32.mrf.mxu0
      %1640 = vmatprep.mubr.bf16.mxu0 0
      %1641 = vmatmul.mubr.bf16.gmra.mxu0 %v957
      %v1642 = vpop.f32.mrf.mxu0
      %v1643 = vadd.f32 0.0, %v1642
      %v1644 = vpop.f32.mrf.mxu0
      %v1645 = vpop.f32.mrf.mxu0
      %v1646 = vadd.f32 0.0, %v1645
      %v1647 = vpop.f32.mrf.mxu0
      %1648 = vmatprep.mubr.bf16.mxu0 0
      %1649 = vmatmul.mubr.bf16.gmra.mxu0 %v960
      %v1650 = vpop.f32.mrf.mxu0
      %v1651 = vadd.f32 0.0, %v1650
      %v1652 = vpop.f32.mrf.mxu0
      %v1653 = vpop.f32.mrf.mxu0
      %v1654 = vadd.f32 0.0, %v1653
      %v1655 = vpop.f32.mrf.mxu0
      %1656 = vmatprep.mubr.bf16.mxu0 0
      %1657 = vmatmul.mubr.bf16.gmra.mxu0 %v963
      %v1658 = vpop.f32.mrf.mxu0
      %v1659 = vadd.f32 0.0, %v1658
      %v1660 = vpop.f32.mrf.mxu0
      %v1661 = vpop.f32.mrf.mxu0
      %v1662 = vadd.f32 0.0, %v1661
      %v1663 = vpop.f32.mrf.mxu0
      %1664 = vmatprep.mubr.bf16.mxu0 0
      %1665 = vmatmul.mubr.bf16.gmra.mxu0 %v966
      %v1666 = vpop.f32.mrf.mxu0
      %v1667 = vadd.f32 0.0, %v1666
      %v1668 = vpop.f32.mrf.mxu0
      %v1669 = vpop.f32.mrf.mxu0
      %v1670 = vadd.f32 0.0, %v1669
      %v1671 = vpop.f32.mrf.mxu0
      %1672 = vmatprep.mubr.bf16.mxu0 0
      %1673 = vmatmul.mubr.bf16.gmra.mxu0 %v969
      %v1674 = vpop.f32.mrf.mxu0
      %v1675 = vadd.f32 0.0, %v1674
      %v1676 = vpop.f32.mrf.mxu0
      %v1677 = vpop.f32.mrf.mxu0
      %v1678 = vadd.f32 0.0, %v1677
      %v1679 = vpop.f32.mrf.mxu0
      %1680 = vmatprep.mubr.bf16.mxu0 0
      %1681 = vmatmul.mubr.bf16.gmra.mxu0 %v972
      %v1682 = vpop.f32.mrf.mxu0
      %v1683 = vadd.f32 0.0, %v1682
      %v1684 = vpop.f32.mrf.mxu0
      %v1685 = vpop.f32.mrf.mxu0
      %v1686 = vadd.f32 0.0, %v1685
      %v1687 = vpop.f32.mrf.mxu0
      %1688 = vmatprep.mubr.bf16.mxu0 0
      %1689 = vmatmul.mubr.bf16.gmra.mxu0 %v975
      %v1690 = vpop.f32.mrf.mxu0
      %v1691 = vadd.f32 0.0, %v1690
      %v1692 = vpop.f32.mrf.mxu0
      %v1693 = vpop.f32.mrf.mxu0
      %v1694 = vadd.f32 0.0, %v1693
      %v1695 = vpop.f32.mrf.mxu0
      %1696 = vmatprep.mubr.bf16.mxu0 0
      %1697 = vmatmul.mubr.bf16.gmra.mxu0 %v978
      %v1698 = vpop.f32.mrf.mxu0
      %v1699 = vadd.f32 0.0, %v1698
      %v1700 = vpop.f32.mrf.mxu0
      %v1701 = vpop.f32.mrf.mxu0
      %v1702 = vadd.f32 0.0, %v1701
      %v1703 = vpop.f32.mrf.mxu0
      %1704 = vmatprep.mubr.bf16.mxu0 0
      %1705 = vmatmul.mubr.bf16.gmra.mxu0 %v981
      %v1706 = vpop.f32.mrf.mxu0
      %v1707 = vadd.f32 0.0, %v1706
      %v1708 = vpop.f32.mrf.mxu0
      %v1709 = vpop.f32.mrf.mxu0
      %v1710 = vadd.f32 0.0, %v1709
      %v1711 = vpop.f32.mrf.mxu0
      %1712 = vmatprep.mubr.bf16.mxu0 0
      %1713 = vmatmul.mubr.bf16.gmra.mxu0 %v984
      %v1714 = vpop.f32.mrf.mxu0
      %v1715 = vadd.f32 0.0, %v1714
      %v1716 = vpop.f32.mrf.mxu0
      %v1717 = vpop.f32.mrf.mxu0
      %v1718 = vadd.f32 0.0, %v1717
      %v1719 = vpop.f32.mrf.mxu0
      %1720 = vmatprep.mubr.bf16.mxu0 0
      %1721 = vmatmul.mubr.bf16.gmra.mxu0 %v987
      %v1722 = vpop.f32.mrf.mxu0
      %v1723 = vadd.f32 0.0, %v1722
      %v1724 = vpop.f32.mrf.mxu0
      %v1725 = vpop.f32.mrf.mxu0
      %v1726 = vadd.f32 0.0, %v1725
      %v1727 = vpop.f32.mrf.mxu0
      %1728 = vmatprep.mubr.bf16.mxu0 0
      %1729 = vmatmul.mubr.bf16.gmra.mxu0 %v990
      %v1730 = vpop.f32.mrf.mxu0
      %v1731 = vadd.f32 0.0, %v1730
      %v1732 = vpop.f32.mrf.mxu0
      %v1733 = vpop.f32.mrf.mxu0
      %v1734 = vadd.f32 0.0, %v1733
      %v1735 = vpop.f32.mrf.mxu0
      %1736 = vmatprep.mubr.bf16.mxu0 0
      %1737 = vmatmul.mubr.bf16.gmra.mxu0 %v993
      %v1738 = vpop.f32.mrf.mxu0
      %v1739 = vadd.f32 0.0, %v1738
      %v1740 = vpop.f32.mrf.mxu0
      %v1741 = vpop.f32.mrf.mxu0
      %v1742 = vadd.f32 0.0, %v1741
      %v1743 = vpop.f32.mrf.mxu0
      %1744 = vmatprep.mubr.bf16.mxu0 0
      %1745 = vmatmul.mubr.bf16.gmra.mxu0 %v996
      %v1746 = vpop.f32.mrf.mxu0
      %v1747 = vadd.f32 0.0, %v1746
      %v1748 = vpop.f32.mrf.mxu0
      %v1749 = vpop.f32.mrf.mxu0
      %v1750 = vadd.f32 0.0, %v1749
      %v1751 = vpop.f32.mrf.mxu0
      %1752 = vmatprep.mubr.bf16.mxu0 0
      %1753 = vmatmul.mubr.bf16.gmra.mxu0 %v1595
      %v1754 = vpop.f32.mrf.mxu0
      %v1755 = vadd.f32 0.0, %v1754
      %v1756 = vpop.f32.mrf.mxu0
      %v1757 = vpop.f32.mrf.mxu0
      %v1758 = vadd.f32 0.0, %v1757
      %v1759 = vpop.f32.mrf.mxu0
      %1760 = vdwg.mxu0
      %v1761 = vadd.f32 %v1555, %v1635
      %v1762 = vadd.f32 %v1556, %v1638
      %v1763 = vadd.f32 %v1557, %v1643
      %v1764 = vadd.f32 %v1558, %v1646
      %v1765 = vadd.f32 %v1559, %v1651
      %v1766 = vadd.f32 %v1560, %v1654
      %v1767 = vadd.f32 %v1561, %v1659
      %v1768 = vadd.f32 %v1562, %v1662
      %v1769 = vadd.f32 %v1563, %v1667
      %v1770 = vadd.f32 %v1564, %v1670
      %v1771 = vadd.f32 %v1565, %v1675
      %v1772 = vadd.f32 %v1566, %v1678
      %v1773 = vadd.f32 %v1567, %v1683
      %v1774 = vadd.f32 %v1568, %v1686
      %v1775 = vadd.f32 %v1569, %v1691
      %v1776 = vadd.f32 %v1570, %v1694
      %v1777 = vadd.f32 %v1571, %v1699
      %v1778 = vadd.f32 %v1572, %v1702
      %v1779 = vadd.f32 %v1573, %v1707
      %v1780 = vadd.f32 %v1574, %v1710
      %v1781 = vadd.f32 %v1575, %v1715
      %v1782 = vadd.f32 %v1576, %v1718
      %v1783 = vadd.f32 %v1577, %v1723
      %v1784 = vadd.f32 %v1578, %v1726
      %v1785 = vadd.f32 %v1579, %v1731
      %v1786 = vadd.f32 %v1580, %v1734
      %v1787 = vadd.f32 %v1581, %v1739
      %v1788 = vadd.f32 %v1582, %v1742
      %v1789 = vadd.f32 %v1583, %v1747
      %v1790 = vadd.f32 %v1584, %v1750
      %v1791 = vadd.f32 %v1585, %v1755
      %v1792 = vadd.f32 %v1586, %v1758
      %v1794 = vshrl.u32 %v212, 16
      %v1796 = vrot.slane %v1794, 4
      %v1797 = vshll.u32 %v212, 16
      %v1799 = vrot.slane %v1797, 5
      %v1800 = vor.u32 %v1796, %v1799
      %v1801 = vrot.slane %v1800, 4
      %v1803 = vshll.u32 %v213, 16
      %v1805 = vrot.slane %v1803, 5
      %v1806 = vsel %vm221, %v1801, %v1805
      %v1807 = vshrl.u32 %v213, 16
      %v1809 = vrot.slane %v1807, 4
      %v1810 = vor.u32 %v1809, %v1805
      %v1811 = vrot.slane %v1810, 4
      %v1813 = vshll.u32 %v214, 16
      %v1815 = vrot.slane %v1813, 5
      %v1816 = vsel %vm221, %v1811, %v1815
      %s1817 = scalar_lea.vmem %s1, 8
      %v1818 = vld [vmem:[%s1817] sm:$0x3]
      %v1819 = vunpack.c.l.b16 %v1806
      %v1820 = vunpack.c.l.b16 %v1816
      %v1821 = vpack.c.b16 %v1820, %v1819
      %v1823 = vsel %vm656, %v1821, 0
      %v1826 = vsel %vm705, %v1818, 0
      %1828 = vmatprep.subr.bf16.mxu0 0
      %1829 = vmatpush1.bf16.msra.mxu0 0
      %1830 = vmatprep.subr.bf16.mxu0 0
      %1831 = vmatpush1.bf16.msra.mxu0 0
      %1832 = vmatprep.subr.bf16.mxu0 0
      %1833 = vmatpush1.bf16.msra.mxu0 0
      %1834 = vmatprep.subr.bf16.mxu0 0
      %1835 = vmatpush1.bf16.msra.mxu0 0
      %1836 = vmatprep.subr.bf16.mxu0 0
      %1837 = vmatpush1.bf16.msra.mxu0 0
      %1838 = vmatprep.subr.bf16.mxu0 0
      %1839 = vmatpush1.bf16.msra.mxu0 0
      %1840 = vmatprep.subr.bf16.mxu0 0
      %1841 = vmatpush1.bf16.msra.mxu0 0
      %1842 = vmatprep.subr.bf16.mxu0 0
      %1843 = vmatpush1.bf16.msra.mxu0 %v1826
      %1844 = vmatprep.subr.bf16.mxu0 0
      %1845 = vmatpush2.bf16.msra.mxu0 0
      %1846 = vmatprep.subr.bf16.mxu0 0
      %1847 = vmatpush2.bf16.msra.mxu0 0
      %1848 = vmatprep.subr.bf16.mxu0 0
      %1849 = vmatpush2.bf16.msra.mxu0 0
      %1850 = vmatprep.subr.bf16.mxu0 0
      %1851 = vmatpush2.bf16.msra.mxu0 0
      %1852 = vmatprep.subr.bf16.mxu0 0
      %1853 = vmatpush2.bf16.msra.mxu0 0
      %1854 = vmatprep.subr.bf16.mxu0 0
      %1855 = vmatpush2.bf16.msra.mxu0 0
      %1856 = vmatprep.subr.bf16.mxu0 0
      %1857 = vmatpush2.bf16.msra.mxu0 0
      %1858 = vmatprep.subr.bf16.mxu0 0
      %1859 = vmatpush2.bf16.msra.mxu0 0
      %1860 = vmatprep.mubr.bf16.mxu0 0
      %1861 = vmatmul.mubr.bf16.gmra.mxu0 %v661
      %v1862 = vpop.f32.mrf.mxu0
      %v1863 = vadd.f32 0.0, %v1862
      %v1864 = vpop.f32.mrf.mxu0
      %v1865 = vpop.f32.mrf.mxu0
      %v1866 = vadd.f32 0.0, %v1865
      %v1867 = vpop.f32.mrf.mxu0
      %1868 = vmatprep.mubr.bf16.mxu0 0
      %1869 = vmatmul.mubr.bf16.gmra.mxu0 %v664
      %v1870 = vpop.f32.mrf.mxu0
      %v1871 = vadd.f32 0.0, %v1870
      %v1872 = vpop.f32.mrf.mxu0
      %v1873 = vpop.f32.mrf.mxu0
      %v1874 = vadd.f32 0.0, %v1873
      %v1875 = vpop.f32.mrf.mxu0
      %1876 = vmatprep.mubr.bf16.mxu0 0
      %1877 = vmatmul.mubr.bf16.gmra.mxu0 %v667
      %v1878 = vpop.f32.mrf.mxu0
      %v1879 = vadd.f32 0.0, %v1878
      %v1880 = vpop.f32.mrf.mxu0
      %v1881 = vpop.f32.mrf.mxu0
      %v1882 = vadd.f32 0.0, %v1881
      %v1883 = vpop.f32.mrf.mxu0
      %1884 = vmatprep.mubr.bf16.mxu0 0
      %1885 = vmatmul.mubr.bf16.gmra.mxu0 %v670
      %v1886 = vpop.f32.mrf.mxu0
      %v1887 = vadd.f32 0.0, %v1886
      %v1888 = vpop.f32.mrf.mxu0
      %v1889 = vpop.f32.mrf.mxu0
      %v1890 = vadd.f32 0.0, %v1889
      %v1891 = vpop.f32.mrf.mxu0
      %1892 = vmatprep.mubr.bf16.mxu0 0
      %1893 = vmatmul.mubr.bf16.gmra.mxu0 %v673
      %v1894 = vpop.f32.mrf.mxu0
      %v1895 = vadd.f32 0.0, %v1894
      %v1896 = vpop.f32.mrf.mxu0
      %v1897 = vpop.f32.mrf.mxu0
      %v1898 = vadd.f32 0.0, %v1897
      %v1899 = vpop.f32.mrf.mxu0
      %1900 = vmatprep.mubr.bf16.mxu0 0
      %1901 = vmatmul.mubr.bf16.gmra.mxu0 %v676
      %v1902 = vpop.f32.mrf.mxu0
      %v1903 = vadd.f32 0.0, %v1902
      %v1904 = vpop.f32.mrf.mxu0
      %v1905 = vpop.f32.mrf.mxu0
      %v1906 = vadd.f32 0.0, %v1905
      %v1907 = vpop.f32.mrf.mxu0
      %1908 = vmatprep.mubr.bf16.mxu0 0
      %1909 = vmatmul.mubr.bf16.gmra.mxu0 %v679
      %v1910 = vpop.f32.mrf.mxu0
      %v1911 = vadd.f32 0.0, %v1910
      %v1912 = vpop.f32.mrf.mxu0
      %v1913 = vpop.f32.mrf.mxu0
      %v1914 = vadd.f32 0.0, %v1913
      %v1915 = vpop.f32.mrf.mxu0
      %1916 = vmatprep.mubr.bf16.mxu0 0
      %1917 = vmatmul.mubr.bf16.gmra.mxu0 %v682
      %v1918 = vpop.f32.mrf.mxu0
      %v1919 = vadd.f32 0.0, %v1918
      %v1920 = vpop.f32.mrf.mxu0
      %v1921 = vpop.f32.mrf.mxu0
      %v1922 = vadd.f32 0.0, %v1921
      %v1923 = vpop.f32.mrf.mxu0
      %1924 = vmatprep.mubr.bf16.mxu0 0
      %1925 = vmatmul.mubr.bf16.gmra.mxu0 %v685
      %v1926 = vpop.f32.mrf.mxu0
      %v1927 = vadd.f32 0.0, %v1926
      %v1928 = vpop.f32.mrf.mxu0
      %v1929 = vpop.f32.mrf.mxu0
      %v1930 = vadd.f32 0.0, %v1929
      %v1931 = vpop.f32.mrf.mxu0
      %1932 = vmatprep.mubr.bf16.mxu0 0
      %1933 = vmatmul.mubr.bf16.gmra.mxu0 %v688
      %v1934 = vpop.f32.mrf.mxu0
      %v1935 = vadd.f32 0.0, %v1934
      %v1936 = vpop.f32.mrf.mxu0
      %v1937 = vpop.f32.mrf.mxu0
      %v1938 = vadd.f32 0.0, %v1937
      %v1939 = vpop.f32.mrf.mxu0
      %1940 = vmatprep.mubr.bf16.mxu0 0
      %1941 = vmatmul.mubr.bf16.gmra.mxu0 %v691
      %v1942 = vpop.f32.mrf.mxu0
      %v1943 = vadd.f32 0.0, %v1942
      %v1944 = vpop.f32.mrf.mxu0
      %v1945 = vpop.f32.mrf.mxu0
      %v1946 = vadd.f32 0.0, %v1945
      %v1947 = vpop.f32.mrf.mxu0
      %1948 = vmatprep.mubr.bf16.mxu0 0
      %1949 = vmatmul.mubr.bf16.gmra.mxu0 %v694
      %v1950 = vpop.f32.mrf.mxu0
      %v1951 = vadd.f32 0.0, %v1950
      %v1952 = vpop.f32.mrf.mxu0
      %v1953 = vpop.f32.mrf.mxu0
      %v1954 = vadd.f32 0.0, %v1953
      %v1955 = vpop.f32.mrf.mxu0
      %1956 = vmatprep.mubr.bf16.mxu0 0
      %1957 = vmatmul.mubr.bf16.gmra.mxu0 %v697
      %v1958 = vpop.f32.mrf.mxu0
      %v1959 = vadd.f32 0.0, %v1958
      %v1960 = vpop.f32.mrf.mxu0
      %v1961 = vpop.f32.mrf.mxu0
      %v1962 = vadd.f32 0.0, %v1961
      %v1963 = vpop.f32.mrf.mxu0
      %1964 = vmatprep.mubr.bf16.mxu0 0
      %1965 = vmatmul.mubr.bf16.gmra.mxu0 %v700
      %v1966 = vpop.f32.mrf.mxu0
      %v1967 = vadd.f32 0.0, %v1966
      %v1968 = vpop.f32.mrf.mxu0
      %v1969 = vpop.f32.mrf.mxu0
      %v1970 = vadd.f32 0.0, %v1969
      %v1971 = vpop.f32.mrf.mxu0
      %1972 = vmatprep.mubr.bf16.mxu0 0
      %1973 = vmatmul.mubr.bf16.gmra.mxu0 %v703
      %v1974 = vpop.f32.mrf.mxu0
      %v1975 = vadd.f32 0.0, %v1974
      %v1976 = vpop.f32.mrf.mxu0
      %v1977 = vpop.f32.mrf.mxu0
      %v1978 = vadd.f32 0.0, %v1977
      %v1979 = vpop.f32.mrf.mxu0
      %1980 = vmatprep.mubr.bf16.mxu0 0
      %1981 = vmatmul.mubr.bf16.gmra.mxu0 %v1823
      %v1982 = vpop.f32.mrf.mxu0
      %v1983 = vadd.f32 0.0, %v1982
      %v1984 = vpop.f32.mrf.mxu0
      %v1985 = vpop.f32.mrf.mxu0
      %v1986 = vadd.f32 0.0, %v1985
      %v1987 = vpop.f32.mrf.mxu0
      %1988 = vdwg.mxu0
      %v1989 = vadd.f32 %v1761, %v1863
      %v1990 = vadd.f32 %v1762, %v1866
      %v1991 = vadd.f32 %v1763, %v1871
      %v1992 = vadd.f32 %v1764, %v1874
      %v1993 = vadd.f32 %v1765, %v1879
      %v1994 = vadd.f32 %v1766, %v1882
      %v1995 = vadd.f32 %v1767, %v1887
      %v1996 = vadd.f32 %v1768, %v1890
      %v1997 = vadd.f32 %v1769, %v1895
      %v1998 = vadd.f32 %v1770, %v1898
      %v1999 = vadd.f32 %v1771, %v1903
      %v2000 = vadd.f32 %v1772, %v1906
      %v2001 = vadd.f32 %v1773, %v1911
      %v2002 = vadd.f32 %v1774, %v1914
      %v2003 = vadd.f32 %v1775, %v1919
      %v2004 = vadd.f32 %v1776, %v1922
      %v2005 = vadd.f32 %v1777, %v1927
      %v2006 = vadd.f32 %v1778, %v1930
      %v2007 = vadd.f32 %v1779, %v1935
      %v2008 = vadd.f32 %v1780, %v1938
      %v2009 = vadd.f32 %v1781, %v1943
      %v2010 = vadd.f32 %v1782, %v1946
      %v2011 = vadd.f32 %v1783, %v1951
      %v2012 = vadd.f32 %v1784, %v1954
      %v2013 = vadd.f32 %v1785, %v1959
      %v2014 = vadd.f32 %v1786, %v1962
      %v2015 = vadd.f32 %v1787, %v1967
      %v2016 = vadd.f32 %v1788, %v1970
      %v2017 = vadd.f32 %v1789, %v1975
      %v2018 = vadd.f32 %v1790, %v1978
      %v2019 = vadd.f32 %v1791, %v1983
      %v2020 = vadd.f32 %v1792, %v1986
      %v2022 = vrot.slane %v212, 5
      %v2023 = vrot.slane %v2022, 4
      %v2024 = vrot.slane %v213, 5
      %v2025 = vsel %vm1180, %v2023, %v2024
      %v2026 = vrot.slane %v2024, 4
      %v2027 = vrot.slane %v214, 5
      %v2028 = vsel %vm1180, %v2026, %v2027
      %s2029 = scalar_lea.vmem %s1, 10
      %v2030 = vld [vmem:[%s2029] sm:$0x3]
      %v2031 = vunpack.c.l.b16 %v2025
      %v2032 = vunpack.c.l.b16 %v2028
      %v2033 = vpack.c.b16 %v2032, %v2031
      %v2035 = vsel %vm656, %v2033, 0
      %v2038 = vsel %vm705, %v2030, 0
      %2040 = vmatprep.subr.bf16.mxu0 0
      %2041 = vmatpush1.bf16.msra.mxu0 0
      %2042 = vmatprep.subr.bf16.mxu0 0
      %2043 = vmatpush1.bf16.msra.mxu0 0
      %2044 = vmatprep.subr.bf16.mxu0 0
      %2045 = vmatpush1.bf16.msra.mxu0 0
      %2046 = vmatprep.subr.bf16.mxu0 0
      %2047 = vmatpush1.bf16.msra.mxu0 0
      %2048 = vmatprep.subr.bf16.mxu0 0
      %2049 = vmatpush1.bf16.msra.mxu0 0
      %2050 = vmatprep.subr.bf16.mxu0 0
      %2051 = vmatpush1.bf16.msra.mxu0 0
      %2052 = vmatprep.subr.bf16.mxu0 0
      %2053 = vmatpush1.bf16.msra.mxu0 0
      %2054 = vmatprep.subr.bf16.mxu0 0
      %2055 = vmatpush1.bf16.msra.mxu0 %v2038
      %2056 = vmatprep.subr.bf16.mxu0 0
      %2057 = vmatpush2.bf16.msra.mxu0 0
      %2058 = vmatprep.subr.bf16.mxu0 0
      %2059 = vmatpush2.bf16.msra.mxu0 0
      %2060 = vmatprep.subr.bf16.mxu0 0
      %2061 = vmatpush2.bf16.msra.mxu0 0
      %2062 = vmatprep.subr.bf16.mxu0 0
      %2063 = vmatpush2.bf16.msra.mxu0 0
      %2064 = vmatprep.subr.bf16.mxu0 0
      %2065 = vmatpush2.bf16.msra.mxu0 0
      %2066 = vmatprep.subr.bf16.mxu0 0
      %2067 = vmatpush2.bf16.msra.mxu0 0
      %2068 = vmatprep.subr.bf16.mxu0 0
      %2069 = vmatpush2.bf16.msra.mxu0 0
      %2070 = vmatprep.subr.bf16.mxu0 0
      %2071 = vmatpush2.bf16.msra.mxu0 0
      %2072 = vmatprep.mubr.bf16.mxu0 0
      %2073 = vmatmul.mubr.bf16.gmra.mxu0 %v1347
      %v2074 = vpop.f32.mrf.mxu0
      %v2075 = vadd.f32 0.0, %v2074
      %v2076 = vpop.f32.mrf.mxu0
      %v2077 = vpop.f32.mrf.mxu0
      %v2078 = vadd.f32 0.0, %v2077
      %v2079 = vpop.f32.mrf.mxu0
      %2080 = vmatprep.mubr.bf16.mxu0 0
      %2081 = vmatmul.mubr.bf16.gmra.mxu0 %v1350
      %v2082 = vpop.f32.mrf.mxu0
      %v2083 = vadd.f32 0.0, %v2082
      %v2084 = vpop.f32.mrf.mxu0
      %v2085 = vpop.f32.mrf.mxu0
      %v2086 = vadd.f32 0.0, %v2085
      %v2087 = vpop.f32.mrf.mxu0
      %2088 = vmatprep.mubr.bf16.mxu0 0
      %2089 = vmatmul.mubr.bf16.gmra.mxu0 %v1353
      %v2090 = vpop.f32.mrf.mxu0
      %v2091 = vadd.f32 0.0, %v2090
      %v2092 = vpop.f32.mrf.mxu0
      %v2093 = vpop.f32.mrf.mxu0
      %v2094 = vadd.f32 0.0, %v2093
      %v2095 = vpop.f32.mrf.mxu0
      %2096 = vmatprep.mubr.bf16.mxu0 0
      %2097 = vmatmul.mubr.bf16.gmra.mxu0 %v1356
      %v2098 = vpop.f32.mrf.mxu0
      %v2099 = vadd.f32 0.0, %v2098
      %v2100 = vpop.f32.mrf.mxu0
      %v2101 = vpop.f32.mrf.mxu0
      %v2102 = vadd.f32 0.0, %v2101
      %v2103 = vpop.f32.mrf.mxu0
      %2104 = vmatprep.mubr.bf16.mxu0 0
      %2105 = vmatmul.mubr.bf16.gmra.mxu0 %v1359
      %v2106 = vpop.f32.mrf.mxu0
      %v2107 = vadd.f32 0.0, %v2106
      %v2108 = vpop.f32.mrf.mxu0
      %v2109 = vpop.f32.mrf.mxu0
      %v2110 = vadd.f32 0.0, %v2109
      %v2111 = vpop.f32.mrf.mxu0
      %2112 = vmatprep.mubr.bf16.mxu0 0
      %2113 = vmatmul.mubr.bf16.gmra.mxu0 %v1362
      %v2114 = vpop.f32.mrf.mxu0
      %v2115 = vadd.f32 0.0, %v2114
      %v2116 = vpop.f32.mrf.mxu0
      %v2117 = vpop.f32.mrf.mxu0
      %v2118 = vadd.f32 0.0, %v2117
      %v2119 = vpop.f32.mrf.mxu0
      %2120 = vmatprep.mubr.bf16.mxu0 0
      %2121 = vmatmul.mubr.bf16.gmra.mxu0 %v1365
      %v2122 = vpop.f32.mrf.mxu0
      %v2123 = vadd.f32 0.0, %v2122
      %v2124 = vpop.f32.mrf.mxu0
      %v2125 = vpop.f32.mrf.mxu0
      %v2126 = vadd.f32 0.0, %v2125
      %v2127 = vpop.f32.mrf.mxu0
      %2128 = vmatprep.mubr.bf16.mxu0 0
      %2129 = vmatmul.mubr.bf16.gmra.mxu0 %v1368
      %v2130 = vpop.f32.mrf.mxu0
      %v2131 = vadd.f32 0.0, %v2130
      %v2132 = vpop.f32.mrf.mxu0
      %v2133 = vpop.f32.mrf.mxu0
      %v2134 = vadd.f32 0.0, %v2133
      %v2135 = vpop.f32.mrf.mxu0
      %2136 = vmatprep.mubr.bf16.mxu0 0
      %2137 = vmatmul.mubr.bf16.gmra.mxu0 %v1371
      %v2138 = vpop.f32.mrf.mxu0
      %v2139 = vadd.f32 0.0, %v2138
      %v2140 = vpop.f32.mrf.mxu0
      %v2141 = vpop.f32.mrf.mxu0
      %v2142 = vadd.f32 0.0, %v2141
      %v2143 = vpop.f32.mrf.mxu0
      %2144 = vmatprep.mubr.bf16.mxu0 0
      %2145 = vmatmul.mubr.bf16.gmra.mxu0 %v1374
      %v2146 = vpop.f32.mrf.mxu0
      %v2147 = vadd.f32 0.0, %v2146
      %v2148 = vpop.f32.mrf.mxu0
      %v2149 = vpop.f32.mrf.mxu0
      %v2150 = vadd.f32 0.0, %v2149
      %v2151 = vpop.f32.mrf.mxu0
      %2152 = vmatprep.mubr.bf16.mxu0 0
      %2153 = vmatmul.mubr.bf16.gmra.mxu0 %v1377
      %v2154 = vpop.f32.mrf.mxu0
      %v2155 = vadd.f32 0.0, %v2154
      %v2156 = vpop.f32.mrf.mxu0
      %v2157 = vpop.f32.mrf.mxu0
      %v2158 = vadd.f32 0.0, %v2157
      %v2159 = vpop.f32.mrf.mxu0
      %2160 = vmatprep.mubr.bf16.mxu0 0
      %2161 = vmatmul.mubr.bf16.gmra.mxu0 %v1380
      %v2162 = vpop.f32.mrf.mxu0
      %v2163 = vadd.f32 0.0, %v2162
      %v2164 = vpop.f32.mrf.mxu0
      %v2165 = vpop.f32.mrf.mxu0
      %v2166 = vadd.f32 0.0, %v2165
      %v2167 = vpop.f32.mrf.mxu0
      %2168 = vmatprep.mubr.bf16.mxu0 0
      %2169 = vmatmul.mubr.bf16.gmra.mxu0 %v1383
      %v2170 = vpop.f32.mrf.mxu0
      %v2171 = vadd.f32 0.0, %v2170
      %v2172 = vpop.f32.mrf.mxu0
      %v2173 = vpop.f32.mrf.mxu0
      %v2174 = vadd.f32 0.0, %v2173
      %v2175 = vpop.f32.mrf.mxu0
      %2176 = vmatprep.mubr.bf16.mxu0 0
      %2177 = vmatmul.mubr.bf16.gmra.mxu0 %v1386
      %v2178 = vpop.f32.mrf.mxu0
      %v2179 = vadd.f32 0.0, %v2178
      %v2180 = vpop.f32.mrf.mxu0
      %v2181 = vpop.f32.mrf.mxu0
      %v2182 = vadd.f32 0.0, %v2181
      %v2183 = vpop.f32.mrf.mxu0
      %2184 = vmatprep.mubr.bf16.mxu0 0
      %2185 = vmatmul.mubr.bf16.gmra.mxu0 %v1389
      %v2186 = vpop.f32.mrf.mxu0
      %v2187 = vadd.f32 0.0, %v2186
      %v2188 = vpop.f32.mrf.mxu0
      %v2189 = vpop.f32.mrf.mxu0
      %v2190 = vadd.f32 0.0, %v2189
      %v2191 = vpop.f32.mrf.mxu0
      %2192 = vmatprep.mubr.bf16.mxu0 0
      %2193 = vmatmul.mubr.bf16.gmra.mxu0 %v2035
      %v2194 = vpop.f32.mrf.mxu0
      %v2195 = vadd.f32 0.0, %v2194
      %v2196 = vpop.f32.mrf.mxu0
      %v2197 = vpop.f32.mrf.mxu0
      %v2198 = vadd.f32 0.0, %v2197
      %v2199 = vpop.f32.mrf.mxu0
      %2200 = vdwg.mxu0
      %v2201 = vadd.f32 %v1989, %v2075
      %v2202 = vadd.f32 %v1990, %v2078
      %v2203 = vadd.f32 %v1991, %v2083
      %v2204 = vadd.f32 %v1992, %v2086
      %v2205 = vadd.f32 %v1993, %v2091
      %v2206 = vadd.f32 %v1994, %v2094
      %v2207 = vadd.f32 %v1995, %v2099
      %v2208 = vadd.f32 %v1996, %v2102
      %v2209 = vadd.f32 %v1997, %v2107
      %v2210 = vadd.f32 %v1998, %v2110
      %v2211 = vadd.f32 %v1999, %v2115
      %v2212 = vadd.f32 %v2000, %v2118
      %v2213 = vadd.f32 %v2001, %v2123
      %v2214 = vadd.f32 %v2002, %v2126
      %v2215 = vadd.f32 %v2003, %v2131
      %v2216 = vadd.f32 %v2004, %v2134
      %v2217 = vadd.f32 %v2005, %v2139
      %v2218 = vadd.f32 %v2006, %v2142
      %v2219 = vadd.f32 %v2007, %v2147
      %v2220 = vadd.f32 %v2008, %v2150
      %v2221 = vadd.f32 %v2009, %v2155
      %v2222 = vadd.f32 %v2010, %v2158
      %v2223 = vadd.f32 %v2011, %v2163
      %v2224 = vadd.f32 %v2012, %v2166
      %v2225 = vadd.f32 %v2013, %v2171
      %v2226 = vadd.f32 %v2014, %v2174
      %v2227 = vadd.f32 %v2015, %v2179
      %v2228 = vadd.f32 %v2016, %v2182
      %v2229 = vadd.f32 %v2017, %v2187
      %v2230 = vadd.f32 %v2018, %v2190
      %v2231 = vadd.f32 %v2019, %v2195
      %v2232 = vadd.f32 %v2020, %v2198
      %s2233 = scalar_lea.vmem %s1, 12
      %v2234 = vld [vmem:[%s2233] sm:$0x3]
      %v2237 = vunpack.c.l.b16 %v215
      %v2238 = vunpack.c.l.b16 %v216
      %v2239 = vpack.c.b16 %v2238, %v2237
      %v2241 = vsel %vm656, %v2239, 0
      %v2244 = vsel %vm705, %v2234, 0
      %2246 = vmatprep.subr.bf16.mxu0 0
      %2247 = vmatpush1.bf16.msra.mxu0 0
      %2248 = vmatprep.subr.bf16.mxu0 0
      %2249 = vmatpush1.bf16.msra.mxu0 0
      %2250 = vmatprep.subr.bf16.mxu0 0
      %2251 = vmatpush1.bf16.msra.mxu0 0
      %2252 = vmatprep.subr.bf16.mxu0 0
      %2253 = vmatpush1.bf16.msra.mxu0 0
      %2254 = vmatprep.subr.bf16.mxu0 0
      %2255 = vmatpush1.bf16.msra.mxu0 0
      %2256 = vmatprep.subr.bf16.mxu0 0
      %2257 = vmatpush1.bf16.msra.mxu0 0
      %2258 = vmatprep.subr.bf16.mxu0 0
      %2259 = vmatpush1.bf16.msra.mxu0 0
      %2260 = vmatprep.subr.bf16.mxu0 0
      %2261 = vmatpush1.bf16.msra.mxu0 %v2244
      %2262 = vmatprep.subr.bf16.mxu0 0
      %2263 = vmatpush2.bf16.msra.mxu0 0
      %2264 = vmatprep.subr.bf16.mxu0 0
      %2265 = vmatpush2.bf16.msra.mxu0 0
      %2266 = vmatprep.subr.bf16.mxu0 0
      %2267 = vmatpush2.bf16.msra.mxu0 0
      %2268 = vmatprep.subr.bf16.mxu0 0
      %2269 = vmatpush2.bf16.msra.mxu0 0
      %2270 = vmatprep.subr.bf16.mxu0 0
      %2271 = vmatpush2.bf16.msra.mxu0 0
      %2272 = vmatprep.subr.bf16.mxu0 0
      %2273 = vmatpush2.bf16.msra.mxu0 0
      %2274 = vmatprep.subr.bf16.mxu0 0
      %2275 = vmatpush2.bf16.msra.mxu0 0
      %2276 = vmatprep.subr.bf16.mxu0 0
      %2277 = vmatpush2.bf16.msra.mxu0 0
      %2278 = vmatprep.mubr.bf16.mxu0 0
      %2279 = vmatmul.mubr.bf16.gmra.mxu0 %v957
      %v2280 = vpop.f32.mrf.mxu0
      %v2281 = vadd.f32 0.0, %v2280
      %v2282 = vpop.f32.mrf.mxu0
      %v2283 = vpop.f32.mrf.mxu0
      %v2284 = vadd.f32 0.0, %v2283
      %v2285 = vpop.f32.mrf.mxu0
      %2286 = vmatprep.mubr.bf16.mxu0 0
      %2287 = vmatmul.mubr.bf16.gmra.mxu0 %v960
      %v2288 = vpop.f32.mrf.mxu0
      %v2289 = vadd.f32 0.0, %v2288
      %v2290 = vpop.f32.mrf.mxu0
      %v2291 = vpop.f32.mrf.mxu0
      %v2292 = vadd.f32 0.0, %v2291
      %v2293 = vpop.f32.mrf.mxu0
      %2294 = vmatprep.mubr.bf16.mxu0 0
      %2295 = vmatmul.mubr.bf16.gmra.mxu0 %v963
      %v2296 = vpop.f32.mrf.mxu0
      %v2297 = vadd.f32 0.0, %v2296
      %v2298 = vpop.f32.mrf.mxu0
      %v2299 = vpop.f32.mrf.mxu0
      %v2300 = vadd.f32 0.0, %v2299
      %v2301 = vpop.f32.mrf.mxu0
      %2302 = vmatprep.mubr.bf16.mxu0 0
      %2303 = vmatmul.mubr.bf16.gmra.mxu0 %v966
      %v2304 = vpop.f32.mrf.mxu0
      %v2305 = vadd.f32 0.0, %v2304
      %v2306 = vpop.f32.mrf.mxu0
      %v2307 = vpop.f32.mrf.mxu0
      %v2308 = vadd.f32 0.0, %v2307
      %v2309 = vpop.f32.mrf.mxu0
      %2310 = vmatprep.mubr.bf16.mxu0 0
      %2311 = vmatmul.mubr.bf16.gmra.mxu0 %v969
      %v2312 = vpop.f32.mrf.mxu0
      %v2313 = vadd.f32 0.0, %v2312
      %v2314 = vpop.f32.mrf.mxu0
      %v2315 = vpop.f32.mrf.mxu0
      %v2316 = vadd.f32 0.0, %v2315
      %v2317 = vpop.f32.mrf.mxu0
      %2318 = vmatprep.mubr.bf16.mxu0 0
      %2319 = vmatmul.mubr.bf16.gmra.mxu0 %v972
      %v2320 = vpop.f32.mrf.mxu0
      %v2321 = vadd.f32 0.0, %v2320
      %v2322 = vpop.f32.mrf.mxu0
      %v2323 = vpop.f32.mrf.mxu0
      %v2324 = vadd.f32 0.0, %v2323
      %v2325 = vpop.f32.mrf.mxu0
      %2326 = vmatprep.mubr.bf16.mxu0 0
      %2327 = vmatmul.mubr.bf16.gmra.mxu0 %v975
      %v2328 = vpop.f32.mrf.mxu0
      %v2329 = vadd.f32 0.0, %v2328
      %v2330 = vpop.f32.mrf.mxu0
      %v2331 = vpop.f32.mrf.mxu0
      %v2332 = vadd.f32 0.0, %v2331
      %v2333 = vpop.f32.mrf.mxu0
      %2334 = vmatprep.mubr.bf16.mxu0 0
      %2335 = vmatmul.mubr.bf16.gmra.mxu0 %v978
      %v2336 = vpop.f32.mrf.mxu0
      %v2337 = vadd.f32 0.0, %v2336
      %v2338 = vpop.f32.mrf.mxu0
      %v2339 = vpop.f32.mrf.mxu0
      %v2340 = vadd.f32 0.0, %v2339
      %v2341 = vpop.f32.mrf.mxu0
      %2342 = vmatprep.mubr.bf16.mxu0 0
      %2343 = vmatmul.mubr.bf16.gmra.mxu0 %v981
      %v2344 = vpop.f32.mrf.mxu0
      %v2345 = vadd.f32 0.0, %v2344
      %v2346 = vpop.f32.mrf.mxu0
      %v2347 = vpop.f32.mrf.mxu0
      %v2348 = vadd.f32 0.0, %v2347
      %v2349 = vpop.f32.mrf.mxu0
      %2350 = vmatprep.mubr.bf16.mxu0 0
      %2351 = vmatmul.mubr.bf16.gmra.mxu0 %v984
      %v2352 = vpop.f32.mrf.mxu0
      %v2353 = vadd.f32 0.0, %v2352
      %v2354 = vpop.f32.mrf.mxu0
      %v2355 = vpop.f32.mrf.mxu0
      %v2356 = vadd.f32 0.0, %v2355
      %v2357 = vpop.f32.mrf.mxu0
      %2358 = vmatprep.mubr.bf16.mxu0 0
      %2359 = vmatmul.mubr.bf16.gmra.mxu0 %v987
      %v2360 = vpop.f32.mrf.mxu0
      %v2361 = vadd.f32 0.0, %v2360
      %v2362 = vpop.f32.mrf.mxu0
      %v2363 = vpop.f32.mrf.mxu0
      %v2364 = vadd.f32 0.0, %v2363
      %v2365 = vpop.f32.mrf.mxu0
      %2366 = vmatprep.mubr.bf16.mxu0 0
      %2367 = vmatmul.mubr.bf16.gmra.mxu0 %v990
      %v2368 = vpop.f32.mrf.mxu0
      %v2369 = vadd.f32 0.0, %v2368
      %v2370 = vpop.f32.mrf.mxu0
      %v2371 = vpop.f32.mrf.mxu0
      %v2372 = vadd.f32 0.0, %v2371
      %v2373 = vpop.f32.mrf.mxu0
      %2374 = vmatprep.mubr.bf16.mxu0 0
      %2375 = vmatmul.mubr.bf16.gmra.mxu0 %v993
      %v2376 = vpop.f32.mrf.mxu0
      %v2377 = vadd.f32 0.0, %v2376
      %v2378 = vpop.f32.mrf.mxu0
      %v2379 = vpop.f32.mrf.mxu0
      %v2380 = vadd.f32 0.0, %v2379
      %v2381 = vpop.f32.mrf.mxu0
      %2382 = vmatprep.mubr.bf16.mxu0 0
      %2383 = vmatmul.mubr.bf16.gmra.mxu0 %v996
      %v2384 = vpop.f32.mrf.mxu0
      %v2385 = vadd.f32 0.0, %v2384
      %v2386 = vpop.f32.mrf.mxu0
      %v2387 = vpop.f32.mrf.mxu0
      %v2388 = vadd.f32 0.0, %v2387
      %v2389 = vpop.f32.mrf.mxu0
      %2390 = vmatprep.mubr.bf16.mxu0 0
      %2391 = vmatmul.mubr.bf16.gmra.mxu0 %v1595
      %v2392 = vpop.f32.mrf.mxu0
      %v2393 = vadd.f32 0.0, %v2392
      %v2394 = vpop.f32.mrf.mxu0
      %v2395 = vpop.f32.mrf.mxu0
      %v2396 = vadd.f32 0.0, %v2395
      %v2397 = vpop.f32.mrf.mxu0
      %2398 = vmatprep.mubr.bf16.mxu0 0
      %2399 = vmatmul.mubr.bf16.gmra.mxu0 %v2241
      %v2400 = vpop.f32.mrf.mxu0
      %v2401 = vadd.f32 0.0, %v2400
      %v2402 = vpop.f32.mrf.mxu0
      %v2403 = vpop.f32.mrf.mxu0
      %v2404 = vadd.f32 0.0, %v2403
      %v2405 = vpop.f32.mrf.mxu0
      %2406 = vdwg.mxu0
      %v2407 = vadd.f32 %v2201, %v2281
      %v2408 = vadd.f32 %v2202, %v2284
      %v2409 = vadd.f32 %v2203, %v2289
      %v2410 = vadd.f32 %v2204, %v2292
      %v2411 = vadd.f32 %v2205, %v2297
      %v2412 = vadd.f32 %v2206, %v2300
      %v2413 = vadd.f32 %v2207, %v2305
      %v2414 = vadd.f32 %v2208, %v2308
      %v2415 = vadd.f32 %v2209, %v2313
      %v2416 = vadd.f32 %v2210, %v2316
      %v2417 = vadd.f32 %v2211, %v2321
      %v2418 = vadd.f32 %v2212, %v2324
      %v2419 = vadd.f32 %v2213, %v2329
      %v2420 = vadd.f32 %v2214, %v2332
      %v2421 = vadd.f32 %v2215, %v2337
      %v2422 = vadd.f32 %v2216, %v2340
      %v2423 = vadd.f32 %v2217, %v2345
      %v2424 = vadd.f32 %v2218, %v2348
      %v2425 = vadd.f32 %v2219, %v2353
      %v2426 = vadd.f32 %v2220, %v2356
      %v2427 = vadd.f32 %v2221, %v2361
      %v2428 = vadd.f32 %v2222, %v2364
      %v2429 = vadd.f32 %v2223, %v2369
      %v2430 = vadd.f32 %v2224, %v2372
      %v2431 = vadd.f32 %v2225, %v2377
      %v2432 = vadd.f32 %v2226, %v2380
      %v2433 = vadd.f32 %v2227, %v2385
      %v2434 = vadd.f32 %v2228, %v2388
      %v2435 = vadd.f32 %v2229, %v2393
      %v2436 = vadd.f32 %v2230, %v2396
      %v2437 = vadd.f32 %v2231, %v2401
      %v2438 = vadd.f32 %v2232, %v2404
      %v2440 = vshrl.u32 %v215, 16
      %v2442 = vrot.slane %v2440, 4
      %v2443 = vshll.u32 %v215, 16
      %v2445 = vrot.slane %v2443, 5
      %v2446 = vor.u32 %v2442, %v2445
      %v2447 = vrot.slane %v2446, 4
      %v2449 = vshll.u32 %v216, 16
      %v2451 = vrot.slane %v2449, 5
      %v2452 = vsel %vm221, %v2447, %v2451
      %v2453 = vshrl.u32 %v216, 16
      %v2455 = vrot.slane %v2453, 4
      %v2456 = vor.u32 %v2455, %v2451
      %v2457 = vrot.slane %v2456, 4
      %v2459 = vshll.u32 %v217, 16
      %v2461 = vrot.slane %v2459, 5
      %v2462 = vsel %vm221, %v2457, %v2461
      %s2463 = scalar_lea.vmem %s1, 14
      %v2464 = vld [vmem:[%s2463] sm:$0x3]
      %v2465 = vunpack.c.l.b16 %v2452
      %v2466 = vunpack.c.l.b16 %v2462
      %v2467 = vpack.c.b16 %v2466, %v2465
      %v2469 = vsel %vm656, %v2467, 0
      %v2472 = vsel %vm705, %v2464, 0
      %2474 = vmatprep.subr.bf16.mxu0 0
      %2475 = vmatpush1.bf16.msra.mxu0 0
      %2476 = vmatprep.subr.bf16.mxu0 0
      %2477 = vmatpush1.bf16.msra.mxu0 0
      %2478 = vmatprep.subr.bf16.mxu0 0
      %2479 = vmatpush1.bf16.msra.mxu0 0
      %2480 = vmatprep.subr.bf16.mxu0 0
      %2481 = vmatpush1.bf16.msra.mxu0 0
      %2482 = vmatprep.subr.bf16.mxu0 0
      %2483 = vmatpush1.bf16.msra.mxu0 0
      %2484 = vmatprep.subr.bf16.mxu0 0
      %2485 = vmatpush1.bf16.msra.mxu0 0
      %2486 = vmatprep.subr.bf16.mxu0 0
      %2487 = vmatpush1.bf16.msra.mxu0 0
      %2488 = vmatprep.subr.bf16.mxu0 0
      %2489 = vmatpush1.bf16.msra.mxu0 %v2472
      %2490 = vmatprep.subr.bf16.mxu0 0
      %2491 = vmatpush2.bf16.msra.mxu0 0
      %2492 = vmatprep.subr.bf16.mxu0 0
      %2493 = vmatpush2.bf16.msra.mxu0 0
      %2494 = vmatprep.subr.bf16.mxu0 0
      %2495 = vmatpush2.bf16.msra.mxu0 0
      %2496 = vmatprep.subr.bf16.mxu0 0
      %2497 = vmatpush2.bf16.msra.mxu0 0
      %2498 = vmatprep.subr.bf16.mxu0 0
      %2499 = vmatpush2.bf16.msra.mxu0 0
      %2500 = vmatprep.subr.bf16.mxu0 0
      %2501 = vmatpush2.bf16.msra.mxu0 0
      %2502 = vmatprep.subr.bf16.mxu0 0
      %2503 = vmatpush2.bf16.msra.mxu0 0
      %2504 = vmatprep.subr.bf16.mxu0 0
      %2505 = vmatpush2.bf16.msra.mxu0 0
      %2506 = vmatprep.mubr.bf16.mxu0 0
      %2507 = vmatmul.mubr.bf16.gmra.mxu0 %v664
      %v2508 = vpop.f32.mrf.mxu0
      %v2509 = vadd.f32 0.0, %v2508
      %v2510 = vpop.f32.mrf.mxu0
      %v2511 = vpop.f32.mrf.mxu0
      %v2512 = vadd.f32 0.0, %v2511
      %v2513 = vpop.f32.mrf.mxu0
      %2514 = vmatprep.mubr.bf16.mxu0 0
      %2515 = vmatmul.mubr.bf16.gmra.mxu0 %v667
      %v2516 = vpop.f32.mrf.mxu0
      %v2517 = vadd.f32 0.0, %v2516
      %v2518 = vpop.f32.mrf.mxu0
      %v2519 = vpop.f32.mrf.mxu0
      %v2520 = vadd.f32 0.0, %v2519
      %v2521 = vpop.f32.mrf.mxu0
      %2522 = vmatprep.mubr.bf16.mxu0 0
      %2523 = vmatmul.mubr.bf16.gmra.mxu0 %v670
      %v2524 = vpop.f32.mrf.mxu0
      %v2525 = vadd.f32 0.0, %v2524
      %v2526 = vpop.f32.mrf.mxu0
      %v2527 = vpop.f32.mrf.mxu0
      %v2528 = vadd.f32 0.0, %v2527
      %v2529 = vpop.f32.mrf.mxu0
      %2530 = vmatprep.mubr.bf16.mxu0 0
      %2531 = vmatmul.mubr.bf16.gmra.mxu0 %v673
      %v2532 = vpop.f32.mrf.mxu0
      %v2533 = vadd.f32 0.0, %v2532
      %v2534 = vpop.f32.mrf.mxu0
      %v2535 = vpop.f32.mrf.mxu0
      %v2536 = vadd.f32 0.0, %v2535
      %v2537 = vpop.f32.mrf.mxu0
      %2538 = vmatprep.mubr.bf16.mxu0 0
      %2539 = vmatmul.mubr.bf16.gmra.mxu0 %v676
      %v2540 = vpop.f32.mrf.mxu0
      %v2541 = vadd.f32 0.0, %v2540
      %v2542 = vpop.f32.mrf.mxu0
      %v2543 = vpop.f32.mrf.mxu0
      %v2544 = vadd.f32 0.0, %v2543
      %v2545 = vpop.f32.mrf.mxu0
      %2546 = vmatprep.mubr.bf16.mxu0 0
      %2547 = vmatmul.mubr.bf16.gmra.mxu0 %v679
      %v2548 = vpop.f32.mrf.mxu0
      %v2549 = vadd.f32 0.0, %v2548
      %v2550 = vpop.f32.mrf.mxu0
      %v2551 = vpop.f32.mrf.mxu0
      %v2552 = vadd.f32 0.0, %v2551
      %v2553 = vpop.f32.mrf.mxu0
      %2554 = vmatprep.mubr.bf16.mxu0 0
      %2555 = vmatmul.mubr.bf16.gmra.mxu0 %v682
      %v2556 = vpop.f32.mrf.mxu0
      %v2557 = vadd.f32 0.0, %v2556
      %v2558 = vpop.f32.mrf.mxu0
      %v2559 = vpop.f32.mrf.mxu0
      %v2560 = vadd.f32 0.0, %v2559
      %v2561 = vpop.f32.mrf.mxu0
      %2562 = vmatprep.mubr.bf16.mxu0 0
      %2563 = vmatmul.mubr.bf16.gmra.mxu0 %v685
      %v2564 = vpop.f32.mrf.mxu0
      %v2565 = vadd.f32 0.0, %v2564
      %v2566 = vpop.f32.mrf.mxu0
      %v2567 = vpop.f32.mrf.mxu0
      %v2568 = vadd.f32 0.0, %v2567
      %v2569 = vpop.f32.mrf.mxu0
      %2570 = vmatprep.mubr.bf16.mxu0 0
      %2571 = vmatmul.mubr.bf16.gmra.mxu0 %v688
      %v2572 = vpop.f32.mrf.mxu0
      %v2573 = vadd.f32 0.0, %v2572
      %v2574 = vpop.f32.mrf.mxu0
      %v2575 = vpop.f32.mrf.mxu0
      %v2576 = vadd.f32 0.0, %v2575
      %v2577 = vpop.f32.mrf.mxu0
      %2578 = vmatprep.mubr.bf16.mxu0 0
      %2579 = vmatmul.mubr.bf16.gmra.mxu0 %v691
      %v2580 = vpop.f32.mrf.mxu0
      %v2581 = vadd.f32 0.0, %v2580
      %v2582 = vpop.f32.mrf.mxu0
      %v2583 = vpop.f32.mrf.mxu0
      %v2584 = vadd.f32 0.0, %v2583
      %v2585 = vpop.f32.mrf.mxu0
      %2586 = vmatprep.mubr.bf16.mxu0 0
      %2587 = vmatmul.mubr.bf16.gmra.mxu0 %v694
      %v2588 = vpop.f32.mrf.mxu0
      %v2589 = vadd.f32 0.0, %v2588
      %v2590 = vpop.f32.mrf.mxu0
      %v2591 = vpop.f32.mrf.mxu0
      %v2592 = vadd.f32 0.0, %v2591
      %v2593 = vpop.f32.mrf.mxu0
      %2594 = vmatprep.mubr.bf16.mxu0 0
      %2595 = vmatmul.mubr.bf16.gmra.mxu0 %v697
      %v2596 = vpop.f32.mrf.mxu0
      %v2597 = vadd.f32 0.0, %v2596
      %v2598 = vpop.f32.mrf.mxu0
      %v2599 = vpop.f32.mrf.mxu0
      %v2600 = vadd.f32 0.0, %v2599
      %v2601 = vpop.f32.mrf.mxu0
      %2602 = vmatprep.mubr.bf16.mxu0 0
      %2603 = vmatmul.mubr.bf16.gmra.mxu0 %v700
      %v2604 = vpop.f32.mrf.mxu0
      %v2605 = vadd.f32 0.0, %v2604
      %v2606 = vpop.f32.mrf.mxu0
      %v2607 = vpop.f32.mrf.mxu0
      %v2608 = vadd.f32 0.0, %v2607
      %v2609 = vpop.f32.mrf.mxu0
      %2610 = vmatprep.mubr.bf16.mxu0 0
      %2611 = vmatmul.mubr.bf16.gmra.mxu0 %v703
      %v2612 = vpop.f32.mrf.mxu0
      %v2613 = vadd.f32 0.0, %v2612
      %v2614 = vpop.f32.mrf.mxu0
      %v2615 = vpop.f32.mrf.mxu0
      %v2616 = vadd.f32 0.0, %v2615
      %v2617 = vpop.f32.mrf.mxu0
      %2618 = vmatprep.mubr.bf16.mxu0 0
      %2619 = vmatmul.mubr.bf16.gmra.mxu0 %v1823
      %v2620 = vpop.f32.mrf.mxu0
      %v2621 = vadd.f32 0.0, %v2620
      %v2622 = vpop.f32.mrf.mxu0
      %v2623 = vpop.f32.mrf.mxu0
      %v2624 = vadd.f32 0.0, %v2623
      %v2625 = vpop.f32.mrf.mxu0
      %2626 = vmatprep.mubr.bf16.mxu0 0
      %2627 = vmatmul.mubr.bf16.gmra.mxu0 %v2469
      %v2628 = vpop.f32.mrf.mxu0
      %v2629 = vadd.f32 0.0, %v2628
      %v2630 = vpop.f32.mrf.mxu0
      %v2631 = vpop.f32.mrf.mxu0
      %v2632 = vadd.f32 0.0, %v2631
      %v2633 = vpop.f32.mrf.mxu0
      %2634 = vdwg.mxu0
      %v2635 = vadd.f32 %v2407, %v2509
      %v2636 = vadd.f32 %v2408, %v2512
      %v2637 = vadd.f32 %v2409, %v2517
      %v2638 = vadd.f32 %v2410, %v2520
      %v2639 = vadd.f32 %v2411, %v2525
      %v2640 = vadd.f32 %v2412, %v2528
      %v2641 = vadd.f32 %v2413, %v2533
      %v2642 = vadd.f32 %v2414, %v2536
      %v2643 = vadd.f32 %v2415, %v2541
      %v2644 = vadd.f32 %v2416, %v2544
      %v2645 = vadd.f32 %v2417, %v2549
      %v2646 = vadd.f32 %v2418, %v2552
      %v2647 = vadd.f32 %v2419, %v2557
      %v2648 = vadd.f32 %v2420, %v2560
      %v2649 = vadd.f32 %v2421, %v2565
      %v2650 = vadd.f32 %v2422, %v2568
      %v2651 = vadd.f32 %v2423, %v2573
      %v2652 = vadd.f32 %v2424, %v2576
      %v2653 = vadd.f32 %v2425, %v2581
      %v2654 = vadd.f32 %v2426, %v2584
      %v2655 = vadd.f32 %v2427, %v2589
      %v2656 = vadd.f32 %v2428, %v2592
      %v2657 = vadd.f32 %v2429, %v2597
      %v2658 = vadd.f32 %v2430, %v2600
      %v2659 = vadd.f32 %v2431, %v2605
      %v2660 = vadd.f32 %v2432, %v2608
      %v2661 = vadd.f32 %v2433, %v2613
      %v2662 = vadd.f32 %v2434, %v2616
      %v2663 = vadd.f32 %v2435, %v2621
      %v2664 = vadd.f32 %v2436, %v2624
      %v2665 = vadd.f32 %v2437, %v2629
      %v2666 = vadd.f32 %v2438, %v2632
      %v2668 = vrot.slane %v215, 5
      %v2669 = vrot.slane %v2668, 4
      %v2670 = vrot.slane %v216, 5
      %v2671 = vsel %vm1180, %v2669, %v2670
      %v2672 = vrot.slane %v2670, 4
      %v2673 = vrot.slane %v217, 5
      %v2674 = vsel %vm1180, %v2672, %v2673
      %s2675 = scalar_lea.vmem %s1, 16
      %v2676 = vld [vmem:[%s2675] sm:$0x3]
      %v2677 = vunpack.c.l.b16 %v2671
      %v2678 = vunpack.c.l.b16 %v2674
      %v2679 = vpack.c.b16 %v2678, %v2677
      %v2681 = vsel %vm656, %v2679, 0
      %v2684 = vsel %vm705, %v2676, 0
      %2686 = vmatprep.subr.bf16.mxu0 0
      %2687 = vmatpush1.bf16.msra.mxu0 0
      %2688 = vmatprep.subr.bf16.mxu0 0
      %2689 = vmatpush1.bf16.msra.mxu0 0
      %2690 = vmatprep.subr.bf16.mxu0 0
      %2691 = vmatpush1.bf16.msra.mxu0 0
      %2692 = vmatprep.subr.bf16.mxu0 0
      %2693 = vmatpush1.bf16.msra.mxu0 0
      %2694 = vmatprep.subr.bf16.mxu0 0
      %2695 = vmatpush1.bf16.msra.mxu0 0
      %2696 = vmatprep.subr.bf16.mxu0 0
      %2697 = vmatpush1.bf16.msra.mxu0 0
      %2698 = vmatprep.subr.bf16.mxu0 0
      %2699 = vmatpush1.bf16.msra.mxu0 0
      %2700 = vmatprep.subr.bf16.mxu0 0
      %2701 = vmatpush1.bf16.msra.mxu0 %v2684
      %2702 = vmatprep.subr.bf16.mxu0 0
      %2703 = vmatpush2.bf16.msra.mxu0 0
      %2704 = vmatprep.subr.bf16.mxu0 0
      %2705 = vmatpush2.bf16.msra.mxu0 0
      %2706 = vmatprep.subr.bf16.mxu0 0
      %2707 = vmatpush2.bf16.msra.mxu0 0
      %2708 = vmatprep.subr.bf16.mxu0 0
      %2709 = vmatpush2.bf16.msra.mxu0 0
      %2710 = vmatprep.subr.bf16.mxu0 0
      %2711 = vmatpush2.bf16.msra.mxu0 0
      %2712 = vmatprep.subr.bf16.mxu0 0
      %2713 = vmatpush2.bf16.msra.mxu0 0
      %2714 = vmatprep.subr.bf16.mxu0 0
      %2715 = vmatpush2.bf16.msra.mxu0 0
      %2716 = vmatprep.subr.bf16.mxu0 0
      %2717 = vmatpush2.bf16.msra.mxu0 0
      %2718 = vmatprep.mubr.bf16.mxu0 0
      %2719 = vmatmul.mubr.bf16.gmra.mxu0 %v1350
      %v2720 = vpop.f32.mrf.mxu0
      %v2721 = vadd.f32 0.0, %v2720
      %v2722 = vpop.f32.mrf.mxu0
      %v2723 = vpop.f32.mrf.mxu0
      %v2724 = vadd.f32 0.0, %v2723
      %v2725 = vpop.f32.mrf.mxu0
      %2726 = vmatprep.mubr.bf16.mxu0 0
      %2727 = vmatmul.mubr.bf16.gmra.mxu0 %v1353
      %v2728 = vpop.f32.mrf.mxu0
      %v2729 = vadd.f32 0.0, %v2728
      %v2730 = vpop.f32.mrf.mxu0
      %v2731 = vpop.f32.mrf.mxu0
      %v2732 = vadd.f32 0.0, %v2731
      %v2733 = vpop.f32.mrf.mxu0
      %2734 = vmatprep.mubr.bf16.mxu0 0
      %2735 = vmatmul.mubr.bf16.gmra.mxu0 %v1356
      %v2736 = vpop.f32.mrf.mxu0
      %v2737 = vadd.f32 0.0, %v2736
      %v2738 = vpop.f32.mrf.mxu0
      %v2739 = vpop.f32.mrf.mxu0
      %v2740 = vadd.f32 0.0, %v2739
      %v2741 = vpop.f32.mrf.mxu0
      %2742 = vmatprep.mubr.bf16.mxu0 0
      %2743 = vmatmul.mubr.bf16.gmra.mxu0 %v1359
      %v2744 = vpop.f32.mrf.mxu0
      %v2745 = vadd.f32 0.0, %v2744
      %v2746 = vpop.f32.mrf.mxu0
      %v2747 = vpop.f32.mrf.mxu0
      %v2748 = vadd.f32 0.0, %v2747
      %v2749 = vpop.f32.mrf.mxu0
      %2750 = vmatprep.mubr.bf16.mxu0 0
      %2751 = vmatmul.mubr.bf16.gmra.mxu0 %v1362
      %v2752 = vpop.f32.mrf.mxu0
      %v2753 = vadd.f32 0.0, %v2752
      %v2754 = vpop.f32.mrf.mxu0
      %v2755 = vpop.f32.mrf.mxu0
      %v2756 = vadd.f32 0.0, %v2755
      %v2757 = vpop.f32.mrf.mxu0
      %2758 = vmatprep.mubr.bf16.mxu0 0
      %2759 = vmatmul.mubr.bf16.gmra.mxu0 %v1365
      %v2760 = vpop.f32.mrf.mxu0
      %v2761 = vadd.f32 0.0, %v2760
      %v2762 = vpop.f32.mrf.mxu0
      %v2763 = vpop.f32.mrf.mxu0
      %v2764 = vadd.f32 0.0, %v2763
      %v2765 = vpop.f32.mrf.mxu0
      %2766 = vmatprep.mubr.bf16.mxu0 0
      %2767 = vmatmul.mubr.bf16.gmra.mxu0 %v1368
      %v2768 = vpop.f32.mrf.mxu0
      %v2769 = vadd.f32 0.0, %v2768
      %v2770 = vpop.f32.mrf.mxu0
      %v2771 = vpop.f32.mrf.mxu0
      %v2772 = vadd.f32 0.0, %v2771
      %v2773 = vpop.f32.mrf.mxu0
      %2774 = vmatprep.mubr.bf16.mxu0 0
      %2775 = vmatmul.mubr.bf16.gmra.mxu0 %v1371
      %v2776 = vpop.f32.mrf.mxu0
      %v2777 = vadd.f32 0.0, %v2776
      %v2778 = vpop.f32.mrf.mxu0
      %v2779 = vpop.f32.mrf.mxu0
      %v2780 = vadd.f32 0.0, %v2779
      %v2781 = vpop.f32.mrf.mxu0
      %2782 = vmatprep.mubr.bf16.mxu0 0
      %2783 = vmatmul.mubr.bf16.gmra.mxu0 %v1374
      %v2784 = vpop.f32.mrf.mxu0
      %v2785 = vadd.f32 0.0, %v2784
      %v2786 = vpop.f32.mrf.mxu0
      %v2787 = vpop.f32.mrf.mxu0
      %v2788 = vadd.f32 0.0, %v2787
      %v2789 = vpop.f32.mrf.mxu0
      %2790 = vmatprep.mubr.bf16.mxu0 0
      %2791 = vmatmul.mubr.bf16.gmra.mxu0 %v1377
      %v2792 = vpop.f32.mrf.mxu0
      %v2793 = vadd.f32 0.0, %v2792
      %v2794 = vpop.f32.mrf.mxu0
      %v2795 = vpop.f32.mrf.mxu0
      %v2796 = vadd.f32 0.0, %v2795
      %v2797 = vpop.f32.mrf.mxu0
      %2798 = vmatprep.mubr.bf16.mxu0 0
      %2799 = vmatmul.mubr.bf16.gmra.mxu0 %v1380
      %v2800 = vpop.f32.mrf.mxu0
      %v2801 = vadd.f32 0.0, %v2800
      %v2802 = vpop.f32.mrf.mxu0
      %v2803 = vpop.f32.mrf.mxu0
      %v2804 = vadd.f32 0.0, %v2803
      %v2805 = vpop.f32.mrf.mxu0
      %2806 = vmatprep.mubr.bf16.mxu0 0
      %2807 = vmatmul.mubr.bf16.gmra.mxu0 %v1383
      %v2808 = vpop.f32.mrf.mxu0
      %v2809 = vadd.f32 0.0, %v2808
      %v2810 = vpop.f32.mrf.mxu0
      %v2811 = vpop.f32.mrf.mxu0
      %v2812 = vadd.f32 0.0, %v2811
      %v2813 = vpop.f32.mrf.mxu0
      %2814 = vmatprep.mubr.bf16.mxu0 0
      %2815 = vmatmul.mubr.bf16.gmra.mxu0 %v1386
      %v2816 = vpop.f32.mrf.mxu0
      %v2817 = vadd.f32 0.0, %v2816
      %v2818 = vpop.f32.mrf.mxu0
      %v2819 = vpop.f32.mrf.mxu0
      %v2820 = vadd.f32 0.0, %v2819
      %v2821 = vpop.f32.mrf.mxu0
      %2822 = vmatprep.mubr.bf16.mxu0 0
      %2823 = vmatmul.mubr.bf16.gmra.mxu0 %v1389
      %v2824 = vpop.f32.mrf.mxu0
      %v2825 = vadd.f32 0.0, %v2824
      %v2826 = vpop.f32.mrf.mxu0
      %v2827 = vpop.f32.mrf.mxu0
      %v2828 = vadd.f32 0.0, %v2827
      %v2829 = vpop.f32.mrf.mxu0
      %2830 = vmatprep.mubr.bf16.mxu0 0
      %2831 = vmatmul.mubr.bf16.gmra.mxu0 %v2035
      %v2832 = vpop.f32.mrf.mxu0
      %v2833 = vadd.f32 0.0, %v2832
      %v2834 = vpop.f32.mrf.mxu0
      %v2835 = vpop.f32.mrf.mxu0
      %v2836 = vadd.f32 0.0, %v2835
      %v2837 = vpop.f32.mrf.mxu0
      %2838 = vmatprep.mubr.bf16.mxu0 0
      %2839 = vmatmul.mubr.bf16.gmra.mxu0 %v2681
      %v2840 = vpop.f32.mrf.mxu0
      %v2841 = vadd.f32 0.0, %v2840
      %v2842 = vpop.f32.mrf.mxu0
      %v2843 = vpop.f32.mrf.mxu0
      %v2844 = vadd.f32 0.0, %v2843
      %v2845 = vpop.f32.mrf.mxu0
      %2846 = vdwg.mxu0
      %v2847 = vadd.f32 %v2635, %v2721
      %v2848 = vadd.f32 %v2636, %v2724
      %v2849 = vadd.f32 %v2637, %v2729
      %v2850 = vadd.f32 %v2638, %v2732
      %v2851 = vadd.f32 %v2639, %v2737
      %v2852 = vadd.f32 %v2640, %v2740
      %v2853 = vadd.f32 %v2641, %v2745
      %v2854 = vadd.f32 %v2642, %v2748
      %v2855 = vadd.f32 %v2643, %v2753
      %v2856 = vadd.f32 %v2644, %v2756
      %v2857 = vadd.f32 %v2645, %v2761
      %v2858 = vadd.f32 %v2646, %v2764
      %v2859 = vadd.f32 %v2647, %v2769
      %v2860 = vadd.f32 %v2648, %v2772
      %v2861 = vadd.f32 %v2649, %v2777
      %v2862 = vadd.f32 %v2650, %v2780
      %v2863 = vadd.f32 %v2651, %v2785
      %v2864 = vadd.f32 %v2652, %v2788
      %v2865 = vadd.f32 %v2653, %v2793
      %v2866 = vadd.f32 %v2654, %v2796
      %v2867 = vadd.f32 %v2655, %v2801
      %v2868 = vadd.f32 %v2656, %v2804
      %v2869 = vadd.f32 %v2657, %v2809
      %v2870 = vadd.f32 %v2658, %v2812
      %v2871 = vadd.f32 %v2659, %v2817
      %v2872 = vadd.f32 %v2660, %v2820
      %v2873 = vadd.f32 %v2661, %v2825
      %v2874 = vadd.f32 %v2662, %v2828
      %v2875 = vadd.f32 %v2663, %v2833
      %v2876 = vadd.f32 %v2664, %v2836
      %v2877 = vadd.f32 %v2665, %v2841
      %v2878 = vadd.f32 %v2666, %v2844
      %v2879 = vadd.f32 %v2847, %v2848
      %v2880 = vadd.f32 %v2879, %v2849
      %v2881 = vadd.f32 %v2880, %v2850
      %v2882 = vadd.f32 %v2881, %v2851
      %v2883 = vadd.f32 %v2882, %v2852
      %v2884 = vadd.f32 %v2883, %v2853
      %v2885 = vadd.f32 %v2884, %v2854
      %v2886 = vadd.f32 %v2885, %v2855
      %v2887 = vadd.f32 %v2886, %v2856
      %v2888 = vadd.f32 %v2887, %v2857
      %v2889 = vadd.f32 %v2888, %v2858
      %v2890 = vadd.f32 %v2889, %v2859
      %v2891 = vadd.f32 %v2890, %v2860
      %v2892 = vadd.f32 %v2891, %v2861
      %v2893 = vadd.f32 %v2892, %v2862
      %v2894 = vadd.f32 %v2893, %v2863
      %v2895 = vadd.f32 %v2894, %v2864
      %v2896 = vadd.f32 %v2895, %v2865
      %v2897 = vadd.f32 %v2896, %v2866
      %v2898 = vadd.f32 %v2897, %v2867
      %v2899 = vadd.f32 %v2898, %v2868
      %v2900 = vadd.f32 %v2899, %v2869
      %v2901 = vadd.f32 %v2900, %v2870
      %v2902 = vadd.f32 %v2901, %v2871
      %v2903 = vadd.f32 %v2902, %v2872
      %v2904 = vadd.f32 %v2903, %v2873
      %v2905 = vadd.f32 %v2904, %v2874
      %v2906 = vadd.f32 %v2905, %v2875
      %v2907 = vadd.f32 %v2906, %v2876
      %v2908 = vadd.f32 %v2907, %v2877
      %v2909 = vadd.f32 %v2908, %v2878
      %v2910 = vrot.slane %v2909, 4
      %v2911 = vadd.f32 %v2909, %v2910
      %v2912 = vrot.slane %v2911, 2
      %v2913 = vadd.f32 %v2911, %v2912
      %v2914 = vrot.slane %v2913, 1
      %v2915 = vadd.f32 %v2913, %v2914
      %v2916 = vmul.f32 %v2847, %v2847
      %v2917 = vmul.f32 %v2848, %v2848
      %v2918 = vmul.f32 %v2849, %v2849
      %v2919 = vmul.f32 %v2850, %v2850
      %v2920 = vmul.f32 %v2851, %v2851
      %v2921 = vmul.f32 %v2852, %v2852
      %v2922 = vmul.f32 %v2853, %v2853
      %v2923 = vmul.f32 %v2854, %v2854
      %v2924 = vmul.f32 %v2855, %v2855
      %v2925 = vmul.f32 %v2856, %v2856
      %v2926 = vmul.f32 %v2857, %v2857
      %v2927 = vmul.f32 %v2858, %v2858
      %v2928 = vmul.f32 %v2859, %v2859
      %v2929 = vmul.f32 %v2860, %v2860
      %v2930 = vmul.f32 %v2861, %v2861
      %v2931 = vmul.f32 %v2862, %v2862
      %v2932 = vmul.f32 %v2863, %v2863
      %v2933 = vmul.f32 %v2864, %v2864
      %v2934 = vmul.f32 %v2865, %v2865
      %v2935 = vmul.f32 %v2866, %v2866
      %v2936 = vmul.f32 %v2867, %v2867
      %v2937 = vmul.f32 %v2868, %v2868
      %v2938 = vmul.f32 %v2869, %v2869
      %v2939 = vmul.f32 %v2870, %v2870
      %v2940 = vmul.f32 %v2871, %v2871
      %v2941 = vmul.f32 %v2872, %v2872
      %v2942 = vmul.f32 %v2873, %v2873
      %v2943 = vmul.f32 %v2874, %v2874
      %v2944 = vmul.f32 %v2875, %v2875
      %v2945 = vmul.f32 %v2876, %v2876
      %v2946 = vmul.f32 %v2877, %v2877
      %v2947 = vmul.f32 %v2878, %v2878
      %v2948 = vadd.f32 %v2916, %v2917
      %v2949 = vadd.f32 %v2948, %v2918
      %v2950 = vadd.f32 %v2949, %v2919
      %v2951 = vadd.f32 %v2950, %v2920
      %v2952 = vadd.f32 %v2951, %v2921
      %v2953 = vadd.f32 %v2952, %v2922
      %v2954 = vadd.f32 %v2953, %v2923
      %v2955 = vadd.f32 %v2954, %v2924
      %v2956 = vadd.f32 %v2955, %v2925
      %v2957 = vadd.f32 %v2956, %v2926
      %v2958 = vadd.f32 %v2957, %v2927
      %v2959 = vadd.f32 %v2958, %v2928
      %v2960 = vadd.f32 %v2959, %v2929
      %v2961 = vadd.f32 %v2960, %v2930
      %v2962 = vadd.f32 %v2961, %v2931
      %v2963 = vadd.f32 %v2962, %v2932
      %v2964 = vadd.f32 %v2963, %v2933
      %v2965 = vadd.f32 %v2964, %v2934
      %v2966 = vadd.f32 %v2965, %v2935
      %v2967 = vadd.f32 %v2966, %v2936
      %v2968 = vadd.f32 %v2967, %v2937
      %v2969 = vadd.f32 %v2968, %v2938
      %v2970 = vadd.f32 %v2969, %v2939
      %v2971 = vadd.f32 %v2970, %v2940
      %v2972 = vadd.f32 %v2971, %v2941
      %v2973 = vadd.f32 %v2972, %v2942
      %v2974 = vadd.f32 %v2973, %v2943
      %v2975 = vadd.f32 %v2974, %v2944
      %v2976 = vadd.f32 %v2975, %v2945
      %v2977 = vadd.f32 %v2976, %v2946
      %v2978 = vadd.f32 %v2977, %v2947
      %v2979 = vrot.slane %v2978, 4
      %v2980 = vadd.f32 %v2978, %v2979
      %v2981 = vrot.slane %v2980, 2
      %v2982 = vadd.f32 %v2980, %v2981
      %v2983 = vrot.slane %v2982, 1
      %v2984 = vadd.f32 %v2982, %v2983
      %vm2985 = vcmask 1040384
      %v2986 = vsel %vm2985, %v2915, %v2984
      %2987 = vst [vmem:[%s157] sm:$0x3] %v2986
      %s2988 = sadd.s32 %s17, %s18
      %p2989 = scmp.lt.s32.totalorder %s2988, 1
      %s2990 = scalar_select %p2989, %s2988, 1
      %s2991 = smul.addr %s2990, 2
      %s2992 = scalar_lea.vmem %s2, %s2991
      // Predicated region
      $region29: #{conv2d_block_forward.2} parent=27 // pred_check
        %p2993 = pneg %p92
      $region30: #{conv2d_block_forward.2} parent=27 // pred_check_branch
        %2995 = sbr.rel (%p2993) target = $region32
      $region31: #{conv2d_block_forward.2} parent=27 // pred_region
        %s2996 = sadd.s32 %s17, %s18
      $region32: #{conv2d_block_forward.2} parent=27 // pred_fallthru
        _
    $region28: #{conv2d_block_forward.2} parent=5 // pred_fallthru
      _
    %p2997 = scmp.le.s32.totalorder 2, %s8
    // Predicated region
    $region33: #{conv2d_block_forward.2} parent=5 // pred_check
      %p2998 = pneg %p2997
    $region34: #{conv2d_block_forward.2} parent=5 // pred_check_branch
      %3000 = sbr.rel (%p2998) target = $region36
    $region35: #{conv2d_block_forward.2} parent=5 // pred_region
      %s3001 = ssub.s32 %s8, 2
      // Predicated region
      $region37: #{conv2d_block_forward.2} parent=35 // pred_check
        %p3002 = pneg %p98
      $region38: #{conv2d_block_forward.2} parent=35 // pred_check_branch
        %3004 = sbr.rel (%p3002) target = $region40
      $region39: #{conv2d_block_forward.2} parent=35 // pred_region
        %s3005 = sadd.s32 %s19, %s20
        %p3006 = scmp.lt.s32.totalorder %s3005, 1
        %s3007 = scalar_select %p3006, %s3005, 1
        %s3008 = smul.addr %s3007, 2
        %s3009 = scalar_lea.vmem %s2, %s3008
      $region40: #{conv2d_block_forward.2} parent=35 // pred_fallthru
        _
    $region36: #{conv2d_block_forward.2} parent=5 // pred_fallthru
      _
  $region6: #{conv2d_block_forward.2} parent=0 // loop_footer
    %s12 = sadd.s32 1, %s8
  $region7: #{conv2d_block_forward.2} parent=0 // loop_footer_branch
    %7 = sbr.rel target = $region3
  $region8: #{conv2d_block_forward.2} parent=0 // loop_exit
    _

</llo_original>
